<compile_context>
chip_gen: v6e
topology: v6e:2x2x1
jax: 0.10.0
libtpu: 0.0.40
codegen_flags: <defaults>
</compile_context>

<pallas_src>
import jax
import jax.numpy as jnp
from jax import lax
from jax.experimental import pallas as pl
from jax.experimental.pallas import tpu as pltpu


# ---------------------------------------------------------------------------
# Tiling helpers
# ---------------------------------------------------------------------------
def _pick_div(dim, candidates):
    """Largest candidate that divides `dim` exactly (candidates largest-first)."""
    for c in candidates:
        if dim % c == 0:
            return c
    return candidates[-1]


def _tile_and_pad(dim, candidates):
    """Pick a tile size and the padded dim.  Never falls back to the raw full
    dimension, so a non-divisible vocab can't produce a VMEM-busting block."""
    for c in candidates:
        if dim % c == 0:
            return c, dim
    for c in candidates:
        if c <= dim:
            return c, ((dim + c - 1) // c) * c
    c = candidates[-1]
    return c, ((dim + c - 1) // c) * c


def _vmem_limit(nbytes):
    # Generous headroom, clamped safely below v7x's 64 MiB physical VMEM.
    return int(min(max(2 * nbytes, 16 * 1024 * 1024), 48 * 1024 * 1024))


# ---------------------------------------------------------------------------
# Tiled matmul + bias:  (M, K) @ (K, N) + (1, N)  ->  (M, N)
# Used for the output projection H @ W_out^T + b_out.
# ---------------------------------------------------------------------------
def _matmul_bias_kernel(x_ref, w_ref, b_ref, o_ref, acc_ref):
    @pl.when(pl.program_id(2) == 0)
    def _():
        acc_ref[...] = jnp.zeros_like(acc_ref)

    acc_ref[...] += jnp.dot(x_ref[...], w_ref[...],
                            preferred_element_type=jnp.float32)

    @pl.when(pl.program_id(2) == pl.num_programs(2) - 1)
    def _():
        o_ref[...] = (acc_ref[...] + b_ref[...]).astype(o_ref.dtype)


def matmul_bias(x, w, b, out_dtype=jnp.float32):
    """x: (M, K), w: (K, N), b: (1, N) f32 -> (M, N) out_dtype (f32 accumulate)."""
    M, K = x.shape
    Kw, N = w.shape
    assert K == Kw

    tm, Mp = _tile_and_pad(M, (512, 256, 128, 64, 32, 16, 8))
    tn, Np = _tile_and_pad(N, (512, 256, 128))
    Kp = ((K + 127) // 128) * 128
    if Kp <= 1024:
        tk = Kp                      # K kept whole: x row-block resident over vocab sweep
    else:
        tk, Kp = _tile_and_pad(K, (512, 256, 128))

    if (Mp, Kp) != (M, K):
        x = jnp.pad(x, ((0, Mp - M), (0, Kp - K)))
    if (Kp, Np) != (K, N):
        w = jnp.pad(w, ((0, Kp - K), (0, Np - N)))
    if Np != N:
        b = jnp.pad(b, ((0, 0), (0, Np - N)))

    grid = (Mp // tm, Np // tn, Kp // tk)
    xb = jnp.dtype(x.dtype).itemsize
    wb = jnp.dtype(w.dtype).itemsize
    ob = jnp.dtype(out_dtype).itemsize
    footprint = (2 * tm * tk * xb + 2 * tk * tn * wb + 2 * tn * 4
                 + 2 * tm * tn * ob + tm * tn * 4)

    out = pl.pallas_call(
        _matmul_bias_kernel,
        out_shape=jax.ShapeDtypeStruct((Mp, Np), out_dtype),
        grid_spec=pltpu.PrefetchScalarGridSpec(
            num_scalar_prefetch=0,
            grid=grid,
            in_specs=[
                pl.BlockSpec((tm, tk), lambda i, j, k: (i, k)),
                pl.BlockSpec((tk, tn), lambda i, j, k: (k, j)),
                pl.BlockSpec((1, tn), lambda i, j, k: (0, j)),
            ],
            out_specs=pl.BlockSpec((tm, tn), lambda i, j, k: (i, j)),
            scratch_shapes=[pltpu.VMEM((tm, tn), jnp.float32)],
        ),
        compiler_params=pltpu.CompilerParams(
            dimension_semantics=("parallel", "parallel", "arbitrary"),
            vmem_limit_bytes=_vmem_limit(footprint),
        ),
    )(x, w, b)

    if (Mp, Np) != (M, N):
        out = out[:M, :N]
    return out


# ---------------------------------------------------------------------------
# Fused LSTM kernel: per grid step, one MXU-dense block input projection
# (Tt*B, E) @ (E, 4H) + bias into VMEM, then the serial recurrence over the
# Tt time steps of this block.  Hidden states are written back in bf16.
# ---------------------------------------------------------------------------
def lstm_fused_kernel(emb_ref, wih_ref, whh_ref, b_ref, h_out_ref,
                      h_scr, c_scr, pre_scr):
    """
    emb_ref   : (Tt*B, E)  bf16  embedded tokens (time-major, flattened)
    wih_ref   : (E, 4H)    bf16  W_ih^T
    whh_ref   : (H, 4H)    bf16  W_hh^T  (PyTorch gate order i, f, g, o)
    b_ref     : (1, 4H)    f32   fused bias b_ih + b_hh
    h_out_ref : (Tt*B, H)  bf16  hidden states for this time block
    h_scr/c_scr : (B, H)   f32   persistent LSTM state across grid steps
    pre_scr   : (Tt*B, 4H) f32   gate pre-activations for this block
    """
    t_blk = pl.program_id(0)

    @pl.when(t_blk == 0)
    def _():
        h_scr[...] = jnp.zeros_like(h_scr)
        c_scr[...] = jnp.zeros_like(c_scr)

    B, H = h_scr.shape
    Tt = emb_ref.shape[0] // B

    # (1) Block-dense input projection on the MXU (fused bias).
    pre_scr[...] = jnp.dot(emb_ref[...], wih_ref[...],
                           preferred_element_type=jnp.float32) + b_ref[...]

    # (2) Serial recurrence.  W_hh load is loop-invariant (hoisted).
    # TODO(synk): with tiny B, pltpu.matmul_push_rhs/matmul_acc_lhs could keep
    #             W_hh weight-stationary across the unrolled steps.
    w_hh = whh_ref[...]

    def step(s, carry):
        r0 = pl.multiple_of(s * B, B)
        h_prev = h_scr[...]
        c_prev = c_scr[...]
        gates = pre_scr[pl.ds(r0, B), :] + jnp.dot(
            h_prev.astype(w_hh.dtype), w_hh,
            preferred_element_type=jnp.float32)            # (B, 4H) f32
        # H multiple of 128 -> lane-aligned (free) gate slices.
        i_g = jax.nn.sigmoid(gates[:, 0 * H:1 * H])
        f_g = jax.nn.sigmoid(gates[:, 1 * H:2 * H])
        g_g = jnp.tanh(gates[:, 2 * H:3 * H])
        o_g = jax.nn.sigmoid(gates[:, 3 * H:4 * H])
        c_new = f_g * c_prev + i_g * g_g
        h_new = o_g * jnp.tanh(c_new)
        h_scr[...] = h_new
        c_scr[...] = c_new
        h_out_ref[pl.ds(r0, B), :] = h_new.astype(h_out_ref.dtype)
        return carry

    lax.fori_loop(0, Tt, step, 0, unroll=True)


def lstm_recurrence_fused(emb2d, wih_t, whh_t, bias, *, batch):
    """emb2d: (T*B, E) bf16 -> hidden states (T*B, H) bf16."""
    TB, E = emb2d.shape
    H, G = whh_t.shape
    T = TB // batch
    Tt = _pick_div(T, (64, 32, 16, 8, 4, 2, 1))   # time steps per grid iteration
    rows = Tt * batch

    footprint = (2 * rows * E * 2 + 2 * E * G * 2 + 2 * H * G * 2 + 2 * G * 4
                 + 2 * rows * H * 2 + 2 * batch * H * 4 + rows * G * 4)

    return pl.pallas_call(
        lstm_fused_kernel,
        out_shape=jax.ShapeDtypeStruct((TB, H), jnp.bfloat16),
        grid_spec=pltpu.PrefetchScalarGridSpec(
            num_scalar_prefetch=0,
            grid=(T // Tt,),
            in_specs=[
                pl.BlockSpec((rows, E), lambda t: (t, 0)),   # embeddings
                pl.BlockSpec((E, G), lambda t: (0, 0)),      # W_ih^T (bf16)
                pl.BlockSpec((H, G), lambda t: (0, 0)),      # W_hh^T (bf16)
                pl.BlockSpec((1, G), lambda t: (0, 0)),      # fused bias
            ],
            out_specs=pl.BlockSpec((rows, H), lambda t: (t, 0)),
            scratch_shapes=[
                pltpu.VMEM((batch, H), jnp.float32),         # h state
                pltpu.VMEM((batch, H), jnp.float32),         # c state
                pltpu.VMEM((rows, G), jnp.float32),          # gate pre-activations
            ],
        ),
        compiler_params=pltpu.CompilerParams(
            # Sequential recurrence: persistent VMEM state -> must be "arbitrary".
            dimension_semantics=("arbitrary",),
            vmem_limit_bytes=_vmem_limit(footprint),
        ),
    )(emb2d, wih_t, whh_t, bias)


# ---------------------------------------------------------------------------
# Full forward (eval mode), matching LM_LSTM_drop.forward.  Returns (B, V, T).
# ---------------------------------------------------------------------------
def lm_lstm_drop_forward(tokens, params):
    B, T = tokens.shape
    # Embedding gather directly in time-major layout (T, B, E), bf16 table.
    emb_tbe = jnp.take(params["emb"], tokens.T, axis=0)          # (T, B, E) bf16
    # emb_drop: identity in eval mode.
    E = emb_tbe.shape[-1]
    V = params["wout_t"].shape[1]
    emb2d = emb_tbe.reshape(T * B, E)

    # (1)+(2) Fused input projection + serial recurrence.
    h2d = lstm_recurrence_fused(emb2d, params["wih_t"], params["whh_t"],
                                params["b"], batch=B)            # (T*B, H) bf16
    # out_drop: identity in eval mode.

    # (3) Output projection over all T*B rows, tiled over M/N.
    logits = matmul_bias(h2d, params["wout_t"], params["bout"])  # (T*B, V) f32

    # Final permute required by the module spec: (B, V, T).
    # TODO(synk): fold this permute into the projection out_spec once T >= 128
    #             (lane-dense stores); for small T the XLA transpose is cheaper.
    return jnp.transpose(logits.reshape(T, B, V), (1, 2, 0))


def init_params(key, emb_size, hidden_size, output_size, pad_index=0):
    ks = jax.random.split(key, 7)
    scale = 0.1
    emb = scale * jax.random.normal(ks[0], (output_size, emb_size), jnp.float32)
    emb = emb.at[pad_index].set(0.0)                   # padding_idx row is zero
    w_ih = scale * jax.random.normal(ks[1], (4 * hidden_size, emb_size), jnp.float32)
    w_hh = scale * jax.random.normal(ks[2], (4 * hidden_size, hidden_size), jnp.float32)
    b_ih = scale * jax.random.normal(ks[3], (4 * hidden_size,), jnp.float32)
    b_hh = scale * jax.random.normal(ks[4], (4 * hidden_size,), jnp.float32)
    w_out = scale * jax.random.normal(ks[5], (output_size, hidden_size), jnp.float32)
    b_out = scale * jax.random.normal(ks[6], (output_size,), jnp.float32)
    return {
        "emb": emb.astype(jnp.bfloat16),               # (V, E) bf16, pad row exactly 0
        "wih_t": w_ih.T.astype(jnp.bfloat16),          # (E, 4H) bf16
        "whh_t": w_hh.T.astype(jnp.bfloat16),          # (H, 4H) bf16
        "b": (b_ih + b_hh)[None, :],                   # (1, 4H) f32 (fused bias)
        "wout_t": w_out.T.astype(jnp.bfloat16),        # (H, V) bf16
        "bout": b_out[None, :],                        # (1, V) f32
    }


if __name__ == "__main__":
    # Lane/sublane-aligned small shapes: H, E, V multiples of 128, B multiple of 8.
    B, T = 8, 16
    emb_size, hidden_size, output_size = 128, 128, 256
    pad_index = 0

    key = jax.random.PRNGKey(0)
    k_params, k_tok = jax.random.split(key)
    params = init_params(k_params, emb_size, hidden_size, output_size, pad_index)
    tokens = jax.random.randint(k_tok, (B, T), 0, output_size, dtype=jnp.int32)

    fwd = jax.jit(lm_lstm_drop_forward)
    out = fwd(tokens, params)                          # (B, V, T)
    out = jax.block_until_ready(out)
    assert out.shape == (B, output_size, T), out.shape
    assert jnp.all(jnp.isfinite(out))
    print("KERNEL_OK")
</pallas_src>

<mosaic_0001>
module attributes {stable_mosaic.version = 11 : i64} {
  func.func @_matmul_bias_kernel(%arg0: i32, %arg1: i32, %arg2: i32, %arg3: memref<128x128xbf16, #tpu.memory_space<vmem>>, %arg4: memref<128x256xbf16, #tpu.memory_space<vmem>>, %arg5: memref<1x256xf32, #tpu.memory_space<vmem>>, %arg6: memref<128x256xf32, #tpu.memory_space<vmem>>, %arg7: memref<128x256xf32, #tpu.memory_space<vmem>>) attributes {dimension_semantics = [#tpu.dimension_semantics<parallel>, #tpu.dimension_semantics<parallel>, #tpu.dimension_semantics<arbitrary>], iteration_bounds = array<i64: 1, 1, 1>, scalar_prefetch = 0 : i64, scratch_operands = 1 : i64, tpu.core_type = #tpu.core_type<tc>, window_params = [{transform_indices = @transform_0, window_bounds = array<i64: 128, 128>}, {transform_indices = @transform_1, window_bounds = array<i64: 128, 256>}, {transform_indices = @transform_2, window_bounds = array<i64: 1, 256>}, {transform_indices = @transform_3, window_bounds = array<i64: 128, 256>}]} {
    %c0_i32 = arith.constant 0 : i32
    %0 = arith.cmpi eq, %arg2, %c0_i32 : i32
    %1 = arith.extui %0 : i1 to i32
    %c0_i32_0 = arith.constant 0 : i32
    %2 = arith.cmpi ne, %1, %c0_i32_0 : i32
    scf.if %2 {
      %cst_10 = arith.constant 0.000000e+00 : f32
      %12 = vector.broadcast %cst_10 : f32 to vector<128x256xf32>
      %c0_11 = arith.constant 0 : index
      %c0_12 = arith.constant 0 : index
      %13 = vector.load %arg7[%c0_11, %c0_12] : memref<128x256xf32, #tpu.memory_space<vmem>>, vector<128x256xf32>
      tpu.vector_store %arg7[%c0_11, %c0_12], %12 {strides = array<i32>} : memref<128x256xf32, #tpu.memory_space<vmem>>, vector<128x256xf32>,
    } else {
    }
    %c0 = arith.constant 0 : index
    %c0_1 = arith.constant 0 : index
    %3 = vector.load %arg7[%c0, %c0_1] : memref<128x256xf32, #tpu.memory_space<vmem>>, vector<128x256xf32>
    %c0_2 = arith.constant 0 : index
    %c0_3 = arith.constant 0 : index
    %4 = vector.load %arg3[%c0_2, %c0_3] : memref<128x128xbf16, #tpu.memory_space<vmem>>, vector<128x128xbf16>
    %c0_4 = arith.constant 0 : index
    %c0_5 = arith.constant 0 : index
    %5 = vector.load %arg4[%c0_4, %c0_5] : memref<128x256xbf16, #tpu.memory_space<vmem>>, vector<128x256xbf16>
    %cst = arith.constant dense<0.000000e+00> : vector<128x256xf32>
    %6 = tpu.matmul %4, %5, %cst {dimension_numbers = #tpu.dot_dimension_numbers<[1], [0], [0], [1], [0, 0, 1, 1], [], []>} : vector<128x128xbf16>, vector<128x256xbf16>, vector<128x256xf32> -> vector<128x256xf32>
    %7 = arith.addf %3, %6 : vector<128x256xf32>
    %c0_6 = arith.constant 0 : index
    %c0_7 = arith.constant 0 : index
    %8 = vector.load %arg7[%c0_6, %c0_7] : memref<128x256xf32, #tpu.memory_space<vmem>>, vector<128x256xf32>
    tpu.vector_store %arg7[%c0_6, %c0_7], %7 {strides = array<i32>} : memref<128x256xf32, #tpu.memory_space<vmem>>, vector<128x256xf32>,
    %c0_i32_8 = arith.constant 0 : i32
    %9 = arith.cmpi eq, %arg2, %c0_i32_8 : i32
    %10 = arith.extui %9 : i1 to i32
    %c0_i32_9 = arith.constant 0 : i32
    %11 = arith.cmpi ne, %10, %c0_i32_9 : i32
    scf.if %11 {
      %c0_10 = arith.constant 0 : index
      %c0_11 = arith.constant 0 : index
      %12 = vector.load %arg7[%c0_10, %c0_11] : memref<128x256xf32, #tpu.memory_space<vmem>>, vector<128x256xf32>
      %c0_12 = arith.constant 0 : index
      %c0_13 = arith.constant 0 : index
      %13 = vector.load %arg5[%c0_12, %c0_13] : memref<1x256xf32, #tpu.memory_space<vmem>>, vector<1x256xf32>
      %14 = vector.broadcast %13 : vector<1x256xf32> to vector<128x256xf32>
      %15 = arith.addf %12, %14 : vector<128x256xf32>
      %c0_14 = arith.constant 0 : index
      %c0_15 = arith.constant 0 : index
      %16 = vector.load %arg6[%c0_14, %c0_15] : memref<128x256xf32, #tpu.memory_space<vmem>>, vector<128x256xf32>
      tpu.vector_store %arg6[%c0_14, %c0_15], %15 {strides = array<i32>} : memref<128x256xf32, #tpu.memory_space<vmem>>, vector<128x256xf32>,
    } else {
    }
    return
  }
  func.func @transform_0(%arg0: i32, %arg1: i32, %arg2: i32) -> (i32, i32) {
    %c0_i32 = arith.constant 0 : i32
    return %arg0, %arg2 : i32, i32
  }
  func.func @transform_1(%arg0: i32, %arg1: i32, %arg2: i32) -> (i32, i32) {
    %c0_i32 = arith.constant 0 : i32
    return %arg2, %arg1 : i32, i32
  }
  func.func @transform_2(%arg0: i32, %arg1: i32, %arg2: i32) -> (i32, i32) {
    %c0_i32 = arith.constant 0 : i32
    %c0_i32_0 = arith.constant 0 : i32
    return %c0_i32, %arg1 : i32, i32
  }
  func.func @transform_3(%arg0: i32, %arg1: i32, %arg2: i32) -> (i32, i32) {
    %c0_i32 = arith.constant 0 : i32
    return %arg0, %arg1 : i32, i32
  }
}

module attributes {stable_mosaic.version = 11 : i64} {
  func.func @lstm_fused_kernel(%arg0: i32, %arg1: memref<128x128xbf16, #tpu.memory_space<vmem>>, %arg2: memref<128x512xbf16, #tpu.memory_space<vmem>>, %arg3: memref<128x512xbf16, #tpu.memory_space<vmem>>, %arg4: memref<1x512xf32, #tpu.memory_space<vmem>>, %arg5: memref<128x128xbf16, #tpu.memory_space<vmem>>, %arg6: memref<8x128xf32, #tpu.memory_space<vmem>>, %arg7: memref<8x128xf32, #tpu.memory_space<vmem>>, %arg8: memref<128x512xf32, #tpu.memory_space<vmem>>) attributes {dimension_semantics = [#tpu.dimension_semantics<arbitrary>], iteration_bounds = array<i64: 1>, scalar_prefetch = 0 : i64, scratch_operands = 3 : i64, tpu.core_type = #tpu.core_type<tc>, window_params = [{transform_indices = @transform_0, window_bounds = array<i64: 128, 128>}, {pipeline_mode = #tpu.pipeline_mode<synchronous>, transform_indices = @transform_1, window_bounds = array<i64: 128, 512>}, {pipeline_mode = #tpu.pipeline_mode<synchronous>, transform_indices = @transform_2, window_bounds = array<i64: 128, 512>}, {pipeline_mode = #tpu.pipeline_mode<synchronous>, transform_indices = @transform_3, window_bounds = array<i64: 1, 512>}, {transform_indices = @transform_4, window_bounds = array<i64: 128, 128>}]} {
    %c0_i32 = arith.constant 0 : i32
    %0 = arith.cmpi eq, %arg0, %c0_i32 : i32
    %1 = arith.extui %0 : i1 to i32
    %c0_i32_0 = arith.constant 0 : i32
    %2 = arith.cmpi ne, %1, %c0_i32_0 : i32
    scf.if %2 {
      %cst_251 = arith.constant 0.000000e+00 : f32
      %635 = vector.broadcast %cst_251 : f32 to vector<8x128xf32>
      %c0_252 = arith.constant 0 : index
      %c0_253 = arith.constant 0 : index
      %636 = vector.load %arg6[%c0_252, %c0_253] : memref<8x128xf32, #tpu.memory_space<vmem>>, vector<8x128xf32>
      tpu.vector_store %arg6[%c0_252, %c0_253], %635 {strides = array<i32>} : memref<8x128xf32, #tpu.memory_space<vmem>>, vector<8x128xf32>,
      %cst_254 = arith.constant 0.000000e+00 : f32
      %637 = vector.broadcast %cst_254 : f32 to vector<8x128xf32>
      %c0_255 = arith.constant 0 : index
      %c0_256 = arith.constant 0 : index
      %638 = vector.load %arg7[%c0_255, %c0_256] : memref<8x128xf32, #tpu.memory_space<vmem>>, vector<8x128xf32>
      tpu.vector_store %arg7[%c0_255, %c0_256], %637 {strides = array<i32>} : memref<8x128xf32, #tpu.memory_space<vmem>>, vector<8x128xf32>,
    } else {
    }
    %c0 = arith.constant 0 : index
    %c0_1 = arith.constant 0 : index
    %3 = vector.load %arg1[%c0, %c0_1] : memref<128x128xbf16, #tpu.memory_space<vmem>>, vector<128x128xbf16>
    %c0_2 = arith.constant 0 : index
    %c0_3 = arith.constant 0 : index
    %4 = vector.load %arg2[%c0_2, %c0_3] : memref<128x512xbf16, #tpu.memory_space<vmem>>, vector<128x512xbf16>
    %cst = arith.constant dense<0.000000e+00> : vector<128x512xf32>
    %5 = tpu.matmul %3, %4, %cst {dimension_numbers = #tpu.dot_dimension_numbers<[1], [0], [0], [1], [0, 0, 1, 1], [], []>} : vector<128x128xbf16>, vector<128x512xbf16>, vector<128x512xf32> -> vector<128x512xf32>
    %c0_4 = arith.constant 0 : index
    %c0_5 = arith.constant 0 : index
    %6 = vector.load %arg4[%c0_4, %c0_5] : memref<1x512xf32, #tpu.memory_space<vmem>>, vector<1x512xf32>
    %7 = vector.broadcast %6 : vector<1x512xf32> to vector<128x512xf32>
    %8 = arith.addf %5, %7 : vector<128x512xf32>
    %c0_6 = arith.constant 0 : index
    %c0_7 = arith.constant 0 : index
    %9 = vector.load %arg8[%c0_6, %c0_7] : memref<128x512xf32, #tpu.memory_space<vmem>>, vector<128x512xf32>
    tpu.vector_store %arg8[%c0_6, %c0_7], %8 {strides = array<i32>} : memref<128x512xf32, #tpu.memory_space<vmem>>, vector<128x512xf32>,
    %c0_8 = arith.constant 0 : index
    %c0_9 = arith.constant 0 : index
    %10 = vector.load %arg3[%c0_8, %c0_9] : memref<128x512xbf16, #tpu.memory_space<vmem>>, vector<128x512xbf16>
    %c0_i32_10 = arith.constant 0 : i32
    %c8_i32 = arith.constant 8 : i32
    %11 = arith.muli %c0_i32_10, %c8_i32 : i32
    %12 = tpu.assume_multiple %11, 8 : i32
    %c0_11 = arith.constant 0 : index
    %c0_12 = arith.constant 0 : index
    %13 = vector.load %arg6[%c0_11, %c0_12] : memref<8x128xf32, #tpu.memory_space<vmem>>, vector<8x128xf32>
    %c0_13 = arith.constant 0 : index
    %c0_14 = arith.constant 0 : index
    %14 = vector.load %arg7[%c0_13, %c0_14] : memref<8x128xf32, #tpu.memory_space<vmem>>, vector<8x128xf32>
    %15 = arith.index_cast %12 : i32 to index
    %c0_15 = arith.constant 0 : index
    %16 = vector.load %arg8[%15, %c0_15] : memref<128x512xf32, #tpu.memory_space<vmem>>, vector<8x512xf32>
    %17 = arith.truncf %13 : vector<8x128xf32> to vector<8x128xbf16>
    %cst_16 = arith.constant dense<0.000000e+00> : vector<8x512xf32>
    %18 = tpu.matmul %17, %10, %cst_16 {dimension_numbers = #tpu.dot_dimension_numbers<[1], [0], [0], [1], [0, 0, 1, 1], [], []>} : vector<8x128xbf16>, vector<128x512xbf16>, vector<8x512xf32> -> vector<8x512xf32>
    %19 = arith.addf %16, %18 : vector<8x512xf32>
    %20 = vector.extract_strided_slice %19 {offsets = [0, 0], sizes = [8, 128], strides = [1, 1]} : vector<8x512xf32> to vector<8x128xf32>
    %21 = arith.negf %20 : vector<8x128xf32>
    %22 = math.exp %21 : vector<8x128xf32>
    %cst_17 = arith.constant 1.000000e+00 : f32
    %23 = vector.broadcast %cst_17 : f32 to vector<8x128xf32>
    %24 = arith.addf %23, %22 : vector<8x128xf32>
    %25 = arith.divf %23, %24 : vector<8x128xf32>
    %26 = vector.extract_strided_slice %19 {offsets = [0, 128], sizes = [8, 128], strides = [1, 1]} : vector<8x512xf32> to vector<8x128xf32>
    %27 = arith.negf %26 : vector<8x128xf32>
    %28 = math.exp %27 : vector<8x128xf32>
    %cst_18 = arith.constant 1.000000e+00 : f32
    %29 = vector.broadcast %cst_18 : f32 to vector<8x128xf32>
    %30 = arith.addf %29, %28 : vector<8x128xf32>
    %31 = arith.divf %29, %30 : vector<8x128xf32>
    %32 = vector.extract_strided_slice %19 {offsets = [0, 256], sizes = [8, 128], strides = [1, 1]} : vector<8x512xf32> to vector<8x128xf32>
    %33 = math.tanh %32 : vector<8x128xf32>
    %34 = vector.extract_strided_slice %19 {offsets = [0, 384], sizes = [8, 128], strides = [1, 1]} : vector<8x512xf32> to vector<8x128xf32>
    %35 = arith.negf %34 : vector<8x128xf32>
    %36 = math.exp %35 : vector<8x128xf32>
    %cst_19 = arith.constant 1.000000e+00 : f32
    %37 = vector.broadcast %cst_19 : f32 to vector<8x128xf32>
    %38 = arith.addf %37, %36 : vector<8x128xf32>
    %39 = arith.divf %37, %38 : vector<8x128xf32>
    %40 = arith.mulf %31, %14 : vector<8x128xf32>
    %41 = arith.mulf %25, %33 : vector<8x128xf32>
    %42 = arith.addf %40, %41 : vector<8x128xf32>
    %43 = math.tanh %42 : vector<8x128xf32>
    %44 = arith.mulf %39, %43 : vector<8x128xf32>
    %c0_20 = arith.constant 0 : index
    %c0_21 = arith.constant 0 : index
    %45 = vector.load %arg6[%c0_20, %c0_21] : memref<8x128xf32, #tpu.memory_space<vmem>>, vector<8x128xf32>
    tpu.vector_store %arg6[%c0_20, %c0_21], %44 {strides = array<i32>} : memref<8x128xf32, #tpu.memory_space<vmem>>, vector<8x128xf32>,
    %c0_22 = arith.constant 0 : index
    %c0_23 = arith.constant 0 : index
    %46 = vector.load %arg7[%c0_22, %c0_23] : memref<8x128xf32, #tpu.memory_space<vmem>>, vector<8x128xf32>
    tpu.vector_store %arg7[%c0_22, %c0_23], %42 {strides = array<i32>} : memref<8x128xf32, #tpu.memory_space<vmem>>, vector<8x128xf32>,
    %47 = arith.truncf %44 : vector<8x128xf32> to vector<8x128xbf16>
    %48 = arith.index_cast %12 : i32 to index
    %c0_24 = arith.constant 0 : index
    %49 = vector.load %arg5[%48, %c0_24] : memref<128x128xbf16, #tpu.memory_space<vmem>>, vector<8x128xbf16>
    tpu.vector_store %arg5[%48, %c0_24], %47 {strides = array<i32>} : memref<128x128xbf16, #tpu.memory_space<vmem>>, vector<8x128xbf16>,
    %c1_i32 = arith.constant 1 : i32
    %c8_i32_25 = arith.constant 8 : i32
    %50 = arith.muli %c1_i32, %c8_i32_25 : i32
    %51 = tpu.assume_multiple %50, 8 : i32
    %c0_26 = arith.constant 0 : index
    %c0_27 = arith.constant 0 : index
    %52 = vector.load %arg6[%c0_26, %c0_27] : memref<8x128xf32, #tpu.memory_space<vmem>>, vector<8x128xf32>
    %c0_28 = arith.constant 0 : index
    %c0_29 = arith.constant 0 : index
    %53 = vector.load %arg7[%c0_28, %c0_29] : memref<8x128xf32, #tpu.memory_space<vmem>>, vector<8x128xf32>
    %54 = arith.index_cast %51 : i32 to index
    %c0_30 = arith.constant 0 : index
    %55 = vector.load %arg8[%54, %c0_30] : memref<128x512xf32, #tpu.memory_space<vmem>>, vector<8x512xf32>
    %56 = arith.truncf %52 : vector<8x128xf32> to vector<8x128xbf16>
    %cst_31 = arith.constant dense<0.000000e+00> : vector<8x512xf32>
    %57 = tpu.matmul %56, %10, %cst_31 {dimension_numbers = #tpu.dot_dimension_numbers<[1], [0], [0], [1], [0, 0, 1, 1], [], []>} : vector<8x128xbf16>, vector<128x512xbf16>, vector<8x512xf32> -> vector<8x512xf32>
    %58 = arith.addf %55, %57 : vector<8x512xf32>
    %59 = vector.extract_strided_slice %58 {offsets = [0, 0], sizes = [8, 128], strides = [1, 1]} : vector<8x512xf32> to vector<8x128xf32>
    %60 = arith.negf %59 : vector<8x128xf32>
    %61 = math.exp %60 : vector<8x128xf32>
    %cst_32 = arith.constant 1.000000e+00 : f32
    %62 = vector.broadcast %cst_32 : f32 to vector<8x128xf32>
    %63 = arith.addf %62, %61 : vector<8x128xf32>
    %64 = arith.divf %62, %63 : vector<8x128xf32>
    %65 = vector.extract_strided_slice %58 {offsets = [0, 128], sizes = [8, 128], strides = [1, 1]} : vector<8x512xf32> to vector<8x128xf32>
    %66 = arith.negf %65 : vector<8x128xf32>
    %67 = math.exp %66 : vector<8x128xf32>
    %cst_33 = arith.constant 1.000000e+00 : f32
    %68 = vector.broadcast %cst_33 : f32 to vector<8x128xf32>
    %69 = arith.addf %68, %67 : vector<8x128xf32>
    %70 = arith.divf %68, %69 : vector<8x128xf32>
    %71 = vector.extract_strided_slice %58 {offsets = [0, 256], sizes = [8, 128], strides = [1, 1]} : vector<8x512xf32> to vector<8x128xf32>
    %72 = math.tanh %71 : vector<8x128xf32>
    %73 = vector.extract_strided_slice %58 {offsets = [0, 384], sizes = [8, 128], strides = [1, 1]} : vector<8x512xf32> to vector<8x128xf32>
    %74 = arith.negf %73 : vector<8x128xf32>
    %75 = math.exp %74 : vector<8x128xf32>
    %cst_34 = arith.constant 1.000000e+00 : f32
    %76 = vector.broadcast %cst_34 : f32 to vector<8x128xf32>
    %77 = arith.addf %76, %75 : vector<8x128xf32>
    %78 = arith.divf %76, %77 : vector<8x128xf32>
    %79 = arith.mulf %70, %53 : vector<8x128xf32>
    %80 = arith.mulf %64, %72 : vector<8x128xf32>
    %81 = arith.addf %79, %80 : vector<8x128xf32>
    %82 = math.tanh %81 : vector<8x128xf32>
    %83 = arith.mulf %78, %82 : vector<8x128xf32>
    %c0_35 = arith.constant 0 : index
    %c0_36 = arith.constant 0 : index
    %84 = vector.load %arg6[%c0_35, %c0_36] : memref<8x128xf32, #tpu.memory_space<vmem>>, vector<8x128xf32>
    tpu.vector_store %arg6[%c0_35, %c0_36], %83 {strides = array<i32>} : memref<8x128xf32, #tpu.memory_space<vmem>>, vector<8x128xf32>,
    %c0_37 = arith.constant 0 : index
    %c0_38 = arith.constant 0 : index
    %85 = vector.load %arg7[%c0_37, %c0_38] : memref<8x128xf32, #tpu.memory_space<vmem>>, vector<8x128xf32>
    tpu.vector_store %arg7[%c0_37, %c0_38], %81 {strides = array<i32>} : memref<8x128xf32, #tpu.memory_space<vmem>>, vector<8x128xf32>,
    %86 = arith.truncf %83 : vector<8x128xf32> to vector<8x128xbf16>
    %87 = arith.index_cast %51 : i32 to index
    %c0_39 = arith.constant 0 : index
    %88 = vector.load %arg5[%87, %c0_39] : memref<128x128xbf16, #tpu.memory_space<vmem>>, vector<8x128xbf16>
    tpu.vector_store %arg5[%87, %c0_39], %86 {strides = array<i32>} : memref<128x128xbf16, #tpu.memory_space<vmem>>, vector<8x128xbf16>,
    %c2_i32 = arith.constant 2 : i32
    %c8_i32_40 = arith.constant 8 : i32
    %89 = arith.muli %c2_i32, %c8_i32_40 : i32
    %90 = tpu.assume_multiple %89, 8 : i32
    %c0_41 = arith.constant 0 : index
    %c0_42 = arith.constant 0 : index
    %91 = vector.load %arg6[%c0_41, %c0_42] : memref<8x128xf32, #tpu.memory_space<vmem>>, vector<8x128xf32>
    %c0_43 = arith.constant 0 : index
    %c0_44 = arith.constant 0 : index
    %92 = vector.load %arg7[%c0_43, %c0_44] : memref<8x128xf32, #tpu.memory_space<vmem>>, vector<8x128xf32>
    %93 = arith.index_cast %90 : i32 to index
    %c0_45 = arith.constant 0 : index
    %94 = vector.load %arg8[%93, %c0_45] : memref<128x512xf32, #tpu.memory_space<vmem>>, vector<8x512xf32>
    %95 = arith.truncf %91 : vector<8x128xf32> to vector<8x128xbf16>
    %cst_46 = arith.constant dense<0.000000e+00> : vector<8x512xf32>
    %96 = tpu.matmul %95, %10, %cst_46 {dimension_numbers = #tpu.dot_dimension_numbers<[1], [0], [0], [1], [0, 0, 1, 1], [], []>} : vector<8x128xbf16>, vector<128x512xbf16>, vector<8x512xf32> -> vector<8x512xf32>
    %97 = arith.addf %94, %96 : vector<8x512xf32>
    %98 = vector.extract_strided_slice %97 {offsets = [0, 0], sizes = [8, 128], strides = [1, 1]} : vector<8x512xf32> to vector<8x128xf32>
    %99 = arith.negf %98 : vector<8x128xf32>
    %100 = math.exp %99 : vector<8x128xf32>
    %cst_47 = arith.constant 1.000000e+00 : f32
    %101 = vector.broadcast %cst_47 : f32 to vector<8x128xf32>
    %102 = arith.addf %101, %100 : vector<8x128xf32>
    %103 = arith.divf %101, %102 : vector<8x128xf32>
    %104 = vector.extract_strided_slice %97 {offsets = [0, 128], sizes = [8, 128], strides = [1, 1]} : vector<8x512xf32> to vector<8x128xf32>
    %105 = arith.negf %104 : vector<8x128xf32>
    %106 = math.exp %105 : vector<8x128xf32>
    %cst_48 = arith.constant 1.000000e+00 : f32
    %107 = vector.broadcast %cst_48 : f32 to vector<8x128xf32>
    %108 = arith.addf %107, %106 : vector<8x128xf32>
    %109 = arith.divf %107, %108 : vector<8x128xf32>
    %110 = vector.extract_strided_slice %97 {offsets = [0, 256], sizes = [8, 128], strides = [1, 1]} : vector<8x512xf32> to vector<8x128xf32>
    %111 = math.tanh %110 : vector<8x128xf32>
    %112 = vector.extract_strided_slice %97 {offsets = [0, 384], sizes = [8, 128], strides = [1, 1]} : vector<8x512xf32> to vector<8x128xf32>
    %113 = arith.negf %112 : vector<8x128xf32>
    %114 = math.exp %113 : vector<8x128xf32>
    %cst_49 = arith.constant 1.000000e+00 : f32
    %115 = vector.broadcast %cst_49 : f32 to vector<8x128xf32>
    %116 = arith.addf %115, %114 : vector<8x128xf32>
    %117 = arith.divf %115, %116 : vector<8x128xf32>
    %118 = arith.mulf %109, %92 : vector<8x128xf32>
    %119 = arith.mulf %103, %111 : vector<8x128xf32>
    %120 = arith.addf %118, %119 : vector<8x128xf32>
    %121 = math.tanh %120 : vector<8x128xf32>
    %122 = arith.mulf %117, %121 : vector<8x128xf32>
    %c0_50 = arith.constant 0 : index
    %c0_51 = arith.constant 0 : index
    %123 = vector.load %arg6[%c0_50, %c0_51] : memref<8x128xf32, #tpu.memory_space<vmem>>, vector<8x128xf32>
    tpu.vector_store %arg6[%c0_50, %c0_51], %122 {strides = array<i32>} : memref<8x128xf32, #tpu.memory_space<vmem>>, vector<8x128xf32>,
    %c0_52 = arith.constant 0 : index
    %c0_53 = arith.constant 0 : index
    %124 = vector.load %arg7[%c0_52, %c0_53] : memref<8x128xf32, #tpu.memory_space<vmem>>, vector<8x128xf32>
    tpu.vector_store %arg7[%c0_52, %c0_53], %120 {strides = array<i32>} : memref<8x128xf32, #tpu.memory_space<vmem>>, vector<8x128xf32>,
    %125 = arith.truncf %122 : vector<8x128xf32> to vector<8x128xbf16>
    %126 = arith.index_cast %90 : i32 to index
    %c0_54 = arith.constant 0 : index
    %127 = vector.load %arg5[%126, %c0_54] : memref<128x128xbf16, #tpu.memory_space<vmem>>, vector<8x128xbf16>
    tpu.vector_store %arg5[%126, %c0_54], %125 {strides = array<i32>} : memref<128x128xbf16, #tpu.memory_space<vmem>>, vector<8x128xbf16>,
    %c3_i32 = arith.constant 3 : i32
    %c8_i32_55 = arith.constant 8 : i32
    %128 = arith.muli %c3_i32, %c8_i32_55 : i32
    %129 = tpu.assume_multiple %128, 8 : i32
    %c0_56 = arith.constant 0 : index
    %c0_57 = arith.constant 0 : index
    %130 = vector.load %arg6[%c0_56, %c0_57] : memref<8x128xf32, #tpu.memory_space<vmem>>, vector<8x128xf32>
    %c0_58 = arith.constant 0 : index
    %c0_59 = arith.constant 0 : index
    %131 = vector.load %arg7[%c0_58, %c0_59] : memref<8x128xf32, #tpu.memory_space<vmem>>, vector<8x128xf32>
    %132 = arith.index_cast %129 : i32 to index
    %c0_60 = arith.constant 0 : index
    %133 = vector.load %arg8[%132, %c0_60] : memref<128x512xf32, #tpu.memory_space<vmem>>, vector<8x512xf32>
    %134 = arith.truncf %130 : vector<8x128xf32> to vector<8x128xbf16>
    %cst_61 = arith.constant dense<0.000000e+00> : vector<8x512xf32>
    %135 = tpu.matmul %134, %10, %cst_61 {dimension_numbers = #tpu.dot_dimension_numbers<[1], [0], [0], [1], [0, 0, 1, 1], [], []>} : vector<8x128xbf16>, vector<128x512xbf16>, vector<8x512xf32> -> vector<8x512xf32>
    %136 = arith.addf %133, %135 : vector<8x512xf32>
    %137 = vector.extract_strided_slice %136 {offsets = [0, 0], sizes = [8, 128], strides = [1, 1]} : vector<8x512xf32> to vector<8x128xf32>
    %138 = arith.negf %137 : vector<8x128xf32>
    %139 = math.exp %138 : vector<8x128xf32>
    %cst_62 = arith.constant 1.000000e+00 : f32
    %140 = vector.broadcast %cst_62 : f32 to vector<8x128xf32>
    %141 = arith.addf %140, %139 : vector<8x128xf32>
    %142 = arith.divf %140, %141 : vector<8x128xf32>
    %143 = vector.extract_strided_slice %136 {offsets = [0, 128], sizes = [8, 128], strides = [1, 1]} : vector<8x512xf32> to vector<8x128xf32>
    %144 = arith.negf %143 : vector<8x128xf32>
    %145 = math.exp %144 : vector<8x128xf32>
    %cst_63 = arith.constant 1.000000e+00 : f32
    %146 = vector.broadcast %cst_63 : f32 to vector<8x128xf32>
    %147 = arith.addf %146, %145 : vector<8x128xf32>
    %148 = arith.divf %146, %147 : vector<8x128xf32>
    %149 = vector.extract_strided_slice %136 {offsets = [0, 256], sizes = [8, 128], strides = [1, 1]} : vector<8x512xf32> to vector<8x128xf32>
    %150 = math.tanh %149 : vector<8x128xf32>
    %151 = vector.extract_strided_slice %136 {offsets = [0, 384], sizes = [8, 128], strides = [1, 1]} : vector<8x512xf32> to vector<8x128xf32>
    %152 = arith.negf %151 : vector<8x128xf32>
    %153 = math.exp %152 : vector<8x128xf32>
    %cst_64 = arith.constant 1.000000e+00 : f32
    %154 = vector.broadcast %cst_64 : f32 to vector<8x128xf32>
    %155 = arith.addf %154, %153 : vector<8x128xf32>
    %156 = arith.divf %154, %155 : vector<8x128xf32>
    %157 = arith.mulf %148, %131 : vector<8x128xf32>
    %158 = arith.mulf %142, %150 : vector<8x128xf32>
    %159 = arith.addf %157, %158 : vector<8x128xf32>
    %160 = math.tanh %159 : vector<8x128xf32>
    %161 = arith.mulf %156, %160 : vector<8x128xf32>
    %c0_65 = arith.constant 0 : index
    %c0_66 = arith.constant 0 : index
    %162 = vector.load %arg6[%c0_65, %c0_66] : memref<8x128xf32, #tpu.memory_space<vmem>>, vector<8x128xf32>
    tpu.vector_store %arg6[%c0_65, %c0_66], %161 {strides = array<i32>} : memref<8x128xf32, #tpu.memory_space<vmem>>, vector<8x128xf32>,
    %c0_67 = arith.constant 0 : index
    %c0_68 = arith.constant 0 : index
    %163 = vector.load %arg7[%c0_67, %c0_68] : memref<8x128xf32, #tpu.memory_space<vmem>>, vector<8x128xf32>
    tpu.vector_store %arg7[%c0_67, %c0_68], %159 {strides = array<i32>} : memref<8x128xf32, #tpu.memory_space<vmem>>, vector<8x128xf32>,
    %164 = arith.truncf %161 : vector<8x128xf32> to vector<8x128xbf16>
    %165 = arith.index_cast %129 : i32 to index
    %c0_69 = arith.constant 0 : index
    %166 = vector.load %arg5[%165, %c0_69] : memref<128x128xbf16, #tpu.memory_space<vmem>>, vector<8x128xbf16>
    tpu.vector_store %arg5[%165, %c0_69], %164 {strides = array<i32>} : memref<128x128xbf16, #tpu.memory_space<vmem>>, vector<8x128xbf16>,
    %c4_i32 = arith.constant 4 : i32
    %c8_i32_70 = arith.constant 8 : i32
    %167 = arith.muli %c4_i32, %c8_i32_70 : i32
    %168 = tpu.assume_multiple %167, 8 : i32
    %c0_71 = arith.constant 0 : index
    %c0_72 = arith.constant 0 : index
    %169 = vector.load %arg6[%c0_71, %c0_72] : memref<8x128xf32, #tpu.memory_space<vmem>>, vector<8x128xf32>
    %c0_73 = arith.constant 0 : index
    %c0_74 = arith.constant 0 : index
    %170 = vector.load %arg7[%c0_73, %c0_74] : memref<8x128xf32, #tpu.memory_space<vmem>>, vector<8x128xf32>
    %171 = arith.index_cast %168 : i32 to index
    %c0_75 = arith.constant 0 : index
    %172 = vector.load %arg8[%171, %c0_75] : memref<128x512xf32, #tpu.memory_space<vmem>>, vector<8x512xf32>
    %173 = arith.truncf %169 : vector<8x128xf32> to vector<8x128xbf16>
    %cst_76 = arith.constant dense<0.000000e+00> : vector<8x512xf32>
    %174 = tpu.matmul %173, %10, %cst_76 {dimension_numbers = #tpu.dot_dimension_numbers<[1], [0], [0], [1], [0, 0, 1, 1], [], []>} : vector<8x128xbf16>, vector<128x512xbf16>, vector<8x512xf32> -> vector<8x512xf32>
    %175 = arith.addf %172, %174 : vector<8x512xf32>
    %176 = vector.extract_strided_slice %175 {offsets = [0, 0], sizes = [8, 128], strides = [1, 1]} : vector<8x512xf32> to vector<8x128xf32>
    %177 = arith.negf %176 : vector<8x128xf32>
    %178 = math.exp %177 : vector<8x128xf32>
    %cst_77 = arith.constant 1.000000e+00 : f32
    %179 = vector.broadcast %cst_77 : f32 to vector<8x128xf32>
    %180 = arith.addf %179, %178 : vector<8x128xf32>
    %181 = arith.divf %179, %180 : vector<8x128xf32>
    %182 = vector.extract_strided_slice %175 {offsets = [0, 128], sizes = [8, 128], strides = [1, 1]} : vector<8x512xf32> to vector<8x128xf32>
    %183 = arith.negf %182 : vector<8x128xf32>
    %184 = math.exp %183 : vector<8x128xf32>
    %cst_78 = arith.constant 1.000000e+00 : f32
    %185 = vector.broadcast %cst_78 : f32 to vector<8x128xf32>
    %186 = arith.addf %185, %184 : vector<8x128xf32>
    %187 = arith.divf %185, %186 : vector<8x128xf32>
    %188 = vector.extract_strided_slice %175 {offsets = [0, 256], sizes = [8, 128], strides = [1, 1]} : vector<8x512xf32> to vector<8x128xf32>
    %189 = math.tanh %188 : vector<8x128xf32>
    %190 = vector.extract_strided_slice %175 {offsets = [0, 384], sizes = [8, 128], strides = [1, 1]} : vector<8x512xf32> to vector<8x128xf32>
    %191 = arith.negf %190 : vector<8x128xf32>
    %192 = math.exp %191 : vector<8x128xf32>
    %cst_79 = arith.constant 1.000000e+00 : f32
    %193 = vector.broadcast %cst_79 : f32 to vector<8x128xf32>
    %194 = arith.addf %193, %192 : vector<8x128xf32>
    %195 = arith.divf %193, %194 : vector<8x128xf32>
    %196 = arith.mulf %187, %170 : vector<8x128xf32>
    %197 = arith.mulf %181, %189 : vector<8x128xf32>
    %198 = arith.addf %196, %197 : vector<8x128xf32>
    %199 = math.tanh %198 : vector<8x128xf32>
    %200 = arith.mulf %195, %199 : vector<8x128xf32>
    %c0_80 = arith.constant 0 : index
    %c0_81 = arith.constant 0 : index
    %201 = vector.load %arg6[%c0_80, %c0_81] : memref<8x128xf32, #tpu.memory_space<vmem>>, vector<8x128xf32>
    tpu.vector_store %arg6[%c0_80, %c0_81], %200 {strides = array<i32>} : memref<8x128xf32, #tpu.memory_space<vmem>>, vector<8x128xf32>,
    %c0_82 = arith.constant 0 : index
    %c0_83 = arith.constant 0 : index
    %202 = vector.load %arg7[%c0_82, %c0_83] : memref<8x128xf32, #tpu.memory_space<vmem>>, vector<8x128xf32>
    tpu.vector_store %arg7[%c0_82, %c0_83], %198 {strides = array<i32>} : memref<8x128xf32, #tpu.memory_space<vmem>>, vector<8x128xf32>,
    %203 = arith.truncf %200 : vector<8x128xf32> to vector<8x128xbf16>
    %204 = arith.index_cast %168 : i32 to index
    %c0_84 = arith.constant 0 : index
    %205 = vector.load %arg5[%204, %c0_84] : memref<128x128xbf16, #tpu.memory_space<vmem>>, vector<8x128xbf16>
    tpu.vector_store %arg5[%204, %c0_84], %203 {strides = array<i32>} : memref<128x128xbf16, #tpu.memory_space<vmem>>, vector<8x128xbf16>,
    %c5_i32 = arith.constant 5 : i32
    %c8_i32_85 = arith.constant 8 : i32
    %206 = arith.muli %c5_i32, %c8_i32_85 : i32
    %207 = tpu.assume_multiple %206, 8 : i32
    %c0_86 = arith.constant 0 : index
    %c0_87 = arith.constant 0 : index
    %208 = vector.load %arg6[%c0_86, %c0_87] : memref<8x128xf32, #tpu.memory_space<vmem>>, vector<8x128xf32>
    %c0_88 = arith.constant 0 : index
    %c0_89 = arith.constant 0 : index
    %209 = vector.load %arg7[%c0_88, %c0_89] : memref<8x128xf32, #tpu.memory_space<vmem>>, vector<8x128xf32>
    %210 = arith.index_cast %207 : i32 to index
    %c0_90 = arith.constant 0 : index
    %211 = vector.load %arg8[%210, %c0_90] : memref<128x512xf32, #tpu.memory_space<vmem>>, vector<8x512xf32>
    %212 = arith.truncf %208 : vector<8x128xf32> to vector<8x128xbf16>
    %cst_91 = arith.constant dense<0.000000e+00> : vector<8x512xf32>
    %213 = tpu.matmul %212, %10, %cst_91 {dimension_numbers = #tpu.dot_dimension_numbers<[1], [0], [0], [1], [0, 0, 1, 1], [], []>} : vector<8x128xbf16>, vector<128x512xbf16>, vector<8x512xf32> -> vector<8x512xf32>
    %214 = arith.addf %211, %213 : vector<8x512xf32>
    %215 = vector.extract_strided_slice %214 {offsets = [0, 0], sizes = [8, 128], strides = [1, 1]} : vector<8x512xf32> to vector<8x128xf32>
    %216 = arith.negf %215 : vector<8x128xf32>
    %217 = math.exp %216 : vector<8x128xf32>
    %cst_92 = arith.constant 1.000000e+00 : f32
    %218 = vector.broadcast %cst_92 : f32 to vector<8x128xf32>
    %219 = arith.addf %218, %217 : vector<8x128xf32>
    %220 = arith.divf %218, %219 : vector<8x128xf32>
    %221 = vector.extract_strided_slice %214 {offsets = [0, 128], sizes = [8, 128], strides = [1, 1]} : vector<8x512xf32> to vector<8x128xf32>
    %222 = arith.negf %221 : vector<8x128xf32>
    %223 = math.exp %222 : vector<8x128xf32>
    %cst_93 = arith.constant 1.000000e+00 : f32
    %224 = vector.broadcast %cst_93 : f32 to vector<8x128xf32>
    %225 = arith.addf %224, %223 : vector<8x128xf32>
    %226 = arith.divf %224, %225 : vector<8x128xf32>
    %227 = vector.extract_strided_slice %214 {offsets = [0, 256], sizes = [8, 128], strides = [1, 1]} : vector<8x512xf32> to vector<8x128xf32>
    %228 = math.tanh %227 : vector<8x128xf32>
    %229 = vector.extract_strided_slice %214 {offsets = [0, 384], sizes = [8, 128], strides = [1, 1]} : vector<8x512xf32> to vector<8x128xf32>
    %230 = arith.negf %229 : vector<8x128xf32>
    %231 = math.exp %230 : vector<8x128xf32>
    %cst_94 = arith.constant 1.000000e+00 : f32
    %232 = vector.broadcast %cst_94 : f32 to vector<8x128xf32>
    %233 = arith.addf %232, %231 : vector<8x128xf32>
    %234 = arith.divf %232, %233 : vector<8x128xf32>
    %235 = arith.mulf %226, %209 : vector<8x128xf32>
    %236 = arith.mulf %220, %228 : vector<8x128xf32>
    %237 = arith.addf %235, %236 : vector<8x128xf32>
    %238 = math.tanh %237 : vector<8x128xf32>
    %239 = arith.mulf %234, %238 : vector<8x128xf32>
    %c0_95 = arith.constant 0 : index
    %c0_96 = arith.constant 0 : index
    %240 = vector.load %arg6[%c0_95, %c0_96] : memref<8x128xf32, #tpu.memory_space<vmem>>, vector<8x128xf32>
    tpu.vector_store %arg6[%c0_95, %c0_96], %239 {strides = array<i32>} : memref<8x128xf32, #tpu.memory_space<vmem>>, vector<8x128xf32>,
    %c0_97 = arith.constant 0 : index
    %c0_98 = arith.constant 0 : index
    %241 = vector.load %arg7[%c0_97, %c0_98] : memref<8x128xf32, #tpu.memory_space<vmem>>, vector<8x128xf32>
    tpu.vector_store %arg7[%c0_97, %c0_98], %237 {strides = array<i32>} : memref<8x128xf32, #tpu.memory_space<vmem>>, vector<8x128xf32>,
    %242 = arith.truncf %239 : vector<8x128xf32> to vector<8x128xbf16>
    %243 = arith.index_cast %207 : i32 to index
    %c0_99 = arith.constant 0 : index
    %244 = vector.load %arg5[%243, %c0_99] : memref<128x128xbf16, #tpu.memory_space<vmem>>, vector<8x128xbf16>
    tpu.vector_store %arg5[%243, %c0_99], %242 {strides = array<i32>} : memref<128x128xbf16, #tpu.memory_space<vmem>>, vector<8x128xbf16>,
    %c6_i32 = arith.constant 6 : i32
    %c8_i32_100 = arith.constant 8 : i32
    %245 = arith.muli %c6_i32, %c8_i32_100 : i32
    %246 = tpu.assume_multiple %245, 8 : i32
    %c0_101 = arith.constant 0 : index
    %c0_102 = arith.constant 0 : index
    %247 = vector.load %arg6[%c0_101, %c0_102] : memref<8x128xf32, #tpu.memory_space<vmem>>, vector<8x128xf32>
    %c0_103 = arith.constant 0 : index
    %c0_104 = arith.constant 0 : index
    %248 = vector.load %arg7[%c0_103, %c0_104] : memref<8x128xf32, #tpu.memory_space<vmem>>, vector<8x128xf32>
    %249 = arith.index_cast %246 : i32 to index
    %c0_105 = arith.constant 0 : index
    %250 = vector.load %arg8[%249, %c0_105] : memref<128x512xf32, #tpu.memory_space<vmem>>, vector<8x512xf32>
    %251 = arith.truncf %247 : vector<8x128xf32> to vector<8x128xbf16>
    %cst_106 = arith.constant dense<0.000000e+00> : vector<8x512xf32>
    %252 = tpu.matmul %251, %10, %cst_106 {dimension_numbers = #tpu.dot_dimension_numbers<[1], [0], [0], [1], [0, 0, 1, 1], [], []>} : vector<8x128xbf16>, vector<128x512xbf16>, vector<8x512xf32> -> vector<8x512xf32>
    %253 = arith.addf %250, %252 : vector<8x512xf32>
    %254 = vector.extract_strided_slice %253 {offsets = [0, 0], sizes = [8, 128], strides = [1, 1]} : vector<8x512xf32> to vector<8x128xf32>
    %255 = arith.negf %254 : vector<8x128xf32>
    %256 = math.exp %255 : vector<8x128xf32>
    %cst_107 = arith.constant 1.000000e+00 : f32
    %257 = vector.broadcast %cst_107 : f32 to vector<8x128xf32>
    %258 = arith.addf %257, %256 : vector<8x128xf32>
    %259 = arith.divf %257, %258 : vector<8x128xf32>
    %260 = vector.extract_strided_slice %253 {offsets = [0, 128], sizes = [8, 128], strides = [1, 1]} : vector<8x512xf32> to vector<8x128xf32>
    %261 = arith.negf %260 : vector<8x128xf32>
    %262 = math.exp %261 : vector<8x128xf32>
    %cst_108 = arith.constant 1.000000e+00 : f32
    %263 = vector.broadcast %cst_108 : f32 to vector<8x128xf32>
    %264 = arith.addf %263, %262 : vector<8x128xf32>
    %265 = arith.divf %263, %264 : vector<8x128xf32>
    %266 = vector.extract_strided_slice %253 {offsets = [0, 256], sizes = [8, 128], strides = [1, 1]} : vector<8x512xf32> to vector<8x128xf32>
    %267 = math.tanh %266 : vector<8x128xf32>
    %268 = vector.extract_strided_slice %253 {offsets = [0, 384], sizes = [8, 128], strides = [1, 1]} : vector<8x512xf32> to vector<8x128xf32>
    %269 = arith.negf %268 : vector<8x128xf32>
    %270 = math.exp %269 : vector<8x128xf32>
    %cst_109 = arith.constant 1.000000e+00 : f32
    %271 = vector.broadcast %cst_109 : f32 to vector<8x128xf32>
    %272 = arith.addf %271, %270 : vector<8x128xf32>
    %273 = arith.divf %271, %272 : vector<8x128xf32>
    %274 = arith.mulf %265, %248 : vector<8x128xf32>
    %275 = arith.mulf %259, %267 : vector<8x128xf32>
    %276 = arith.addf %274, %275 : vector<8x128xf32>
    %277 = math.tanh %276 : vector<8x128xf32>
    %278 = arith.mulf %273, %277 : vector<8x128xf32>
    %c0_110 = arith.constant 0 : index
    %c0_111 = arith.constant 0 : index
    %279 = vector.load %arg6[%c0_110, %c0_111] : memref<8x128xf32, #tpu.memory_space<vmem>>, vector<8x128xf32>
    tpu.vector_store %arg6[%c0_110, %c0_111], %278 {strides = array<i32>} : memref<8x128xf32, #tpu.memory_space<vmem>>, vector<8x128xf32>,
    %c0_112 = arith.constant 0 : index
    %c0_113 = arith.constant 0 : index
    %280 = vector.load %arg7[%c0_112, %c0_113] : memref<8x128xf32, #tpu.memory_space<vmem>>, vector<8x128xf32>
    tpu.vector_store %arg7[%c0_112, %c0_113], %276 {strides = array<i32>} : memref<8x128xf32, #tpu.memory_space<vmem>>, vector<8x128xf32>,
    %281 = arith.truncf %278 : vector<8x128xf32> to vector<8x128xbf16>
    %282 = arith.index_cast %246 : i32 to index
    %c0_114 = arith.constant 0 : index
    %283 = vector.load %arg5[%282, %c0_114] : memref<128x128xbf16, #tpu.memory_space<vmem>>, vector<8x128xbf16>
    tpu.vector_store %arg5[%282, %c0_114], %281 {strides = array<i32>} : memref<128x128xbf16, #tpu.memory_space<vmem>>, vector<8x128xbf16>,
    %c7_i32 = arith.constant 7 : i32
    %c8_i32_115 = arith.constant 8 : i32
    %284 = arith.muli %c7_i32, %c8_i32_115 : i32
    %285 = tpu.assume_multiple %284, 8 : i32
    %c0_116 = arith.constant 0 : index
    %c0_117 = arith.constant 0 : index
    %286 = vector.load %arg6[%c0_116, %c0_117] : memref<8x128xf32, #tpu.memory_space<vmem>>, vector<8x128xf32>
    %c0_118 = arith.constant 0 : index
    %c0_119 = arith.constant 0 : index
    %287 = vector.load %arg7[%c0_118, %c0_119] : memref<8x128xf32, #tpu.memory_space<vmem>>, vector<8x128xf32>
    %288 = arith.index_cast %285 : i32 to index
    %c0_120 = arith.constant 0 : index
    %289 = vector.load %arg8[%288, %c0_120] : memref<128x512xf32, #tpu.memory_space<vmem>>, vector<8x512xf32>
    %290 = arith.truncf %286 : vector<8x128xf32> to vector<8x128xbf16>
    %cst_121 = arith.constant dense<0.000000e+00> : vector<8x512xf32>
    %291 = tpu.matmul %290, %10, %cst_121 {dimension_numbers = #tpu.dot_dimension_numbers<[1], [0], [0], [1], [0, 0, 1, 1], [], []>} : vector<8x128xbf16>, vector<128x512xbf16>, vector<8x512xf32> -> vector<8x512xf32>
    %292 = arith.addf %289, %291 : vector<8x512xf32>
    %293 = vector.extract_strided_slice %292 {offsets = [0, 0], sizes = [8, 128], strides = [1, 1]} : vector<8x512xf32> to vector<8x128xf32>
    %294 = arith.negf %293 : vector<8x128xf32>
    %295 = math.exp %294 : vector<8x128xf32>
    %cst_122 = arith.constant 1.000000e+00 : f32
    %296 = vector.broadcast %cst_122 : f32 to vector<8x128xf32>
    %297 = arith.addf %296, %295 : vector<8x128xf32>
    %298 = arith.divf %296, %297 : vector<8x128xf32>
    %299 = vector.extract_strided_slice %292 {offsets = [0, 128], sizes = [8, 128], strides = [1, 1]} : vector<8x512xf32> to vector<8x128xf32>
    %300 = arith.negf %299 : vector<8x128xf32>
    %301 = math.exp %300 : vector<8x128xf32>
    %cst_123 = arith.constant 1.000000e+00 : f32
    %302 = vector.broadcast %cst_123 : f32 to vector<8x128xf32>
    %303 = arith.addf %302, %301 : vector<8x128xf32>
    %304 = arith.divf %302, %303 : vector<8x128xf32>
    %305 = vector.extract_strided_slice %292 {offsets = [0, 256], sizes = [8, 128], strides = [1, 1]} : vector<8x512xf32> to vector<8x128xf32>
    %306 = math.tanh %305 : vector<8x128xf32>
    %307 = vector.extract_strided_slice %292 {offsets = [0, 384], sizes = [8, 128], strides = [1, 1]} : vector<8x512xf32> to vector<8x128xf32>
    %308 = arith.negf %307 : vector<8x128xf32>
    %309 = math.exp %308 : vector<8x128xf32>
    %cst_124 = arith.constant 1.000000e+00 : f32
    %310 = vector.broadcast %cst_124 : f32 to vector<8x128xf32>
    %311 = arith.addf %310, %309 : vector<8x128xf32>
    %312 = arith.divf %310, %311 : vector<8x128xf32>
    %313 = arith.mulf %304, %287 : vector<8x128xf32>
    %314 = arith.mulf %298, %306 : vector<8x128xf32>
    %315 = arith.addf %313, %314 : vector<8x128xf32>
    %316 = math.tanh %315 : vector<8x128xf32>
    %317 = arith.mulf %312, %316 : vector<8x128xf32>
    %c0_125 = arith.constant 0 : index
    %c0_126 = arith.constant 0 : index
    %318 = vector.load %arg6[%c0_125, %c0_126] : memref<8x128xf32, #tpu.memory_space<vmem>>, vector<8x128xf32>
    tpu.vector_store %arg6[%c0_125, %c0_126], %317 {strides = array<i32>} : memref<8x128xf32, #tpu.memory_space<vmem>>, vector<8x128xf32>,
    %c0_127 = arith.constant 0 : index
    %c0_128 = arith.constant 0 : index
    %319 = vector.load %arg7[%c0_127, %c0_128] : memref<8x128xf32, #tpu.memory_space<vmem>>, vector<8x128xf32>
    tpu.vector_store %arg7[%c0_127, %c0_128], %315 {strides = array<i32>} : memref<8x128xf32, #tpu.memory_space<vmem>>, vector<8x128xf32>,
    %320 = arith.truncf %317 : vector<8x128xf32> to vector<8x128xbf16>
    %321 = arith.index_cast %285 : i32 to index
    %c0_129 = arith.constant 0 : index
    %322 = vector.load %arg5[%321, %c0_129] : memref<128x128xbf16, #tpu.memory_space<vmem>>, vector<8x128xbf16>
    tpu.vector_store %arg5[%321, %c0_129], %320 {strides = array<i32>} : memref<128x128xbf16, #tpu.memory_space<vmem>>, vector<8x128xbf16>,
    %c8_i32_130 = arith.constant 8 : i32
    %c8_i32_131 = arith.constant 8 : i32
    %323 = arith.muli %c8_i32_130, %c8_i32_131 : i32
    %324 = tpu.assume_multiple %323, 8 : i32
    %c0_132 = arith.constant 0 : index
    %c0_133 = arith.constant 0 : index
    %325 = vector.load %arg6[%c0_132, %c0_133] : memref<8x128xf32, #tpu.memory_space<vmem>>, vector<8x128xf32>
    %c0_134 = arith.constant 0 : index
    %c0_135 = arith.constant 0 : index
    %326 = vector.load %arg7[%c0_134, %c0_135] : memref<8x128xf32, #tpu.memory_space<vmem>>, vector<8x128xf32>
    %327 = arith.index_cast %324 : i32 to index
    %c0_136 = arith.constant 0 : index
    %328 = vector.load %arg8[%327, %c0_136] : memref<128x512xf32, #tpu.memory_space<vmem>>, vector<8x512xf32>
    %329 = arith.truncf %325 : vector<8x128xf32> to vector<8x128xbf16>
    %cst_137 = arith.constant dense<0.000000e+00> : vector<8x512xf32>
    %330 = tpu.matmul %329, %10, %cst_137 {dimension_numbers = #tpu.dot_dimension_numbers<[1], [0], [0], [1], [0, 0, 1, 1], [], []>} : vector<8x128xbf16>, vector<128x512xbf16>, vector<8x512xf32> -> vector<8x512xf32>
    %331 = arith.addf %328, %330 : vector<8x512xf32>
    %332 = vector.extract_strided_slice %331 {offsets = [0, 0], sizes = [8, 128], strides = [1, 1]} : vector<8x512xf32> to vector<8x128xf32>
    %333 = arith.negf %332 : vector<8x128xf32>
    %334 = math.exp %333 : vector<8x128xf32>
    %cst_138 = arith.constant 1.000000e+00 : f32
    %335 = vector.broadcast %cst_138 : f32 to vector<8x128xf32>
    %336 = arith.addf %335, %334 : vector<8x128xf32>
    %337 = arith.divf %335, %336 : vector<8x128xf32>
    %338 = vector.extract_strided_slice %331 {offsets = [0, 128], sizes = [8, 128], strides = [1, 1]} : vector<8x512xf32> to vector<8x128xf32>
    %339 = arith.negf %338 : vector<8x128xf32>
    %340 = math.exp %339 : vector<8x128xf32>
    %cst_139 = arith.constant 1.000000e+00 : f32
    %341 = vector.broadcast %cst_139 : f32 to vector<8x128xf32>
    %342 = arith.addf %341, %340 : vector<8x128xf32>
    %343 = arith.divf %341, %342 : vector<8x128xf32>
    %344 = vector.extract_strided_slice %331 {offsets = [0, 256], sizes = [8, 128], strides = [1, 1]} : vector<8x512xf32> to vector<8x128xf32>
    %345 = math.tanh %344 : vector<8x128xf32>
    %346 = vector.extract_strided_slice %331 {offsets = [0, 384], sizes = [8, 128], strides = [1, 1]} : vector<8x512xf32> to vector<8x128xf32>
    %347 = arith.negf %346 : vector<8x128xf32>
    %348 = math.exp %347 : vector<8x128xf32>
    %cst_140 = arith.constant 1.000000e+00 : f32
    %349 = vector.broadcast %cst_140 : f32 to vector<8x128xf32>
    %350 = arith.addf %349, %348 : vector<8x128xf32>
    %351 = arith.divf %349, %350 : vector<8x128xf32>
    %352 = arith.mulf %343, %326 : vector<8x128xf32>
    %353 = arith.mulf %337, %345 : vector<8x128xf32>
    %354 = arith.addf %352, %353 : vector<8x128xf32>
    %355 = math.tanh %354 : vector<8x128xf32>
    %356 = arith.mulf %351, %355 : vector<8x128xf32>
    %c0_141 = arith.constant 0 : index
    %c0_142 = arith.constant 0 : index
    %357 = vector.load %arg6[%c0_141, %c0_142] : memref<8x128xf32, #tpu.memory_space<vmem>>, vector<8x128xf32>
    tpu.vector_store %arg6[%c0_141, %c0_142], %356 {strides = array<i32>} : memref<8x128xf32, #tpu.memory_space<vmem>>, vector<8x128xf32>,
    %c0_143 = arith.constant 0 : index
    %c0_144 = arith.constant 0 : index
    %358 = vector.load %arg7[%c0_143, %c0_144] : memref<8x128xf32, #tpu.memory_space<vmem>>, vector<8x128xf32>
    tpu.vector_store %arg7[%c0_143, %c0_144], %354 {strides = array<i32>} : memref<8x128xf32, #tpu.memory_space<vmem>>, vector<8x128xf32>,
    %359 = arith.truncf %356 : vector<8x128xf32> to vector<8x128xbf16>
    %360 = arith.index_cast %324 : i32 to index
    %c0_145 = arith.constant 0 : index
    %361 = vector.load %arg5[%360, %c0_145] : memref<128x128xbf16, #tpu.memory_space<vmem>>, vector<8x128xbf16>
    tpu.vector_store %arg5[%360, %c0_145], %359 {strides = array<i32>} : memref<128x128xbf16, #tpu.memory_space<vmem>>, vector<8x128xbf16>,
    %c9_i32 = arith.constant 9 : i32
    %c8_i32_146 = arith.constant 8 : i32
    %362 = arith.muli %c9_i32, %c8_i32_146 : i32
    %363 = tpu.assume_multiple %362, 8 : i32
    %c0_147 = arith.constant 0 : index
    %c0_148 = arith.constant 0 : index
    %364 = vector.load %arg6[%c0_147, %c0_148] : memref<8x128xf32, #tpu.memory_space<vmem>>, vector<8x128xf32>
    %c0_149 = arith.constant 0 : index
    %c0_150 = arith.constant 0 : index
    %365 = vector.load %arg7[%c0_149, %c0_150] : memref<8x128xf32, #tpu.memory_space<vmem>>, vector<8x128xf32>
    %366 = arith.index_cast %363 : i32 to index
    %c0_151 = arith.constant 0 : index
    %367 = vector.load %arg8[%366, %c0_151] : memref<128x512xf32, #tpu.memory_space<vmem>>, vector<8x512xf32>
    %368 = arith.truncf %364 : vector<8x128xf32> to vector<8x128xbf16>
    %cst_152 = arith.constant dense<0.000000e+00> : vector<8x512xf32>
    %369 = tpu.matmul %368, %10, %cst_152 {dimension_numbers = #tpu.dot_dimension_numbers<[1], [0], [0], [1], [0, 0, 1, 1], [], []>} : vector<8x128xbf16>, vector<128x512xbf16>, vector<8x512xf32> -> vector<8x512xf32>
    %370 = arith.addf %367, %369 : vector<8x512xf32>
    %371 = vector.extract_strided_slice %370 {offsets = [0, 0], sizes = [8, 128], strides = [1, 1]} : vector<8x512xf32> to vector<8x128xf32>
    %372 = arith.negf %371 : vector<8x128xf32>
    %373 = math.exp %372 : vector<8x128xf32>
    %cst_153 = arith.constant 1.000000e+00 : f32
    %374 = vector.broadcast %cst_153 : f32 to vector<8x128xf32>
    %375 = arith.addf %374, %373 : vector<8x128xf32>
    %376 = arith.divf %374, %375 : vector<8x128xf32>
    %377 = vector.extract_strided_slice %370 {offsets = [0, 128], sizes = [8, 128], strides = [1, 1]} : vector<8x512xf32> to vector<8x128xf32>
    %378 = arith.negf %377 : vector<8x128xf32>
    %379 = math.exp %378 : vector<8x128xf32>
    %cst_154 = arith.constant 1.000000e+00 : f32
    %380 = vector.broadcast %cst_154 : f32 to vector<8x128xf32>
    %381 = arith.addf %380, %379 : vector<8x128xf32>
    %382 = arith.divf %380, %381 : vector<8x128xf32>
    %383 = vector.extract_strided_slice %370 {offsets = [0, 256], sizes = [8, 128], strides = [1, 1]} : vector<8x512xf32> to vector<8x128xf32>
    %384 = math.tanh %383 : vector<8x128xf32>
    %385 = vector.extract_strided_slice %370 {offsets = [0, 384], sizes = [8, 128], strides = [1, 1]} : vector<8x512xf32> to vector<8x128xf32>
    %386 = arith.negf %385 : vector<8x128xf32>
    %387 = math.exp %386 : vector<8x128xf32>
    %cst_155 = arith.constant 1.000000e+00 : f32
    %388 = vector.broadcast %cst_155 : f32 to vector<8x128xf32>
    %389 = arith.addf %388, %387 : vector<8x128xf32>
    %390 = arith.divf %388, %389 : vector<8x128xf32>
    %391 = arith.mulf %382, %365 : vector<8x128xf32>
    %392 = arith.mulf %376, %384 : vector<8x128xf32>
    %393 = arith.addf %391, %392 : vector<8x128xf32>
    %394 = math.tanh %393 : vector<8x128xf32>
    %395 = arith.mulf %390, %394 : vector<8x128xf32>
    %c0_156 = arith.constant 0 : index
    %c0_157 = arith.constant 0 : index
    %396 = vector.load %arg6[%c0_156, %c0_157] : memref<8x128xf32, #tpu.memory_space<vmem>>, vector<8x128xf32>
    tpu.vector_store %arg6[%c0_156, %c0_157], %395 {strides = array<i32>} : memref<8x128xf32, #tpu.memory_space<vmem>>, vector<8x128xf32>,
    %c0_158 = arith.constant 0 : index
    %c0_159 = arith.constant 0 : index
    %397 = vector.load %arg7[%c0_158, %c0_159] : memref<8x128xf32, #tpu.memory_space<vmem>>, vector<8x128xf32>
    tpu.vector_store %arg7[%c0_158, %c0_159], %393 {strides = array<i32>} : memref<8x128xf32, #tpu.memory_space<vmem>>, vector<8x128xf32>,
    %398 = arith.truncf %395 : vector<8x128xf32> to vector<8x128xbf16>
    %399 = arith.index_cast %363 : i32 to index
    %c0_160 = arith.constant 0 : index
    %400 = vector.load %arg5[%399, %c0_160] : memref<128x128xbf16, #tpu.memory_space<vmem>>, vector<8x128xbf16>
    tpu.vector_store %arg5[%399, %c0_160], %398 {strides = array<i32>} : memref<128x128xbf16, #tpu.memory_space<vmem>>, vector<8x128xbf16>,
    %c10_i32 = arith.constant 10 : i32
    %c8_i32_161 = arith.constant 8 : i32
    %401 = arith.muli %c10_i32, %c8_i32_161 : i32
    %402 = tpu.assume_multiple %401, 8 : i32
    %c0_162 = arith.constant 0 : index
    %c0_163 = arith.constant 0 : index
    %403 = vector.load %arg6[%c0_162, %c0_163] : memref<8x128xf32, #tpu.memory_space<vmem>>, vector<8x128xf32>
    %c0_164 = arith.constant 0 : index
    %c0_165 = arith.constant 0 : index
    %404 = vector.load %arg7[%c0_164, %c0_165] : memref<8x128xf32, #tpu.memory_space<vmem>>, vector<8x128xf32>
    %405 = arith.index_cast %402 : i32 to index
    %c0_166 = arith.constant 0 : index
    %406 = vector.load %arg8[%405, %c0_166] : memref<128x512xf32, #tpu.memory_space<vmem>>, vector<8x512xf32>
    %407 = arith.truncf %403 : vector<8x128xf32> to vector<8x128xbf16>
    %cst_167 = arith.constant dense<0.000000e+00> : vector<8x512xf32>
    %408 = tpu.matmul %407, %10, %cst_167 {dimension_numbers = #tpu.dot_dimension_numbers<[1], [0], [0], [1], [0, 0, 1, 1], [], []>} : vector<8x128xbf16>, vector<128x512xbf16>, vector<8x512xf32> -> vector<8x512xf32>
    %409 = arith.addf %406, %408 : vector<8x512xf32>
    %410 = vector.extract_strided_slice %409 {offsets = [0, 0], sizes = [8, 128], strides = [1, 1]} : vector<8x512xf32> to vector<8x128xf32>
    %411 = arith.negf %410 : vector<8x128xf32>
    %412 = math.exp %411 : vector<8x128xf32>
    %cst_168 = arith.constant 1.000000e+00 : f32
    %413 = vector.broadcast %cst_168 : f32 to vector<8x128xf32>
    %414 = arith.addf %413, %412 : vector<8x128xf32>
    %415 = arith.divf %413, %414 : vector<8x128xf32>
    %416 = vector.extract_strided_slice %409 {offsets = [0, 128], sizes = [8, 128], strides = [1, 1]} : vector<8x512xf32> to vector<8x128xf32>
    %417 = arith.negf %416 : vector<8x128xf32>
    %418 = math.exp %417 : vector<8x128xf32>
    %cst_169 = arith.constant 1.000000e+00 : f32
    %419 = vector.broadcast %cst_169 : f32 to vector<8x128xf32>
    %420 = arith.addf %419, %418 : vector<8x128xf32>
    %421 = arith.divf %419, %420 : vector<8x128xf32>
    %422 = vector.extract_strided_slice %409 {offsets = [0, 256], sizes = [8, 128], strides = [1, 1]} : vector<8x512xf32> to vector<8x128xf32>
    %423 = math.tanh %422 : vector<8x128xf32>
    %424 = vector.extract_strided_slice %409 {offsets = [0, 384], sizes = [8, 128], strides = [1, 1]} : vector<8x512xf32> to vector<8x128xf32>
    %425 = arith.negf %424 : vector<8x128xf32>
    %426 = math.exp %425 : vector<8x128xf32>
    %cst_170 = arith.constant 1.000000e+00 : f32
    %427 = vector.broadcast %cst_170 : f32 to vector<8x128xf32>
    %428 = arith.addf %427, %426 : vector<8x128xf32>
    %429 = arith.divf %427, %428 : vector<8x128xf32>
    %430 = arith.mulf %421, %404 : vector<8x128xf32>
    %431 = arith.mulf %415, %423 : vector<8x128xf32>
    %432 = arith.addf %430, %431 : vector<8x128xf32>
    %433 = math.tanh %432 : vector<8x128xf32>
    %434 = arith.mulf %429, %433 : vector<8x128xf32>
    %c0_171 = arith.constant 0 : index
    %c0_172 = arith.constant 0 : index
    %435 = vector.load %arg6[%c0_171, %c0_172] : memref<8x128xf32, #tpu.memory_space<vmem>>, vector<8x128xf32>
    tpu.vector_store %arg6[%c0_171, %c0_172], %434 {strides = array<i32>} : memref<8x128xf32, #tpu.memory_space<vmem>>, vector<8x128xf32>,
    %c0_173 = arith.constant 0 : index
    %c0_174 = arith.constant 0 : index
    %436 = vector.load %arg7[%c0_173, %c0_174] : memref<8x128xf32, #tpu.memory_space<vmem>>, vector<8x128xf32>
    tpu.vector_store %arg7[%c0_173, %c0_174], %432 {strides = array<i32>} : memref<8x128xf32, #tpu.memory_space<vmem>>, vector<8x128xf32>,
    %437 = arith.truncf %434 : vector<8x128xf32> to vector<8x128xbf16>
    %438 = arith.index_cast %402 : i32 to index
    %c0_175 = arith.constant 0 : index
    %439 = vector.load %arg5[%438, %c0_175] : memref<128x128xbf16, #tpu.memory_space<vmem>>, vector<8x128xbf16>
    tpu.vector_store %arg5[%438, %c0_175], %437 {strides = array<i32>} : memref<128x128xbf16, #tpu.memory_space<vmem>>, vector<8x128xbf16>,
    %c11_i32 = arith.constant 11 : i32
    %c8_i32_176 = arith.constant 8 : i32
    %440 = arith.muli %c11_i32, %c8_i32_176 : i32
    %441 = tpu.assume_multiple %440, 8 : i32
    %c0_177 = arith.constant 0 : index
    %c0_178 = arith.constant 0 : index
    %442 = vector.load %arg6[%c0_177, %c0_178] : memref<8x128xf32, #tpu.memory_space<vmem>>, vector<8x128xf32>
    %c0_179 = arith.constant 0 : index
    %c0_180 = arith.constant 0 : index
    %443 = vector.load %arg7[%c0_179, %c0_180] : memref<8x128xf32, #tpu.memory_space<vmem>>, vector<8x128xf32>
    %444 = arith.index_cast %441 : i32 to index
    %c0_181 = arith.constant 0 : index
    %445 = vector.load %arg8[%444, %c0_181] : memref<128x512xf32, #tpu.memory_space<vmem>>, vector<8x512xf32>
    %446 = arith.truncf %442 : vector<8x128xf32> to vector<8x128xbf16>
    %cst_182 = arith.constant dense<0.000000e+00> : vector<8x512xf32>
    %447 = tpu.matmul %446, %10, %cst_182 {dimension_numbers = #tpu.dot_dimension_numbers<[1], [0], [0], [1], [0, 0, 1, 1], [], []>} : vector<8x128xbf16>, vector<128x512xbf16>, vector<8x512xf32> -> vector<8x512xf32>
    %448 = arith.addf %445, %447 : vector<8x512xf32>
    %449 = vector.extract_strided_slice %448 {offsets = [0, 0], sizes = [8, 128], strides = [1, 1]} : vector<8x512xf32> to vector<8x128xf32>
    %450 = arith.negf %449 : vector<8x128xf32>
    %451 = math.exp %450 : vector<8x128xf32>
    %cst_183 = arith.constant 1.000000e+00 : f32
    %452 = vector.broadcast %cst_183 : f32 to vector<8x128xf32>
    %453 = arith.addf %452, %451 : vector<8x128xf32>
    %454 = arith.divf %452, %453 : vector<8x128xf32>
    %455 = vector.extract_strided_slice %448 {offsets = [0, 128], sizes = [8, 128], strides = [1, 1]} : vector<8x512xf32> to vector<8x128xf32>
    %456 = arith.negf %455 : vector<8x128xf32>
    %457 = math.exp %456 : vector<8x128xf32>
    %cst_184 = arith.constant 1.000000e+00 : f32
    %458 = vector.broadcast %cst_184 : f32 to vector<8x128xf32>
    %459 = arith.addf %458, %457 : vector<8x128xf32>
    %460 = arith.divf %458, %459 : vector<8x128xf32>
    %461 = vector.extract_strided_slice %448 {offsets = [0, 256], sizes = [8, 128], strides = [1, 1]} : vector<8x512xf32> to vector<8x128xf32>
    %462 = math.tanh %461 : vector<8x128xf32>
    %463 = vector.extract_strided_slice %448 {offsets = [0, 384], sizes = [8, 128], strides = [1, 1]} : vector<8x512xf32> to vector<8x128xf32>
    %464 = arith.negf %463 : vector<8x128xf32>
    %465 = math.exp %464 : vector<8x128xf32>
    %cst_185 = arith.constant 1.000000e+00 : f32
    %466 = vector.broadcast %cst_185 : f32 to vector<8x128xf32>
    %467 = arith.addf %466, %465 : vector<8x128xf32>
    %468 = arith.divf %466, %467 : vector<8x128xf32>
    %469 = arith.mulf %460, %443 : vector<8x128xf32>
    %470 = arith.mulf %454, %462 : vector<8x128xf32>
    %471 = arith.addf %469, %470 : vector<8x128xf32>
    %472 = math.tanh %471 : vector<8x128xf32>
    %473 = arith.mulf %468, %472 : vector<8x128xf32>
    %c0_186 = arith.constant 0 : index
    %c0_187 = arith.constant 0 : index
    %474 = vector.load %arg6[%c0_186, %c0_187] : memref<8x128xf32, #tpu.memory_space<vmem>>, vector<8x128xf32>
    tpu.vector_store %arg6[%c0_186, %c0_187], %473 {strides = array<i32>} : memref<8x128xf32, #tpu.memory_space<vmem>>, vector<8x128xf32>,
    %c0_188 = arith.constant 0 : index
    %c0_189 = arith.constant 0 : index
    %475 = vector.load %arg7[%c0_188, %c0_189] : memref<8x128xf32, #tpu.memory_space<vmem>>, vector<8x128xf32>
    tpu.vector_store %arg7[%c0_188, %c0_189], %471 {strides = array<i32>} : memref<8x128xf32, #tpu.memory_space<vmem>>, vector<8x128xf32>,
    %476 = arith.truncf %473 : vector<8x128xf32> to vector<8x128xbf16>
    %477 = arith.index_cast %441 : i32 to index
    %c0_190 = arith.constant 0 : index
    %478 = vector.load %arg5[%477, %c0_190] : memref<128x128xbf16, #tpu.memory_space<vmem>>, vector<8x128xbf16>
    tpu.vector_store %arg5[%477, %c0_190], %476 {strides = array<i32>} : memref<128x128xbf16, #tpu.memory_space<vmem>>, vector<8x128xbf16>,
    %c12_i32 = arith.constant 12 : i32
    %c8_i32_191 = arith.constant 8 : i32
    %479 = arith.muli %c12_i32, %c8_i32_191 : i32
    %480 = tpu.assume_multiple %479, 8 : i32
    %c0_192 = arith.constant 0 : index
    %c0_193 = arith.constant 0 : index
    %481 = vector.load %arg6[%c0_192, %c0_193] : memref<8x128xf32, #tpu.memory_space<vmem>>, vector<8x128xf32>
    %c0_194 = arith.constant 0 : index
    %c0_195 = arith.constant 0 : index
    %482 = vector.load %arg7[%c0_194, %c0_195] : memref<8x128xf32, #tpu.memory_space<vmem>>, vector<8x128xf32>
    %483 = arith.index_cast %480 : i32 to index
    %c0_196 = arith.constant 0 : index
    %484 = vector.load %arg8[%483, %c0_196] : memref<128x512xf32, #tpu.memory_space<vmem>>, vector<8x512xf32>
    %485 = arith.truncf %481 : vector<8x128xf32> to vector<8x128xbf16>
    %cst_197 = arith.constant dense<0.000000e+00> : vector<8x512xf32>
    %486 = tpu.matmul %485, %10, %cst_197 {dimension_numbers = #tpu.dot_dimension_numbers<[1], [0], [0], [1], [0, 0, 1, 1], [], []>} : vector<8x128xbf16>, vector<128x512xbf16>, vector<8x512xf32> -> vector<8x512xf32>
    %487 = arith.addf %484, %486 : vector<8x512xf32>
    %488 = vector.extract_strided_slice %487 {offsets = [0, 0], sizes = [8, 128], strides = [1, 1]} : vector<8x512xf32> to vector<8x128xf32>
    %489 = arith.negf %488 : vector<8x128xf32>
    %490 = math.exp %489 : vector<8x128xf32>
    %cst_198 = arith.constant 1.000000e+00 : f32
    %491 = vector.broadcast %cst_198 : f32 to vector<8x128xf32>
    %492 = arith.addf %491, %490 : vector<8x128xf32>
    %493 = arith.divf %491, %492 : vector<8x128xf32>
    %494 = vector.extract_strided_slice %487 {offsets = [0, 128], sizes = [8, 128], strides = [1, 1]} : vector<8x512xf32> to vector<8x128xf32>
    %495 = arith.negf %494 : vector<8x128xf32>
    %496 = math.exp %495 : vector<8x128xf32>
    %cst_199 = arith.constant 1.000000e+00 : f32
    %497 = vector.broadcast %cst_199 : f32 to vector<8x128xf32>
    %498 = arith.addf %497, %496 : vector<8x128xf32>
    %499 = arith.divf %497, %498 : vector<8x128xf32>
    %500 = vector.extract_strided_slice %487 {offsets = [0, 256], sizes = [8, 128], strides = [1, 1]} : vector<8x512xf32> to vector<8x128xf32>
    %501 = math.tanh %500 : vector<8x128xf32>
    %502 = vector.extract_strided_slice %487 {offsets = [0, 384], sizes = [8, 128], strides = [1, 1]} : vector<8x512xf32> to vector<8x128xf32>
    %503 = arith.negf %502 : vector<8x128xf32>
    %504 = math.exp %503 : vector<8x128xf32>
    %cst_200 = arith.constant 1.000000e+00 : f32
    %505 = vector.broadcast %cst_200 : f32 to vector<8x128xf32>
    %506 = arith.addf %505, %504 : vector<8x128xf32>
    %507 = arith.divf %505, %506 : vector<8x128xf32>
    %508 = arith.mulf %499, %482 : vector<8x128xf32>
    %509 = arith.mulf %493, %501 : vector<8x128xf32>
    %510 = arith.addf %508, %509 : vector<8x128xf32>
    %511 = math.tanh %510 : vector<8x128xf32>
    %512 = arith.mulf %507, %511 : vector<8x128xf32>
    %c0_201 = arith.constant 0 : index
    %c0_202 = arith.constant 0 : index
    %513 = vector.load %arg6[%c0_201, %c0_202] : memref<8x128xf32, #tpu.memory_space<vmem>>, vector<8x128xf32>
    tpu.vector_store %arg6[%c0_201, %c0_202], %512 {strides = array<i32>} : memref<8x128xf32, #tpu.memory_space<vmem>>, vector<8x128xf32>,
    %c0_203 = arith.constant 0 : index
    %c0_204 = arith.constant 0 : index
    %514 = vector.load %arg7[%c0_203, %c0_204] : memref<8x128xf32, #tpu.memory_space<vmem>>, vector<8x128xf32>
    tpu.vector_store %arg7[%c0_203, %c0_204], %510 {strides = array<i32>} : memref<8x128xf32, #tpu.memory_space<vmem>>, vector<8x128xf32>,
    %515 = arith.truncf %512 : vector<8x128xf32> to vector<8x128xbf16>
    %516 = arith.index_cast %480 : i32 to index
    %c0_205 = arith.constant 0 : index
    %517 = vector.load %arg5[%516, %c0_205] : memref<128x128xbf16, #tpu.memory_space<vmem>>, vector<8x128xbf16>
    tpu.vector_store %arg5[%516, %c0_205], %515 {strides = array<i32>} : memref<128x128xbf16, #tpu.memory_space<vmem>>, vector<8x128xbf16>,
    %c13_i32 = arith.constant 13 : i32
    %c8_i32_206 = arith.constant 8 : i32
    %518 = arith.muli %c13_i32, %c8_i32_206 : i32
    %519 = tpu.assume_multiple %518, 8 : i32
    %c0_207 = arith.constant 0 : index
    %c0_208 = arith.constant 0 : index
    %520 = vector.load %arg6[%c0_207, %c0_208] : memref<8x128xf32, #tpu.memory_space<vmem>>, vector<8x128xf32>
    %c0_209 = arith.constant 0 : index
    %c0_210 = arith.constant 0 : index
    %521 = vector.load %arg7[%c0_209, %c0_210] : memref<8x128xf32, #tpu.memory_space<vmem>>, vector<8x128xf32>
    %522 = arith.index_cast %519 : i32 to index
    %c0_211 = arith.constant 0 : index
    %523 = vector.load %arg8[%522, %c0_211] : memref<128x512xf32, #tpu.memory_space<vmem>>, vector<8x512xf32>
    %524 = arith.truncf %520 : vector<8x128xf32> to vector<8x128xbf16>
    %cst_212 = arith.constant dense<0.000000e+00> : vector<8x512xf32>
    %525 = tpu.matmul %524, %10, %cst_212 {dimension_numbers = #tpu.dot_dimension_numbers<[1], [0], [0], [1], [0, 0, 1, 1], [], []>} : vector<8x128xbf16>, vector<128x512xbf16>, vector<8x512xf32> -> vector<8x512xf32>
    %526 = arith.addf %523, %525 : vector<8x512xf32>
    %527 = vector.extract_strided_slice %526 {offsets = [0, 0], sizes = [8, 128], strides = [1, 1]} : vector<8x512xf32> to vector<8x128xf32>
    %528 = arith.negf %527 : vector<8x128xf32>
    %529 = math.exp %528 : vector<8x128xf32>
    %cst_213 = arith.constant 1.000000e+00 : f32
    %530 = vector.broadcast %cst_213 : f32 to vector<8x128xf32>
    %531 = arith.addf %530, %529 : vector<8x128xf32>
    %532 = arith.divf %530, %531 : vector<8x128xf32>
    %533 = vector.extract_strided_slice %526 {offsets = [0, 128], sizes = [8, 128], strides = [1, 1]} : vector<8x512xf32> to vector<8x128xf32>
    %534 = arith.negf %533 : vector<8x128xf32>
    %535 = math.exp %534 : vector<8x128xf32>
    %cst_214 = arith.constant 1.000000e+00 : f32
    %536 = vector.broadcast %cst_214 : f32 to vector<8x128xf32>
    %537 = arith.addf %536, %535 : vector<8x128xf32>
    %538 = arith.divf %536, %537 : vector<8x128xf32>
    %539 = vector.extract_strided_slice %526 {offsets = [0, 256], sizes = [8, 128], strides = [1, 1]} : vector<8x512xf32> to vector<8x128xf32>
    %540 = math.tanh %539 : vector<8x128xf32>
    %541 = vector.extract_strided_slice %526 {offsets = [0, 384], sizes = [8, 128], strides = [1, 1]} : vector<8x512xf32> to vector<8x128xf32>
    %542 = arith.negf %541 : vector<8x128xf32>
    %543 = math.exp %542 : vector<8x128xf32>
    %cst_215 = arith.constant 1.000000e+00 : f32
    %544 = vector.broadcast %cst_215 : f32 to vector<8x128xf32>
    %545 = arith.addf %544, %543 : vector<8x128xf32>
    %546 = arith.divf %544, %545 : vector<8x128xf32>
    %547 = arith.mulf %538, %521 : vector<8x128xf32>
    %548 = arith.mulf %532, %540 : vector<8x128xf32>
    %549 = arith.addf %547, %548 : vector<8x128xf32>
    %550 = math.tanh %549 : vector<8x128xf32>
    %551 = arith.mulf %546, %550 : vector<8x128xf32>
    %c0_216 = arith.constant 0 : index
    %c0_217 = arith.constant 0 : index
    %552 = vector.load %arg6[%c0_216, %c0_217] : memref<8x128xf32, #tpu.memory_space<vmem>>, vector<8x128xf32>
    tpu.vector_store %arg6[%c0_216, %c0_217], %551 {strides = array<i32>} : memref<8x128xf32, #tpu.memory_space<vmem>>, vector<8x128xf32>,
    %c0_218 = arith.constant 0 : index
    %c0_219 = arith.constant 0 : index
    %553 = vector.load %arg7[%c0_218, %c0_219] : memref<8x128xf32, #tpu.memory_space<vmem>>, vector<8x128xf32>
    tpu.vector_store %arg7[%c0_218, %c0_219], %549 {strides = array<i32>} : memref<8x128xf32, #tpu.memory_space<vmem>>, vector<8x128xf32>,
    %554 = arith.truncf %551 : vector<8x128xf32> to vector<8x128xbf16>
    %555 = arith.index_cast %519 : i32 to index
    %c0_220 = arith.constant 0 : index
    %556 = vector.load %arg5[%555, %c0_220] : memref<128x128xbf16, #tpu.memory_space<vmem>>, vector<8x128xbf16>
    tpu.vector_store %arg5[%555, %c0_220], %554 {strides = array<i32>} : memref<128x128xbf16, #tpu.memory_space<vmem>>, vector<8x128xbf16>,
    %c14_i32 = arith.constant 14 : i32
    %c8_i32_221 = arith.constant 8 : i32
    %557 = arith.muli %c14_i32, %c8_i32_221 : i32
    %558 = tpu.assume_multiple %557, 8 : i32
    %c0_222 = arith.constant 0 : index
    %c0_223 = arith.constant 0 : index
    %559 = vector.load %arg6[%c0_222, %c0_223] : memref<8x128xf32, #tpu.memory_space<vmem>>, vector<8x128xf32>
    %c0_224 = arith.constant 0 : index
    %c0_225 = arith.constant 0 : index
    %560 = vector.load %arg7[%c0_224, %c0_225] : memref<8x128xf32, #tpu.memory_space<vmem>>, vector<8x128xf32>
    %561 = arith.index_cast %558 : i32 to index
    %c0_226 = arith.constant 0 : index
    %562 = vector.load %arg8[%561, %c0_226] : memref<128x512xf32, #tpu.memory_space<vmem>>, vector<8x512xf32>
    %563 = arith.truncf %559 : vector<8x128xf32> to vector<8x128xbf16>
    %cst_227 = arith.constant dense<0.000000e+00> : vector<8x512xf32>
    %564 = tpu.matmul %563, %10, %cst_227 {dimension_numbers = #tpu.dot_dimension_numbers<[1], [0], [0], [1], [0, 0, 1, 1], [], []>} : vector<8x128xbf16>, vector<128x512xbf16>, vector<8x512xf32> -> vector<8x512xf32>
    %565 = arith.addf %562, %564 : vector<8x512xf32>
    %566 = vector.extract_strided_slice %565 {offsets = [0, 0], sizes = [8, 128], strides = [1, 1]} : vector<8x512xf32> to vector<8x128xf32>
    %567 = arith.negf %566 : vector<8x128xf32>
    %568 = math.exp %567 : vector<8x128xf32>
    %cst_228 = arith.constant 1.000000e+00 : f32
    %569 = vector.broadcast %cst_228 : f32 to vector<8x128xf32>
    %570 = arith.addf %569, %568 : vector<8x128xf32>
    %571 = arith.divf %569, %570 : vector<8x128xf32>
    %572 = vector.extract_strided_slice %565 {offsets = [0, 128], sizes = [8, 128], strides = [1, 1]} : vector<8x512xf32> to vector<8x128xf32>
    %573 = arith.negf %572 : vector<8x128xf32>
    %574 = math.exp %573 : vector<8x128xf32>
    %cst_229 = arith.constant 1.000000e+00 : f32
    %575 = vector.broadcast %cst_229 : f32 to vector<8x128xf32>
    %576 = arith.addf %575, %574 : vector<8x128xf32>
    %577 = arith.divf %575, %576 : vector<8x128xf32>
    %578 = vector.extract_strided_slice %565 {offsets = [0, 256], sizes = [8, 128], strides = [1, 1]} : vector<8x512xf32> to vector<8x128xf32>
    %579 = math.tanh %578 : vector<8x128xf32>
    %580 = vector.extract_strided_slice %565 {offsets = [0, 384], sizes = [8, 128], strides = [1, 1]} : vector<8x512xf32> to vector<8x128xf32>
    %581 = arith.negf %580 : vector<8x128xf32>
    %582 = math.exp %581 : vector<8x128xf32>
    %cst_230 = arith.constant 1.000000e+00 : f32
    %583 = vector.broadcast %cst_230 : f32 to vector<8x128xf32>
    %584 = arith.addf %583, %582 : vector<8x128xf32>
    %585 = arith.divf %583, %584 : vector<8x128xf32>
    %586 = arith.mulf %577, %560 : vector<8x128xf32>
    %587 = arith.mulf %571, %579 : vector<8x128xf32>
    %588 = arith.addf %586, %587 : vector<8x128xf32>
    %589 = math.tanh %588 : vector<8x128xf32>
    %590 = arith.mulf %585, %589 : vector<8x128xf32>
    %c0_231 = arith.constant 0 : index
    %c0_232 = arith.constant 0 : index
    %591 = vector.load %arg6[%c0_231, %c0_232] : memref<8x128xf32, #tpu.memory_space<vmem>>, vector<8x128xf32>
    tpu.vector_store %arg6[%c0_231, %c0_232], %590 {strides = array<i32>} : memref<8x128xf32, #tpu.memory_space<vmem>>, vector<8x128xf32>,
    %c0_233 = arith.constant 0 : index
    %c0_234 = arith.constant 0 : index
    %592 = vector.load %arg7[%c0_233, %c0_234] : memref<8x128xf32, #tpu.memory_space<vmem>>, vector<8x128xf32>
    tpu.vector_store %arg7[%c0_233, %c0_234], %588 {strides = array<i32>} : memref<8x128xf32, #tpu.memory_space<vmem>>, vector<8x128xf32>,
    %593 = arith.truncf %590 : vector<8x128xf32> to vector<8x128xbf16>
    %594 = arith.index_cast %558 : i32 to index
    %c0_235 = arith.constant 0 : index
    %595 = vector.load %arg5[%594, %c0_235] : memref<128x128xbf16, #tpu.memory_space<vmem>>, vector<8x128xbf16>
    tpu.vector_store %arg5[%594, %c0_235], %593 {strides = array<i32>} : memref<128x128xbf16, #tpu.memory_space<vmem>>, vector<8x128xbf16>,
    %c15_i32 = arith.constant 15 : i32
    %c8_i32_236 = arith.constant 8 : i32
    %596 = arith.muli %c15_i32, %c8_i32_236 : i32
    %597 = tpu.assume_multiple %596, 8 : i32
    %c0_237 = arith.constant 0 : index
    %c0_238 = arith.constant 0 : index
    %598 = vector.load %arg6[%c0_237, %c0_238] : memref<8x128xf32, #tpu.memory_space<vmem>>, vector<8x128xf32>
    %c0_239 = arith.constant 0 : index
    %c0_240 = arith.constant 0 : index
    %599 = vector.load %arg7[%c0_239, %c0_240] : memref<8x128xf32, #tpu.memory_space<vmem>>, vector<8x128xf32>
    %600 = arith.index_cast %597 : i32 to index
    %c0_241 = arith.constant 0 : index
    %601 = vector.load %arg8[%600, %c0_241] : memref<128x512xf32, #tpu.memory_space<vmem>>, vector<8x512xf32>
    %602 = arith.truncf %598 : vector<8x128xf32> to vector<8x128xbf16>
    %cst_242 = arith.constant dense<0.000000e+00> : vector<8x512xf32>
    %603 = tpu.matmul %602, %10, %cst_242 {dimension_numbers = #tpu.dot_dimension_numbers<[1], [0], [0], [1], [0, 0, 1, 1], [], []>} : vector<8x128xbf16>, vector<128x512xbf16>, vector<8x512xf32> -> vector<8x512xf32>
    %604 = arith.addf %601, %603 : vector<8x512xf32>
    %605 = vector.extract_strided_slice %604 {offsets = [0, 0], sizes = [8, 128], strides = [1, 1]} : vector<8x512xf32> to vector<8x128xf32>
    %606 = arith.negf %605 : vector<8x128xf32>
    %607 = math.exp %606 : vector<8x128xf32>
    %cst_243 = arith.constant 1.000000e+00 : f32
    %608 = vector.broadcast %cst_243 : f32 to vector<8x128xf32>
    %609 = arith.addf %608, %607 : vector<8x128xf32>
    %610 = arith.divf %608, %609 : vector<8x128xf32>
    %611 = vector.extract_strided_slice %604 {offsets = [0, 128], sizes = [8, 128], strides = [1, 1]} : vector<8x512xf32> to vector<8x128xf32>
    %612 = arith.negf %611 : vector<8x128xf32>
    %613 = math.exp %612 : vector<8x128xf32>
    %cst_244 = arith.constant 1.000000e+00 : f32
    %614 = vector.broadcast %cst_244 : f32 to vector<8x128xf32>
    %615 = arith.addf %614, %613 : vector<8x128xf32>
    %616 = arith.divf %614, %615 : vector<8x128xf32>
    %617 = vector.extract_strided_slice %604 {offsets = [0, 256], sizes = [8, 128], strides = [1, 1]} : vector<8x512xf32> to vector<8x128xf32>
    %618 = math.tanh %617 : vector<8x128xf32>
    %619 = vector.extract_strided_slice %604 {offsets = [0, 384], sizes = [8, 128], strides = [1, 1]} : vector<8x512xf32> to vector<8x128xf32>
    %620 = arith.negf %619 : vector<8x128xf32>
    %621 = math.exp %620 : vector<8x128xf32>
    %cst_245 = arith.constant 1.000000e+00 : f32
    %622 = vector.broadcast %cst_245 : f32 to vector<8x128xf32>
    %623 = arith.addf %622, %621 : vector<8x128xf32>
    %624 = arith.divf %622, %623 : vector<8x128xf32>
    %625 = arith.mulf %616, %599 : vector<8x128xf32>
    %626 = arith.mulf %610, %618 : vector<8x128xf32>
    %627 = arith.addf %625, %626 : vector<8x128xf32>
    %628 = math.tanh %627 : vector<8x128xf32>
    %629 = arith.mulf %624, %628 : vector<8x128xf32>
    %c0_246 = arith.constant 0 : index
    %c0_247 = arith.constant 0 : index
    %630 = vector.load %arg6[%c0_246, %c0_247] : memref<8x128xf32, #tpu.memory_space<vmem>>, vector<8x128xf32>
    tpu.vector_store %arg6[%c0_246, %c0_247], %629 {strides = array<i32>} : memref<8x128xf32, #tpu.memory_space<vmem>>, vector<8x128xf32>,
    %c0_248 = arith.constant 0 : index
    %c0_249 = arith.constant 0 : index
    %631 = vector.load %arg7[%c0_248, %c0_249] : memref<8x128xf32, #tpu.memory_space<vmem>>, vector<8x128xf32>
    tpu.vector_store %arg7[%c0_248, %c0_249], %627 {strides = array<i32>} : memref<8x128xf32, #tpu.memory_space<vmem>>, vector<8x128xf32>,
    %632 = arith.truncf %629 : vector<8x128xf32> to vector<8x128xbf16>
    %633 = arith.index_cast %597 : i32 to index
    %c0_250 = arith.constant 0 : index
    %634 = vector.load %arg5[%633, %c0_250] : memref<128x128xbf16, #tpu.memory_space<vmem>>, vector<8x128xbf16>
    tpu.vector_store %arg5[%633, %c0_250], %632 {strides = array<i32>} : memref<128x128xbf16, #tpu.memory_space<vmem>>, vector<8x128xbf16>,
    %c16_i32 = arith.constant 16 : i32
    return
  }
  func.func @transform_0(%arg0: i32) -> (i32, i32) {
    %c0_i32 = arith.constant 0 : i32
    %c0_i32_0 = arith.constant 0 : i32
    return %arg0, %c0_i32 : i32, i32
  }
  func.func @transform_1(%arg0: i32) -> (i32, i32) {
    %c0_i32 = arith.constant 0 : i32
    %c0_i32_0 = arith.constant 0 : i32
    %c0_i32_1 = arith.constant 0 : i32
    return %c0_i32, %c0_i32_0 : i32, i32
  }
  func.func @transform_2(%arg0: i32) -> (i32, i32) {
    %c0_i32 = arith.constant 0 : i32
    %c0_i32_0 = arith.constant 0 : i32
    %c0_i32_1 = arith.constant 0 : i32
    return %c0_i32, %c0_i32_0 : i32, i32
  }
  func.func @transform_3(%arg0: i32) -> (i32, i32) {
    %c0_i32 = arith.constant 0 : i32
    %c0_i32_0 = arith.constant 0 : i32
    %c0_i32_1 = arith.constant 0 : i32
    return %c0_i32, %c0_i32_0 : i32, i32
  }
  func.func @transform_4(%arg0: i32) -> (i32, i32) {
    %c0_i32 = arith.constant 0 : i32
    %c0_i32_0 = arith.constant 0 : i32
    return %arg0, %c0_i32 : i32, i32
  }
}

</mosaic_0001>

<llo_original>
// kernel: lm_lstm_drop_forward.3
$region0: #{lm_lstm_drop_forward.3}
  #allocation0 [shape = 'u32[]', space=smem, size = 0x4, offset = 0x4, fixed_abs, tag = 'smem constant byte address 0x4 - core index']
  #allocation1 [shape = 'u32[144,128]{1,0:T(1,128)}', space=vmem, size = 0x12000, scoped, tag = 'internal scratch']
  #allocation2 [shape = 'f32[128,256]{1,0:T(8,128)}', space=vmem, size = 0x20000, scoped, tag = 'scratch operand']
  %s0 = inlined_call_operand.vmem [shape: bf16[128,128], index: 0, kind: input, shape index: {}]
  %s1 = inlined_call_operand.vmem [shape: bf16[128,256], index: 1, kind: input, shape index: {}]
  %s2 = inlined_call_operand.vmem [shape: f32[1,256], index: 2, kind: input, shape index: {}]
  %s3 = inlined_call_operand.vmem [shape: f32[128,256], index: 3, kind: output, shape index: {}]
  %s4 = sld [smem:[#allocation0]]
  $region30: #{lm_lstm_drop_forward.3} parent=0
    _
  %s6 = ssub.s32 1, %s4
  %s7 = scalar_select 0, %s6, %s4
  // Predicated region
  $region2: #{lm_lstm_drop_forward.3} parent=0 // pred_check
    _
  $region3: #{lm_lstm_drop_forward.3} parent=0 // pred_check_branch
    %9 = sbr.rel (0) target = $region5
  $region4: #{lm_lstm_drop_forward.3} parent=0 // pred_region
    _
  $region5: #{lm_lstm_drop_forward.3} parent=0 // pred_fallthru
    _
  // Predicated region
  $region6: #{lm_lstm_drop_forward.3} parent=0 // pred_check
    _
  $region7: #{lm_lstm_drop_forward.3} parent=0 // pred_check_branch
    %11 = sbr.rel (0) target = $region9
  $region8: #{lm_lstm_drop_forward.3} parent=0 // pred_region
    _
  $region9: #{lm_lstm_drop_forward.3} parent=0 // pred_fallthru
    _
  // Predicated region
  $region10: #{lm_lstm_drop_forward.3} parent=0 // pred_check
    _
  $region11: #{lm_lstm_drop_forward.3} parent=0 // pred_check_branch
    %13 = sbr.rel (0) target = $region13
  $region12: #{lm_lstm_drop_forward.3} parent=0 // pred_region
    _
  $region13: #{lm_lstm_drop_forward.3} parent=0 // pred_fallthru
    _
  %p15 = scmp.eq.s32.totalorder 0, 0
  // Predicated region
  $region14: #{lm_lstm_drop_forward.3} parent=0 // pred_check
    %p16 = pneg %p15
  $region15: #{lm_lstm_drop_forward.3} parent=0 // pred_check_branch
    %18 = sbr.rel (%p16) target = $region17
  $region16: #{lm_lstm_drop_forward.3} parent=0 // pred_region
    %19 = vst [vmem:[#allocation2] sm:$0xff] 0.0
    %20 = vst [vmem:[#allocation2 + $0x8] sm:$0xff] 0.0
    %21 = vst [vmem:[#allocation2 + $0x10] sm:$0xff] 0.0
    %22 = vst [vmem:[#allocation2 + $0x18] sm:$0xff] 0.0
    %23 = vst [vmem:[#allocation2 + $0x20] sm:$0xff] 0.0
    %24 = vst [vmem:[#allocation2 + $0x28] sm:$0xff] 0.0
    %25 = vst [vmem:[#allocation2 + $0x30] sm:$0xff] 0.0
    %26 = vst [vmem:[#allocation2 + $0x38] sm:$0xff] 0.0
    %27 = vst [vmem:[#allocation2 + $0x40] sm:$0xff] 0.0
    %28 = vst [vmem:[#allocation2 + $0x48] sm:$0xff] 0.0
    %29 = vst [vmem:[#allocation2 + $0x50] sm:$0xff] 0.0
    %30 = vst [vmem:[#allocation2 + $0x58] sm:$0xff] 0.0
    %31 = vst [vmem:[#allocation2 + $0x60] sm:$0xff] 0.0
    %32 = vst [vmem:[#allocation2 + $0x68] sm:$0xff] 0.0
    %33 = vst [vmem:[#allocation2 + $0x70] sm:$0xff] 0.0
    %34 = vst [vmem:[#allocation2 + $0x78] sm:$0xff] 0.0
    %35 = vst [vmem:[#allocation2 + $0x80] sm:$0xff] 0.0
    %36 = vst [vmem:[#allocation2 + $0x88] sm:$0xff] 0.0
    %37 = vst [vmem:[#allocation2 + $0x90] sm:$0xff] 0.0
    %38 = vst [vmem:[#allocation2 + $0x98] sm:$0xff] 0.0
    %39 = vst [vmem:[#allocation2 + $0xa0] sm:$0xff] 0.0
    %40 = vst [vmem:[#allocation2 + $0xa8] sm:$0xff] 0.0
    %41 = vst [vmem:[#allocation2 + $0xb0] sm:$0xff] 0.0
    %42 = vst [vmem:[#allocation2 + $0xb8] sm:$0xff] 0.0
    %43 = vst [vmem:[#allocation2 + $0xc0] sm:$0xff] 0.0
    %44 = vst [vmem:[#allocation2 + $0xc8] sm:$0xff] 0.0
    %45 = vst [vmem:[#allocation2 + $0xd0] sm:$0xff] 0.0
    %46 = vst [vmem:[#allocation2 + $0xd8] sm:$0xff] 0.0
    %47 = vst [vmem:[#allocation2 + $0xe0] sm:$0xff] 0.0
    %48 = vst [vmem:[#allocation2 + $0xe8] sm:$0xff] 0.0
    %49 = vst [vmem:[#allocation2 + $0xf0] sm:$0xff] 0.0
    %50 = vst [vmem:[#allocation2 + $0xf8] sm:$0xff] 0.0
  $region17: #{lm_lstm_drop_forward.3} parent=0 // pred_fallthru
    _
  %v51 = vld [vmem:[#allocation2] sm:$0xff]
  %v52 = vld [vmem:[#allocation2 + $0x8] sm:$0xff]
  %v53 = vld [vmem:[#allocation2 + $0x10] sm:$0xff]
  %v54 = vld [vmem:[#allocation2 + $0x18] sm:$0xff]
  %v55 = vld [vmem:[#allocation2 + $0x20] sm:$0xff]
  %v56 = vld [vmem:[#allocation2 + $0x28] sm:$0xff]
  %v57 = vld [vmem:[#allocation2 + $0x30] sm:$0xff]
  %v58 = vld [vmem:[#allocation2 + $0x38] sm:$0xff]
  %v59 = vld [vmem:[#allocation2 + $0x40] sm:$0xff]
  %v60 = vld [vmem:[#allocation2 + $0x48] sm:$0xff]
  %v61 = vld [vmem:[#allocation2 + $0x50] sm:$0xff]
  %v62 = vld [vmem:[#allocation2 + $0x58] sm:$0xff]
  %v63 = vld [vmem:[#allocation2 + $0x60] sm:$0xff]
  %v64 = vld [vmem:[#allocation2 + $0x68] sm:$0xff]
  %v65 = vld [vmem:[#allocation2 + $0x70] sm:$0xff]
  %v66 = vld [vmem:[#allocation2 + $0x78] sm:$0xff]
  %v67 = vld [vmem:[#allocation2 + $0x80] sm:$0xff]
  %v68 = vld [vmem:[#allocation2 + $0x88] sm:$0xff]
  %v69 = vld [vmem:[#allocation2 + $0x90] sm:$0xff]
  %v70 = vld [vmem:[#allocation2 + $0x98] sm:$0xff]
  %v71 = vld [vmem:[#allocation2 + $0xa0] sm:$0xff]
  %v72 = vld [vmem:[#allocation2 + $0xa8] sm:$0xff]
  %v73 = vld [vmem:[#allocation2 + $0xb0] sm:$0xff]
  %v74 = vld [vmem:[#allocation2 + $0xb8] sm:$0xff]
  %v75 = vld [vmem:[#allocation2 + $0xc0] sm:$0xff]
  %v76 = vld [vmem:[#allocation2 + $0xc8] sm:$0xff]
  %v77 = vld [vmem:[#allocation2 + $0xd0] sm:$0xff]
  %v78 = vld [vmem:[#allocation2 + $0xd8] sm:$0xff]
  %v79 = vld [vmem:[#allocation2 + $0xe0] sm:$0xff]
  %v80 = vld [vmem:[#allocation2 + $0xe8] sm:$0xff]
  %v81 = vld [vmem:[#allocation2 + $0xf0] sm:$0xff]
  %v82 = vld [vmem:[#allocation2 + $0xf8] sm:$0xff]
  %v83 = vld [vmem:[%s0] sm:$0xf]
  %v84 = vld [vmem:[%s0 + $0x4] sm:$0xf]
  %v85 = vld [vmem:[%s0 + $0x8] sm:$0xf]
  %v86 = vld [vmem:[%s0 + $0xc] sm:$0xf]
  %v87 = vld [vmem:[%s0 + $0x10] sm:$0xf]
  %v88 = vld [vmem:[%s0 + $0x14] sm:$0xf]
  %v89 = vld [vmem:[%s0 + $0x18] sm:$0xf]
  %v90 = vld [vmem:[%s0 + $0x1c] sm:$0xf]
  %v91 = vld [vmem:[%s0 + $0x20] sm:$0xf]
  %v92 = vld [vmem:[%s0 + $0x24] sm:$0xf]
  %v93 = vld [vmem:[%s0 + $0x28] sm:$0xf]
  %v94 = vld [vmem:[%s0 + $0x2c] sm:$0xf]
  %v95 = vld [vmem:[%s0 + $0x30] sm:$0xf]
  %v96 = vld [vmem:[%s0 + $0x34] sm:$0xf]
  %v97 = vld [vmem:[%s0 + $0x38] sm:$0xf]
  %v98 = vld [vmem:[%s0 + $0x3c] sm:$0xf]
  %v99 = vld [vmem:[%s1] sm:$0xff]
  %v100 = vld [vmem:[%s1 + $0x8] sm:$0xff]
  %v101 = vld [vmem:[%s1 + $0x10] sm:$0xff]
  %v102 = vld [vmem:[%s1 + $0x18] sm:$0xff]
  %v103 = vld [vmem:[%s1 + $0x20] sm:$0xff]
  %v104 = vld [vmem:[%s1 + $0x28] sm:$0xff]
  %v105 = vld [vmem:[%s1 + $0x30] sm:$0xff]
  %v106 = vld [vmem:[%s1 + $0x38] sm:$0xff]
  %v107 = vld [vmem:[%s1 + $0x40] sm:$0xff]
  %v108 = vld [vmem:[%s1 + $0x48] sm:$0xff]
  %v109 = vld [vmem:[%s1 + $0x50] sm:$0xff]
  %v110 = vld [vmem:[%s1 + $0x58] sm:$0xff]
  %v111 = vld [vmem:[%s1 + $0x60] sm:$0xff]
  %v112 = vld [vmem:[%s1 + $0x68] sm:$0xff]
  %v113 = vld [vmem:[%s1 + $0x70] sm:$0xff]
  %v114 = vld [vmem:[%s1 + $0x78] sm:$0xff]
  %v131 = vunpack.c.l.b16 %v83
  %v132 = vunpack.c.l.b16 %v84
  %v133 = vunpack.c.l.b16 %v85
  %v134 = vunpack.c.l.b16 %v86
  %v135 = vunpack.c.l.b16 %v87
  %v136 = vunpack.c.l.b16 %v88
  %v137 = vunpack.c.l.b16 %v89
  %v138 = vunpack.c.l.b16 %v90
  %v139 = vunpack.c.l.b16 %v91
  %v140 = vunpack.c.l.b16 %v92
  %v141 = vunpack.c.l.b16 %v93
  %v142 = vunpack.c.l.b16 %v94
  %v143 = vunpack.c.l.b16 %v95
  %v144 = vunpack.c.l.b16 %v96
  %v145 = vunpack.c.l.b16 %v97
  %v146 = vunpack.c.l.b16 %v98
  %v147 = vpack.c.b16 %v132, %v131
  %v148 = vpack.c.b16 %v134, %v133
  %v149 = vpack.c.b16 %v136, %v135
  %v150 = vpack.c.b16 %v138, %v137
  %v151 = vpack.c.b16 %v140, %v139
  %v152 = vpack.c.b16 %v142, %v141
  %v153 = vpack.c.b16 %v144, %v143
  %v154 = vpack.c.b16 %v146, %v145
  %v179 = vunpack.c.l.b16 %v99
  %v180 = vunpack.c.h.b16 %v99
  %v181 = vunpack.c.l.b16 %v100
  %v182 = vunpack.c.h.b16 %v100
  %v183 = vunpack.c.l.b16 %v101
  %v184 = vunpack.c.h.b16 %v101
  %v185 = vunpack.c.l.b16 %v102
  %v186 = vunpack.c.h.b16 %v102
  %v187 = vunpack.c.l.b16 %v103
  %v188 = vunpack.c.h.b16 %v103
  %v189 = vunpack.c.l.b16 %v104
  %v190 = vunpack.c.h.b16 %v104
  %v191 = vunpack.c.l.b16 %v105
  %v192 = vunpack.c.h.b16 %v105
  %v193 = vunpack.c.l.b16 %v106
  %v194 = vunpack.c.h.b16 %v106
  %v195 = vunpack.c.l.b16 %v107
  %v196 = vunpack.c.h.b16 %v107
  %v197 = vunpack.c.l.b16 %v108
  %v198 = vunpack.c.h.b16 %v108
  %v199 = vunpack.c.l.b16 %v109
  %v200 = vunpack.c.h.b16 %v109
  %v201 = vunpack.c.l.b16 %v110
  %v202 = vunpack.c.h.b16 %v110
  %v203 = vunpack.c.l.b16 %v111
  %v204 = vunpack.c.h.b16 %v111
  %v205 = vunpack.c.l.b16 %v112
  %v206 = vunpack.c.h.b16 %v112
  %v207 = vunpack.c.l.b16 %v113
  %v208 = vunpack.c.h.b16 %v113
  %v209 = vunpack.c.l.b16 %v114
  %v210 = vunpack.c.h.b16 %v114
  %v211 = vpack.c.b16 %v181, %v179
  %v212 = vpack.c.b16 %v182, %v180
  %v213 = vpack.c.b16 %v185, %v183
  %v214 = vpack.c.b16 %v186, %v184
  %v215 = vpack.c.b16 %v189, %v187
  %v216 = vpack.c.b16 %v190, %v188
  %v217 = vpack.c.b16 %v193, %v191
  %v218 = vpack.c.b16 %v194, %v192
  %v219 = vpack.c.b16 %v197, %v195
  %v220 = vpack.c.b16 %v198, %v196
  %v221 = vpack.c.b16 %v201, %v199
  %v222 = vpack.c.b16 %v202, %v200
  %v223 = vpack.c.b16 %v205, %v203
  %v224 = vpack.c.b16 %v206, %v204
  %v225 = vpack.c.b16 %v209, %v207
  %v226 = vpack.c.b16 %v210, %v208
  %243 = vmatprep.subr.bf16.mxu0 %v226
  %244 = vmatpush1.bf16.msra.mxu0 %v225
  %245 = vmatprep.subr.bf16.mxu0 %v224
  %246 = vmatpush1.bf16.msra.mxu0 %v223
  %247 = vmatprep.subr.bf16.mxu0 %v222
  %248 = vmatpush1.bf16.msra.mxu0 %v221
  %249 = vmatprep.subr.bf16.mxu0 %v220
  %250 = vmatpush1.bf16.msra.mxu0 %v219
  %251 = vmatprep.subr.bf16.mxu0 %v218
  %252 = vmatpush1.bf16.msra.mxu0 %v217
  %253 = vmatprep.subr.bf16.mxu0 %v216
  %254 = vmatpush1.bf16.msra.mxu0 %v215
  %255 = vmatprep.subr.bf16.mxu0 %v214
  %256 = vmatpush1.bf16.msra.mxu0 %v213
  %257 = vmatprep.subr.bf16.mxu0 %v212
  %258 = vmatpush1.bf16.msra.mxu0 %v211
  %259 = vmatprep.subr.bf16.mxu0 0
  %260 = vmatpush2.bf16.msra.mxu0 0
  %261 = vmatprep.subr.bf16.mxu0 0
  %262 = vmatpush2.bf16.msra.mxu0 0
  %263 = vmatprep.subr.bf16.mxu0 0
  %264 = vmatpush2.bf16.msra.mxu0 0
  %265 = vmatprep.subr.bf16.mxu0 0
  %266 = vmatpush2.bf16.msra.mxu0 0
  %267 = vmatprep.subr.bf16.mxu0 0
  %268 = vmatpush2.bf16.msra.mxu0 0
  %269 = vmatprep.subr.bf16.mxu0 0
  %270 = vmatpush2.bf16.msra.mxu0 0
  %271 = vmatprep.subr.bf16.mxu0 0
  %272 = vmatpush2.bf16.msra.mxu0 0
  %273 = vmatprep.subr.bf16.mxu0 0
  %274 = vmatpush2.bf16.msra.mxu0 0
  %275 = vmatprep.mubr.bf16.mxu0 0
  %276 = vmatmul.mubr.bf16.gmra.mxu0 %v147
  %v277 = vpop.f32.mrf.mxu0
  %v278 = vadd.f32 0.0, %v277
  %v279 = vpop.f32.mrf.mxu0
  %v280 = vadd.f32 0.0, %v279
  %v281 = vpop.f32.mrf.mxu0
  %v282 = vadd.f32 0.0, %v281
  %v283 = vpop.f32.mrf.mxu0
  %v284 = vadd.f32 0.0, %v283
  %285 = vmatprep.mubr.bf16.mxu0 0
  %286 = vmatmul.mubr.bf16.gmra.mxu0 %v148
  %v287 = vpop.f32.mrf.mxu0
  %v288 = vadd.f32 0.0, %v287
  %v289 = vpop.f32.mrf.mxu0
  %v290 = vadd.f32 0.0, %v289
  %v291 = vpop.f32.mrf.mxu0
  %v292 = vadd.f32 0.0, %v291
  %v293 = vpop.f32.mrf.mxu0
  %v294 = vadd.f32 0.0, %v293
  %295 = vmatprep.mubr.bf16.mxu0 0
  %296 = vmatmul.mubr.bf16.gmra.mxu0 %v149
  %v297 = vpop.f32.mrf.mxu0
  %v298 = vadd.f32 0.0, %v297
  %v299 = vpop.f32.mrf.mxu0
  %v300 = vadd.f32 0.0, %v299
  %v301 = vpop.f32.mrf.mxu0
  %v302 = vadd.f32 0.0, %v301
  %v303 = vpop.f32.mrf.mxu0
  %v304 = vadd.f32 0.0, %v303
  %305 = vmatprep.mubr.bf16.mxu0 0
  %306 = vmatmul.mubr.bf16.gmra.mxu0 %v150
  %v307 = vpop.f32.mrf.mxu0
  %v308 = vadd.f32 0.0, %v307
  %v309 = vpop.f32.mrf.mxu0
  %v310 = vadd.f32 0.0, %v309
  %v311 = vpop.f32.mrf.mxu0
  %v312 = vadd.f32 0.0, %v311
  %v313 = vpop.f32.mrf.mxu0
  %v314 = vadd.f32 0.0, %v313
  %315 = vmatprep.mubr.bf16.mxu0 0
  %316 = vmatmul.mubr.bf16.gmra.mxu0 %v151
  %v317 = vpop.f32.mrf.mxu0
  %v318 = vadd.f32 0.0, %v317
  %v319 = vpop.f32.mrf.mxu0
  %v320 = vadd.f32 0.0, %v319
  %v321 = vpop.f32.mrf.mxu0
  %v322 = vadd.f32 0.0, %v321
  %v323 = vpop.f32.mrf.mxu0
  %v324 = vadd.f32 0.0, %v323
  %325 = vmatprep.mubr.bf16.mxu0 0
  %326 = vmatmul.mubr.bf16.gmra.mxu0 %v152
  %v327 = vpop.f32.mrf.mxu0
  %v328 = vadd.f32 0.0, %v327
  %v329 = vpop.f32.mrf.mxu0
  %v330 = vadd.f32 0.0, %v329
  %v331 = vpop.f32.mrf.mxu0
  %v332 = vadd.f32 0.0, %v331
  %v333 = vpop.f32.mrf.mxu0
  %v334 = vadd.f32 0.0, %v333
  %335 = vmatprep.mubr.bf16.mxu0 0
  %336 = vmatmul.mubr.bf16.gmra.mxu0 %v153
  %v337 = vpop.f32.mrf.mxu0
  %v338 = vadd.f32 0.0, %v337
  %v339 = vpop.f32.mrf.mxu0
  %v340 = vadd.f32 0.0, %v339
  %v341 = vpop.f32.mrf.mxu0
  %v342 = vadd.f32 0.0, %v341
  %v343 = vpop.f32.mrf.mxu0
  %v344 = vadd.f32 0.0, %v343
  %345 = vmatprep.mubr.bf16.mxu0 0
  %346 = vmatmul.mubr.bf16.gmra.mxu0 %v154
  %v347 = vpop.f32.mrf.mxu0
  %v348 = vadd.f32 0.0, %v347
  %v349 = vpop.f32.mrf.mxu0
  %v350 = vadd.f32 0.0, %v349
  %v351 = vpop.f32.mrf.mxu0
  %v352 = vadd.f32 0.0, %v351
  %v353 = vpop.f32.mrf.mxu0
  %v354 = vadd.f32 0.0, %v353
  %355 = vdwg.mxu0
  %v356 = vadd.f32 %v51, %v278
  %v357 = vadd.f32 %v52, %v280
  %v358 = vadd.f32 %v53, %v282
  %v359 = vadd.f32 %v54, %v284
  %v360 = vadd.f32 %v55, %v288
  %v361 = vadd.f32 %v56, %v290
  %v362 = vadd.f32 %v57, %v292
  %v363 = vadd.f32 %v58, %v294
  %v364 = vadd.f32 %v59, %v298
  %v365 = vadd.f32 %v60, %v300
  %v366 = vadd.f32 %v61, %v302
  %v367 = vadd.f32 %v62, %v304
  %v368 = vadd.f32 %v63, %v308
  %v369 = vadd.f32 %v64, %v310
  %v370 = vadd.f32 %v65, %v312
  %v371 = vadd.f32 %v66, %v314
  %v372 = vadd.f32 %v67, %v318
  %v373 = vadd.f32 %v68, %v320
  %v374 = vadd.f32 %v69, %v322
  %v375 = vadd.f32 %v70, %v324
  %v376 = vadd.f32 %v71, %v328
  %v377 = vadd.f32 %v72, %v330
  %v378 = vadd.f32 %v73, %v332
  %v379 = vadd.f32 %v74, %v334
  %v380 = vadd.f32 %v75, %v338
  %v381 = vadd.f32 %v76, %v340
  %v382 = vadd.f32 %v77, %v342
  %v383 = vadd.f32 %v78, %v344
  %v384 = vadd.f32 %v79, %v348
  %v385 = vadd.f32 %v80, %v350
  %v386 = vadd.f32 %v81, %v352
  %v387 = vadd.f32 %v82, %v354
  %388 = vst [vmem:[#allocation2] sm:$0xff] %v356
  %389 = vst [vmem:[#allocation2 + $0x8] sm:$0xff] %v357
  %390 = vst [vmem:[#allocation2 + $0x10] sm:$0xff] %v358
  %391 = vst [vmem:[#allocation2 + $0x18] sm:$0xff] %v359
  %392 = vst [vmem:[#allocation2 + $0x20] sm:$0xff] %v360
  %393 = vst [vmem:[#allocation2 + $0x28] sm:$0xff] %v361
  %394 = vst [vmem:[#allocation2 + $0x30] sm:$0xff] %v362
  %395 = vst [vmem:[#allocation2 + $0x38] sm:$0xff] %v363
  %396 = vst [vmem:[#allocation2 + $0x40] sm:$0xff] %v364
  %397 = vst [vmem:[#allocation2 + $0x48] sm:$0xff] %v365
  %398 = vst [vmem:[#allocation2 + $0x50] sm:$0xff] %v366
  %399 = vst [vmem:[#allocation2 + $0x58] sm:$0xff] %v367
  %400 = vst [vmem:[#allocation2 + $0x60] sm:$0xff] %v368
  %401 = vst [vmem:[#allocation2 + $0x68] sm:$0xff] %v369
  %402 = vst [vmem:[#allocation2 + $0x70] sm:$0xff] %v370
  %403 = vst [vmem:[#allocation2 + $0x78] sm:$0xff] %v371
  %404 = vst [vmem:[#allocation2 + $0x80] sm:$0xff] %v372
  %405 = vst [vmem:[#allocation2 + $0x88] sm:$0xff] %v373
  %406 = vst [vmem:[#allocation2 + $0x90] sm:$0xff] %v374
  %407 = vst [vmem:[#allocation2 + $0x98] sm:$0xff] %v375
  %408 = vst [vmem:[#allocation2 + $0xa0] sm:$0xff] %v376
  %409 = vst [vmem:[#allocation2 + $0xa8] sm:$0xff] %v377
  %410 = vst [vmem:[#allocation2 + $0xb0] sm:$0xff] %v378
  %411 = vst [vmem:[#allocation2 + $0xb8] sm:$0xff] %v379
  %412 = vst [vmem:[#allocation2 + $0xc0] sm:$0xff] %v380
  %413 = vst [vmem:[#allocation2 + $0xc8] sm:$0xff] %v381
  %414 = vst [vmem:[#allocation2 + $0xd0] sm:$0xff] %v382
  %415 = vst [vmem:[#allocation2 + $0xd8] sm:$0xff] %v383
  %416 = vst [vmem:[#allocation2 + $0xe0] sm:$0xff] %v384
  %417 = vst [vmem:[#allocation2 + $0xe8] sm:$0xff] %v385
  %418 = vst [vmem:[#allocation2 + $0xf0] sm:$0xff] %v386
  %419 = vst [vmem:[#allocation2 + $0xf8] sm:$0xff] %v387
  // Predicated region
  $region18: #{lm_lstm_drop_forward.3} parent=0 // pred_check
    %p420 = pneg %p15
  $region19: #{lm_lstm_drop_forward.3} parent=0 // pred_check_branch
    %422 = sbr.rel (%p420) target = $region21
  $region20: #{lm_lstm_drop_forward.3} parent=0 // pred_region
    %v423 = vld [vmem:[#allocation2] sm:$0xff]
    %v424 = vld [vmem:[#allocation2 + $0x8] sm:$0xff]
    %v425 = vld [vmem:[#allocation2 + $0x10] sm:$0xff]
    %v426 = vld [vmem:[#allocation2 + $0x18] sm:$0xff]
    %v427 = vld [vmem:[#allocation2 + $0x20] sm:$0xff]
    %v428 = vld [vmem:[#allocation2 + $0x28] sm:$0xff]
    %v429 = vld [vmem:[#allocation2 + $0x30] sm:$0xff]
    %v430 = vld [vmem:[#allocation2 + $0x38] sm:$0xff]
    %v431 = vld [vmem:[#allocation2 + $0x40] sm:$0xff]
    %v432 = vld [vmem:[#allocation2 + $0x48] sm:$0xff]
    %v433 = vld [vmem:[#allocation2 + $0x50] sm:$0xff]
    %v434 = vld [vmem:[#allocation2 + $0x58] sm:$0xff]
    %v435 = vld [vmem:[#allocation2 + $0x60] sm:$0xff]
    %v436 = vld [vmem:[#allocation2 + $0x68] sm:$0xff]
    %v437 = vld [vmem:[#allocation2 + $0x70] sm:$0xff]
    %v438 = vld [vmem:[#allocation2 + $0x78] sm:$0xff]
    %v439 = vld [vmem:[#allocation2 + $0x80] sm:$0xff]
    %v440 = vld [vmem:[#allocation2 + $0x88] sm:$0xff]
    %v441 = vld [vmem:[#allocation2 + $0x90] sm:$0xff]
    %v442 = vld [vmem:[#allocation2 + $0x98] sm:$0xff]
    %v443 = vld [vmem:[#allocation2 + $0xa0] sm:$0xff]
    %v444 = vld [vmem:[#allocation2 + $0xa8] sm:$0xff]
    %v445 = vld [vmem:[#allocation2 + $0xb0] sm:$0xff]
    %v446 = vld [vmem:[#allocation2 + $0xb8] sm:$0xff]
    %v447 = vld [vmem:[#allocation2 + $0xc0] sm:$0xff]
    %v448 = vld [vmem:[#allocation2 + $0xc8] sm:$0xff]
    %v449 = vld [vmem:[#allocation2 + $0xd0] sm:$0xff]
    %v450 = vld [vmem:[#allocation2 + $0xd8] sm:$0xff]
    %v451 = vld [vmem:[#allocation2 + $0xe0] sm:$0xff]
    %v452 = vld [vmem:[#allocation2 + $0xe8] sm:$0xff]
    %v453 = vld [vmem:[#allocation2 + $0xf0] sm:$0xff]
    %v454 = vld [vmem:[#allocation2 + $0xf8] sm:$0xff]
    %v455 = vld [vmem:[%s2] sm:$0x3]
    %v457 = vlaneseq
    %v458 = vshrl.u32 %v457, 7
    %v459 = vsub.s32 0, %v458
    %v460 = vrot.slane %v455, %v459
    %v461 = vlaneseq
    %v462 = vshrl.u32 %v461, 7
    %v463 = vsub.s32 1, %v462
    %v464 = vrot.slane %v455, %v463
    %v467 = vadd.f32 %v423, %v460
    %v468 = vadd.f32 %v424, %v464
    %v469 = vadd.f32 %v425, %v460
    %v470 = vadd.f32 %v426, %v464
    %v471 = vadd.f32 %v427, %v460
    %v472 = vadd.f32 %v428, %v464
    %v473 = vadd.f32 %v429, %v460
    %v474 = vadd.f32 %v430, %v464
    %v475 = vadd.f32 %v431, %v460
    %v476 = vadd.f32 %v432, %v464
    %v477 = vadd.f32 %v433, %v460
    %v478 = vadd.f32 %v434, %v464
    %v479 = vadd.f32 %v435, %v460
    %v480 = vadd.f32 %v436, %v464
    %v481 = vadd.f32 %v437, %v460
    %v482 = vadd.f32 %v438, %v464
    %v483 = vadd.f32 %v439, %v460
    %v484 = vadd.f32 %v440, %v464
    %v485 = vadd.f32 %v441, %v460
    %v486 = vadd.f32 %v442, %v464
    %v487 = vadd.f32 %v443, %v460
    %v488 = vadd.f32 %v444, %v464
    %v489 = vadd.f32 %v445, %v460
    %v490 = vadd.f32 %v446, %v464
    %v491 = vadd.f32 %v447, %v460
    %v492 = vadd.f32 %v448, %v464
    %v493 = vadd.f32 %v449, %v460
    %v494 = vadd.f32 %v450, %v464
    %v495 = vadd.f32 %v451, %v460
    %v496 = vadd.f32 %v452, %v464
    %v497 = vadd.f32 %v453, %v460
    %v498 = vadd.f32 %v454, %v464
    %499 = vst [vmem:[%s3] sm:$0xff] %v467
    %500 = vst [vmem:[%s3 + $0x8] sm:$0xff] %v468
    %501 = vst [vmem:[%s3 + $0x10] sm:$0xff] %v469
    %502 = vst [vmem:[%s3 + $0x18] sm:$0xff] %v470
    %503 = vst [vmem:[%s3 + $0x20] sm:$0xff] %v471
    %504 = vst [vmem:[%s3 + $0x28] sm:$0xff] %v472
    %505 = vst [vmem:[%s3 + $0x30] sm:$0xff] %v473
    %506 = vst [vmem:[%s3 + $0x38] sm:$0xff] %v474
    %507 = vst [vmem:[%s3 + $0x40] sm:$0xff] %v475
    %508 = vst [vmem:[%s3 + $0x48] sm:$0xff] %v476
    %509 = vst [vmem:[%s3 + $0x50] sm:$0xff] %v477
    %510 = vst [vmem:[%s3 + $0x58] sm:$0xff] %v478
    %511 = vst [vmem:[%s3 + $0x60] sm:$0xff] %v479
    %512 = vst [vmem:[%s3 + $0x68] sm:$0xff] %v480
    %513 = vst [vmem:[%s3 + $0x70] sm:$0xff] %v481
    %514 = vst [vmem:[%s3 + $0x78] sm:$0xff] %v482
    %515 = vst [vmem:[%s3 + $0x80] sm:$0xff] %v483
    %516 = vst [vmem:[%s3 + $0x88] sm:$0xff] %v484
    %517 = vst [vmem:[%s3 + $0x90] sm:$0xff] %v485
    %518 = vst [vmem:[%s3 + $0x98] sm:$0xff] %v486
    %519 = vst [vmem:[%s3 + $0xa0] sm:$0xff] %v487
    %520 = vst [vmem:[%s3 + $0xa8] sm:$0xff] %v488
    %521 = vst [vmem:[%s3 + $0xb0] sm:$0xff] %v489
    %522 = vst [vmem:[%s3 + $0xb8] sm:$0xff] %v490
    %523 = vst [vmem:[%s3 + $0xc0] sm:$0xff] %v491
    %524 = vst [vmem:[%s3 + $0xc8] sm:$0xff] %v492
    %525 = vst [vmem:[%s3 + $0xd0] sm:$0xff] %v493
    %526 = vst [vmem:[%s3 + $0xd8] sm:$0xff] %v494
    %527 = vst [vmem:[%s3 + $0xe0] sm:$0xff] %v495
    %528 = vst [vmem:[%s3 + $0xe8] sm:$0xff] %v496
    %529 = vst [vmem:[%s3 + $0xf0] sm:$0xff] %v497
    %530 = vst [vmem:[%s3 + $0xf8] sm:$0xff] %v498
  $region21: #{lm_lstm_drop_forward.3} parent=0 // pred_fallthru
    _
  // Predicated region
  $region22: #{lm_lstm_drop_forward.3} parent=0 // pred_check
    _
  $region23: #{lm_lstm_drop_forward.3} parent=0 // pred_check_branch
    %532 = sbr.rel (0) target = $region25
  $region24: #{lm_lstm_drop_forward.3} parent=0 // pred_region
    _
  $region25: #{lm_lstm_drop_forward.3} parent=0 // pred_fallthru
    _
  // Predicated region
  $region26: #{lm_lstm_drop_forward.3} parent=0 // pred_check
    _
  $region27: #{lm_lstm_drop_forward.3} parent=0 // pred_check_branch
    %534 = sbr.rel (0) target = $region29
  $region28: #{lm_lstm_drop_forward.3} parent=0 // pred_region
    _
  $region29: #{lm_lstm_drop_forward.3} parent=0 // pred_fallthru
    _

// kernel: lm_lstm_drop_forward.2
$region0: #{lm_lstm_drop_forward.2}
  #allocation0 [shape = 'u32[]', space=smem, size = 0x4, offset = 0x4, fixed_abs, tag = 'smem constant byte address 0x4 - core index']
  #allocation1 [shape = 'u32[144,128]{1,0:T(1,128)}', space=vmem, size = 0x12000, scoped, tag = 'internal scratch']
  #allocation2 [shape = 'f32[8,128]{1,0:T(8,128)}', space=vmem, size = 0x1000, scoped, tag = 'scratch operand']
  #allocation3 [shape = 'f32[8,128]{1,0:T(8,128)}', space=vmem, size = 0x1000, scoped, tag = 'scratch operand']
  #allocation4 [shape = 'f32[128,512]{1,0:T(8,128)}', space=vmem, size = 0x40000, scoped, tag = 'scratch operand']
  %s0 = inlined_call_operand.vmem [shape: bf16[128,128], index: 0, kind: input, shape index: {}]
  %s1 = inlined_call_operand.vmem [shape: bf16[128,512], index: 1, kind: input, shape index: {}]
  %s2 = inlined_call_operand.vmem [shape: bf16[128,512], index: 2, kind: input, shape index: {}]
  %s3 = inlined_call_operand.vmem [shape: f32[1,512], index: 3, kind: input, shape index: {}]
  %s4 = inlined_call_operand.vmem [shape: bf16[128,128], index: 4, kind: output, shape index: {}]
  %s5 = sld [smem:[#allocation0]]
  $region30: #{lm_lstm_drop_forward.2} parent=0
    _
  %s7 = ssub.s32 1, %s5
  %s8 = scalar_select 0, %s7, %s5
  // Predicated region
  $region2: #{lm_lstm_drop_forward.2} parent=0 // pred_check
    _
  $region3: #{lm_lstm_drop_forward.2} parent=0 // pred_check_branch
    %10 = sbr.rel (0) target = $region5
  $region4: #{lm_lstm_drop_forward.2} parent=0 // pred_region
    _
  $region5: #{lm_lstm_drop_forward.2} parent=0 // pred_fallthru
    _
  // Predicated region
  $region6: #{lm_lstm_drop_forward.2} parent=0 // pred_check
    _
  $region7: #{lm_lstm_drop_forward.2} parent=0 // pred_check_branch
    %12 = sbr.rel (0) target = $region9
  $region8: #{lm_lstm_drop_forward.2} parent=0 // pred_region
    _
  $region9: #{lm_lstm_drop_forward.2} parent=0 // pred_fallthru
    _
  // Predicated region
  $region10: #{lm_lstm_drop_forward.2} parent=0 // pred_check
    _
  $region11: #{lm_lstm_drop_forward.2} parent=0 // pred_check_branch
    %14 = sbr.rel (0) target = $region13
  $region12: #{lm_lstm_drop_forward.2} parent=0 // pred_region
    _
  $region13: #{lm_lstm_drop_forward.2} parent=0 // pred_fallthru
    _
  // Predicated region
  $region14: #{lm_lstm_drop_forward.2} parent=0 // pred_check
    _
  $region15: #{lm_lstm_drop_forward.2} parent=0 // pred_check_branch
    %16 = sbr.rel (0) target = $region17
  $region16: #{lm_lstm_drop_forward.2} parent=0 // pred_region
    _
  $region17: #{lm_lstm_drop_forward.2} parent=0 // pred_fallthru
    _
  %p18 = scmp.eq.s32.totalorder 0, 0
  // Predicated region
  $region18: #{lm_lstm_drop_forward.2} parent=0 // pred_check
    %p19 = pneg %p18
  $region19: #{lm_lstm_drop_forward.2} parent=0 // pred_check_branch
    %21 = sbr.rel (%p19) target = $region21
  $region20: #{lm_lstm_drop_forward.2} parent=0 // pred_region
    %22 = vst [vmem:[#allocation2] sm:$0xff] 0.0
    %23 = vst [vmem:[#allocation3] sm:$0xff] 0.0
  $region21: #{lm_lstm_drop_forward.2} parent=0 // pred_fallthru
    _
  %v24 = vld [vmem:[%s0] sm:$0xf]
  %v25 = vld [vmem:[%s0 + $0x4] sm:$0xf]
  %v26 = vld [vmem:[%s0 + $0x8] sm:$0xf]
  %v27 = vld [vmem:[%s0 + $0xc] sm:$0xf]
  %v28 = vld [vmem:[%s0 + $0x10] sm:$0xf]
  %v29 = vld [vmem:[%s0 + $0x14] sm:$0xf]
  %v30 = vld [vmem:[%s0 + $0x18] sm:$0xf]
  %v31 = vld [vmem:[%s0 + $0x1c] sm:$0xf]
  %v32 = vld [vmem:[%s0 + $0x20] sm:$0xf]
  %v33 = vld [vmem:[%s0 + $0x24] sm:$0xf]
  %v34 = vld [vmem:[%s0 + $0x28] sm:$0xf]
  %v35 = vld [vmem:[%s0 + $0x2c] sm:$0xf]
  %v36 = vld [vmem:[%s0 + $0x30] sm:$0xf]
  %v37 = vld [vmem:[%s0 + $0x34] sm:$0xf]
  %v38 = vld [vmem:[%s0 + $0x38] sm:$0xf]
  %v39 = vld [vmem:[%s0 + $0x3c] sm:$0xf]
  %v40 = vld [vmem:[%s1] sm:$0xff]
  %v41 = vld [vmem:[%s1 + $0x8] sm:$0xff]
  %v42 = vld [vmem:[%s1 + $0x10] sm:$0xff]
  %v43 = vld [vmem:[%s1 + $0x18] sm:$0xff]
  %v44 = vld [vmem:[%s1 + $0x20] sm:$0xff]
  %v45 = vld [vmem:[%s1 + $0x28] sm:$0xff]
  %v46 = vld [vmem:[%s1 + $0x30] sm:$0xff]
  %v47 = vld [vmem:[%s1 + $0x38] sm:$0xff]
  %v48 = vld [vmem:[%s1 + $0x40] sm:$0xff]
  %v49 = vld [vmem:[%s1 + $0x48] sm:$0xff]
  %v50 = vld [vmem:[%s1 + $0x50] sm:$0xff]
  %v51 = vld [vmem:[%s1 + $0x58] sm:$0xff]
  %v52 = vld [vmem:[%s1 + $0x60] sm:$0xff]
  %v53 = vld [vmem:[%s1 + $0x68] sm:$0xff]
  %v54 = vld [vmem:[%s1 + $0x70] sm:$0xff]
  %v55 = vld [vmem:[%s1 + $0x78] sm:$0xff]
  %v56 = vld [vmem:[%s1 + $0x80] sm:$0xff]
  %v57 = vld [vmem:[%s1 + $0x88] sm:$0xff]
  %v58 = vld [vmem:[%s1 + $0x90] sm:$0xff]
  %v59 = vld [vmem:[%s1 + $0x98] sm:$0xff]
  %v60 = vld [vmem:[%s1 + $0xa0] sm:$0xff]
  %v61 = vld [vmem:[%s1 + $0xa8] sm:$0xff]
  %v62 = vld [vmem:[%s1 + $0xb0] sm:$0xff]
  %v63 = vld [vmem:[%s1 + $0xb8] sm:$0xff]
  %v64 = vld [vmem:[%s1 + $0xc0] sm:$0xff]
  %v65 = vld [vmem:[%s1 + $0xc8] sm:$0xff]
  %v66 = vld [vmem:[%s1 + $0xd0] sm:$0xff]
  %v67 = vld [vmem:[%s1 + $0xd8] sm:$0xff]
  %v68 = vld [vmem:[%s1 + $0xe0] sm:$0xff]
  %v69 = vld [vmem:[%s1 + $0xe8] sm:$0xff]
  %v70 = vld [vmem:[%s1 + $0xf0] sm:$0xff]
  %v71 = vld [vmem:[%s1 + $0xf8] sm:$0xff]
  %v72 = vld [vmem:[%s3] sm:$0xf]
  %v74 = vlaneseq
  %v75 = vshrl.u32 %v74, 7
  %v76 = vsub.s32 0, %v75
  %v77 = vrot.slane %v72, %v76
  %v78 = vlaneseq
  %v79 = vshrl.u32 %v78, 7
  %v80 = vsub.s32 1, %v79
  %v81 = vrot.slane %v72, %v80
  %v82 = vlaneseq
  %v83 = vshrl.u32 %v82, 7
  %v84 = vsub.s32 2, %v83
  %v85 = vrot.slane %v72, %v84
  %v86 = vlaneseq
  %v87 = vshrl.u32 %v86, 7
  %v88 = vsub.s32 3, %v87
  %v89 = vrot.slane %v72, %v88
  %v110 = vunpack.c.l.b16 %v24
  %v111 = vunpack.c.l.b16 %v25
  %v112 = vunpack.c.l.b16 %v26
  %v113 = vunpack.c.l.b16 %v27
  %v114 = vunpack.c.l.b16 %v28
  %v115 = vunpack.c.l.b16 %v29
  %v116 = vunpack.c.l.b16 %v30
  %v117 = vunpack.c.l.b16 %v31
  %v118 = vunpack.c.l.b16 %v32
  %v119 = vunpack.c.l.b16 %v33
  %v120 = vunpack.c.l.b16 %v34
  %v121 = vunpack.c.l.b16 %v35
  %v122 = vunpack.c.l.b16 %v36
  %v123 = vunpack.c.l.b16 %v37
  %v124 = vunpack.c.l.b16 %v38
  %v125 = vunpack.c.l.b16 %v39
  %v126 = vpack.c.b16 %v111, %v110
  %v127 = vpack.c.b16 %v113, %v112
  %v128 = vpack.c.b16 %v115, %v114
  %v129 = vpack.c.b16 %v117, %v116
  %v130 = vpack.c.b16 %v119, %v118
  %v131 = vpack.c.b16 %v121, %v120
  %v132 = vpack.c.b16 %v123, %v122
  %v133 = vpack.c.b16 %v125, %v124
  %v174 = vunpack.c.l.b16 %v40
  %v175 = vunpack.c.h.b16 %v40
  %v176 = vunpack.c.l.b16 %v41
  %v177 = vunpack.c.h.b16 %v41
  %v178 = vunpack.c.l.b16 %v42
  %v179 = vunpack.c.h.b16 %v42
  %v180 = vunpack.c.l.b16 %v43
  %v181 = vunpack.c.h.b16 %v43
  %v182 = vunpack.c.l.b16 %v44
  %v183 = vunpack.c.h.b16 %v44
  %v184 = vunpack.c.l.b16 %v45
  %v185 = vunpack.c.h.b16 %v45
  %v186 = vunpack.c.l.b16 %v46
  %v187 = vunpack.c.h.b16 %v46
  %v188 = vunpack.c.l.b16 %v47
  %v189 = vunpack.c.h.b16 %v47
  %v190 = vunpack.c.l.b16 %v48
  %v191 = vunpack.c.h.b16 %v48
  %v192 = vunpack.c.l.b16 %v49
  %v193 = vunpack.c.h.b16 %v49
  %v194 = vunpack.c.l.b16 %v50
  %v195 = vunpack.c.h.b16 %v50
  %v196 = vunpack.c.l.b16 %v51
  %v197 = vunpack.c.h.b16 %v51
  %v198 = vunpack.c.l.b16 %v52
  %v199 = vunpack.c.h.b16 %v52
  %v200 = vunpack.c.l.b16 %v53
  %v201 = vunpack.c.h.b16 %v53
  %v202 = vunpack.c.l.b16 %v54
  %v203 = vunpack.c.h.b16 %v54
  %v204 = vunpack.c.l.b16 %v55
  %v205 = vunpack.c.h.b16 %v55
  %v206 = vunpack.c.l.b16 %v56
  %v207 = vunpack.c.h.b16 %v56
  %v208 = vunpack.c.l.b16 %v57
  %v209 = vunpack.c.h.b16 %v57
  %v210 = vunpack.c.l.b16 %v58
  %v211 = vunpack.c.h.b16 %v58
  %v212 = vunpack.c.l.b16 %v59
  %v213 = vunpack.c.h.b16 %v59
  %v214 = vunpack.c.l.b16 %v60
  %v215 = vunpack.c.h.b16 %v60
  %v216 = vunpack.c.l.b16 %v61
  %v217 = vunpack.c.h.b16 %v61
  %v218 = vunpack.c.l.b16 %v62
  %v219 = vunpack.c.h.b16 %v62
  %v220 = vunpack.c.l.b16 %v63
  %v221 = vunpack.c.h.b16 %v63
  %v222 = vunpack.c.l.b16 %v64
  %v223 = vunpack.c.h.b16 %v64
  %v224 = vunpack.c.l.b16 %v65
  %v225 = vunpack.c.h.b16 %v65
  %v226 = vunpack.c.l.b16 %v66
  %v227 = vunpack.c.h.b16 %v66
  %v228 = vunpack.c.l.b16 %v67
  %v229 = vunpack.c.h.b16 %v67
  %v230 = vunpack.c.l.b16 %v68
  %v231 = vunpack.c.h.b16 %v68
  %v232 = vunpack.c.l.b16 %v69
  %v233 = vunpack.c.h.b16 %v69
  %v234 = vunpack.c.l.b16 %v70
  %v235 = vunpack.c.h.b16 %v70
  %v236 = vunpack.c.l.b16 %v71
  %v237 = vunpack.c.h.b16 %v71
  %v238 = vpack.c.b16 %v178, %v174
  %v239 = vpack.c.b16 %v179, %v175
  %v240 = vpack.c.b16 %v180, %v176
  %v241 = vpack.c.b16 %v181, %v177
  %v242 = vpack.c.b16 %v186, %v182
  %v243 = vpack.c.b16 %v187, %v183
  %v244 = vpack.c.b16 %v188, %v184
  %v245 = vpack.c.b16 %v189, %v185
  %v246 = vpack.c.b16 %v194, %v190
  %v247 = vpack.c.b16 %v195, %v191
  %v248 = vpack.c.b16 %v196, %v192
  %v249 = vpack.c.b16 %v197, %v193
  %v250 = vpack.c.b16 %v202, %v198
  %v251 = vpack.c.b16 %v203, %v199
  %v252 = vpack.c.b16 %v204, %v200
  %v253 = vpack.c.b16 %v205, %v201
  %v254 = vpack.c.b16 %v210, %v206
  %v255 = vpack.c.b16 %v211, %v207
  %v256 = vpack.c.b16 %v212, %v208
  %v257 = vpack.c.b16 %v213, %v209
  %v258 = vpack.c.b16 %v218, %v214
  %v259 = vpack.c.b16 %v219, %v215
  %v260 = vpack.c.b16 %v220, %v216
  %v261 = vpack.c.b16 %v221, %v217
  %v262 = vpack.c.b16 %v226, %v222
  %v263 = vpack.c.b16 %v227, %v223
  %v264 = vpack.c.b16 %v228, %v224
  %v265 = vpack.c.b16 %v229, %v225
  %v266 = vpack.c.b16 %v234, %v230
  %v267 = vpack.c.b16 %v235, %v231
  %v268 = vpack.c.b16 %v236, %v232
  %v269 = vpack.c.b16 %v237, %v233
  %302 = vmatprep.subr.bf16.mxu0 %v267
  %303 = vmatpush1.bf16.msra.mxu0 %v266
  %304 = vmatprep.subr.bf16.mxu0 %v263
  %305 = vmatpush1.bf16.msra.mxu0 %v262
  %306 = vmatprep.subr.bf16.mxu0 %v259
  %307 = vmatpush1.bf16.msra.mxu0 %v258
  %308 = vmatprep.subr.bf16.mxu0 %v255
  %309 = vmatpush1.bf16.msra.mxu0 %v254
  %310 = vmatprep.subr.bf16.mxu0 %v251
  %311 = vmatpush1.bf16.msra.mxu0 %v250
  %312 = vmatprep.subr.bf16.mxu0 %v247
  %313 = vmatpush1.bf16.msra.mxu0 %v246
  %314 = vmatprep.subr.bf16.mxu0 %v243
  %315 = vmatpush1.bf16.msra.mxu0 %v242
  %316 = vmatprep.subr.bf16.mxu0 %v239
  %317 = vmatpush1.bf16.msra.mxu0 %v238
  %318 = vmatprep.subr.bf16.mxu0 0
  %319 = vmatpush2.bf16.msra.mxu0 0
  %320 = vmatprep.subr.bf16.mxu0 0
  %321 = vmatpush2.bf16.msra.mxu0 0
  %322 = vmatprep.subr.bf16.mxu0 0
  %323 = vmatpush2.bf16.msra.mxu0 0
  %324 = vmatprep.subr.bf16.mxu0 0
  %325 = vmatpush2.bf16.msra.mxu0 0
  %326 = vmatprep.subr.bf16.mxu0 0
  %327 = vmatpush2.bf16.msra.mxu0 0
  %328 = vmatprep.subr.bf16.mxu0 0
  %329 = vmatpush2.bf16.msra.mxu0 0
  %330 = vmatprep.subr.bf16.mxu0 0
  %331 = vmatpush2.bf16.msra.mxu0 0
  %332 = vmatprep.subr.bf16.mxu0 0
  %333 = vmatpush2.bf16.msra.mxu0 0
  %334 = vmatprep.mubr.bf16.mxu0 0
  %335 = vmatmul.mubr.bf16.gmra.mxu0 %v126
  %v336 = vpop.f32.mrf.mxu0
  %v337 = vadd.f32 %v77, %v336
  %v338 = vpop.f32.mrf.mxu0
  %v339 = vadd.f32 %v81, %v338
  %v340 = vpop.f32.mrf.mxu0
  %v341 = vadd.f32 %v77, %v340
  %v342 = vpop.f32.mrf.mxu0
  %v343 = vadd.f32 %v81, %v342
  %344 = vmatprep.mubr.bf16.mxu0 0
  %345 = vmatmul.mubr.bf16.gmra.mxu0 %v127
  %v346 = vpop.f32.mrf.mxu0
  %v347 = vadd.f32 %v77, %v346
  %v348 = vpop.f32.mrf.mxu0
  %v349 = vadd.f32 %v81, %v348
  %v350 = vpop.f32.mrf.mxu0
  %v351 = vadd.f32 %v77, %v350
  %v352 = vpop.f32.mrf.mxu0
  %v353 = vadd.f32 %v81, %v352
  %354 = vmatprep.mubr.bf16.mxu0 0
  %355 = vmatmul.mubr.bf16.gmra.mxu0 %v128
  %v356 = vpop.f32.mrf.mxu0
  %v357 = vadd.f32 %v77, %v356
  %v358 = vpop.f32.mrf.mxu0
  %v359 = vadd.f32 %v81, %v358
  %v360 = vpop.f32.mrf.mxu0
  %v361 = vadd.f32 %v77, %v360
  %v362 = vpop.f32.mrf.mxu0
  %v363 = vadd.f32 %v81, %v362
  %364 = vmatprep.mubr.bf16.mxu0 0
  %365 = vmatmul.mubr.bf16.gmra.mxu0 %v129
  %v366 = vpop.f32.mrf.mxu0
  %v367 = vadd.f32 %v77, %v366
  %v368 = vpop.f32.mrf.mxu0
  %v369 = vadd.f32 %v81, %v368
  %v370 = vpop.f32.mrf.mxu0
  %v371 = vadd.f32 %v77, %v370
  %v372 = vpop.f32.mrf.mxu0
  %v373 = vadd.f32 %v81, %v372
  %374 = vmatprep.mubr.bf16.mxu0 0
  %375 = vmatmul.mubr.bf16.gmra.mxu0 %v130
  %v376 = vpop.f32.mrf.mxu0
  %v377 = vadd.f32 %v77, %v376
  %v378 = vpop.f32.mrf.mxu0
  %v379 = vadd.f32 %v81, %v378
  %v380 = vpop.f32.mrf.mxu0
  %v381 = vadd.f32 %v77, %v380
  %v382 = vpop.f32.mrf.mxu0
  %v383 = vadd.f32 %v81, %v382
  %384 = vmatprep.mubr.bf16.mxu0 0
  %385 = vmatmul.mubr.bf16.gmra.mxu0 %v131
  %v386 = vpop.f32.mrf.mxu0
  %v387 = vadd.f32 %v77, %v386
  %v388 = vpop.f32.mrf.mxu0
  %v389 = vadd.f32 %v81, %v388
  %v390 = vpop.f32.mrf.mxu0
  %v391 = vadd.f32 %v77, %v390
  %v392 = vpop.f32.mrf.mxu0
  %v393 = vadd.f32 %v81, %v392
  %394 = vmatprep.mubr.bf16.mxu0 0
  %395 = vmatmul.mubr.bf16.gmra.mxu0 %v132
  %v396 = vpop.f32.mrf.mxu0
  %v397 = vadd.f32 %v77, %v396
  %v398 = vpop.f32.mrf.mxu0
  %v399 = vadd.f32 %v81, %v398
  %v400 = vpop.f32.mrf.mxu0
  %v401 = vadd.f32 %v77, %v400
  %v402 = vpop.f32.mrf.mxu0
  %v403 = vadd.f32 %v81, %v402
  %404 = vmatprep.mubr.bf16.mxu0 0
  %405 = vmatmul.mubr.bf16.gmra.mxu0 %v133
  %v406 = vpop.f32.mrf.mxu0
  %v407 = vadd.f32 %v77, %v406
  %v408 = vpop.f32.mrf.mxu0
  %v409 = vadd.f32 %v81, %v408
  %v410 = vpop.f32.mrf.mxu0
  %v411 = vadd.f32 %v77, %v410
  %v412 = vpop.f32.mrf.mxu0
  %v413 = vadd.f32 %v81, %v412
  %414 = vdwg.mxu0
  %415 = vmatprep.subr.bf16.mxu0 %v269
  %416 = vmatpush1.bf16.msra.mxu0 %v268
  %417 = vmatprep.subr.bf16.mxu0 %v265
  %418 = vmatpush1.bf16.msra.mxu0 %v264
  %419 = vmatprep.subr.bf16.mxu0 %v261
  %420 = vmatpush1.bf16.msra.mxu0 %v260
  %421 = vmatprep.subr.bf16.mxu0 %v257
  %422 = vmatpush1.bf16.msra.mxu0 %v256
  %423 = vmatprep.subr.bf16.mxu0 %v253
  %424 = vmatpush1.bf16.msra.mxu0 %v252
  %425 = vmatprep.subr.bf16.mxu0 %v249
  %426 = vmatpush1.bf16.msra.mxu0 %v248
  %427 = vmatprep.subr.bf16.mxu0 %v245
  %428 = vmatpush1.bf16.msra.mxu0 %v244
  %429 = vmatprep.subr.bf16.mxu0 %v241
  %430 = vmatpush1.bf16.msra.mxu0 %v240
  %431 = vmatprep.subr.bf16.mxu0 0
  %432 = vmatpush2.bf16.msra.mxu0 0
  %433 = vmatprep.subr.bf16.mxu0 0
  %434 = vmatpush2.bf16.msra.mxu0 0
  %435 = vmatprep.subr.bf16.mxu0 0
  %436 = vmatpush2.bf16.msra.mxu0 0
  %437 = vmatprep.subr.bf16.mxu0 0
  %438 = vmatpush2.bf16.msra.mxu0 0
  %439 = vmatprep.subr.bf16.mxu0 0
  %440 = vmatpush2.bf16.msra.mxu0 0
  %441 = vmatprep.subr.bf16.mxu0 0
  %442 = vmatpush2.bf16.msra.mxu0 0
  %443 = vmatprep.subr.bf16.mxu0 0
  %444 = vmatpush2.bf16.msra.mxu0 0
  %445 = vmatprep.subr.bf16.mxu0 0
  %446 = vmatpush2.bf16.msra.mxu0 0
  %447 = vmatprep.mubr.bf16.mxu0 0
  %448 = vmatmul.mubr.bf16.gmra.mxu0 %v126
  %v449 = vpop.f32.mrf.mxu0
  %v450 = vadd.f32 %v85, %v449
  %v451 = vpop.f32.mrf.mxu0
  %v452 = vadd.f32 %v89, %v451
  %v453 = vpop.f32.mrf.mxu0
  %v454 = vadd.f32 %v85, %v453
  %v455 = vpop.f32.mrf.mxu0
  %v456 = vadd.f32 %v89, %v455
  %457 = vmatprep.mubr.bf16.mxu0 0
  %458 = vmatmul.mubr.bf16.gmra.mxu0 %v127
  %v459 = vpop.f32.mrf.mxu0
  %v460 = vadd.f32 %v85, %v459
  %v461 = vpop.f32.mrf.mxu0
  %v462 = vadd.f32 %v89, %v461
  %v463 = vpop.f32.mrf.mxu0
  %v464 = vadd.f32 %v85, %v463
  %v465 = vpop.f32.mrf.mxu0
  %v466 = vadd.f32 %v89, %v465
  %467 = vmatprep.mubr.bf16.mxu0 0
  %468 = vmatmul.mubr.bf16.gmra.mxu0 %v128
  %v469 = vpop.f32.mrf.mxu0
  %v470 = vadd.f32 %v85, %v469
  %v471 = vpop.f32.mrf.mxu0
  %v472 = vadd.f32 %v89, %v471
  %v473 = vpop.f32.mrf.mxu0
  %v474 = vadd.f32 %v85, %v473
  %v475 = vpop.f32.mrf.mxu0
  %v476 = vadd.f32 %v89, %v475
  %477 = vmatprep.mubr.bf16.mxu0 0
  %478 = vmatmul.mubr.bf16.gmra.mxu0 %v129
  %v479 = vpop.f32.mrf.mxu0
  %v480 = vadd.f32 %v85, %v479
  %v481 = vpop.f32.mrf.mxu0
  %v482 = vadd.f32 %v89, %v481
  %v483 = vpop.f32.mrf.mxu0
  %v484 = vadd.f32 %v85, %v483
  %v485 = vpop.f32.mrf.mxu0
  %v486 = vadd.f32 %v89, %v485
  %487 = vmatprep.mubr.bf16.mxu0 0
  %488 = vmatmul.mubr.bf16.gmra.mxu0 %v130
  %v489 = vpop.f32.mrf.mxu0
  %v490 = vadd.f32 %v85, %v489
  %v491 = vpop.f32.mrf.mxu0
  %v492 = vadd.f32 %v89, %v491
  %v493 = vpop.f32.mrf.mxu0
  %v494 = vadd.f32 %v85, %v493
  %v495 = vpop.f32.mrf.mxu0
  %v496 = vadd.f32 %v89, %v495
  %497 = vmatprep.mubr.bf16.mxu0 0
  %498 = vmatmul.mubr.bf16.gmra.mxu0 %v131
  %v499 = vpop.f32.mrf.mxu0
  %v500 = vadd.f32 %v85, %v499
  %v501 = vpop.f32.mrf.mxu0
  %v502 = vadd.f32 %v89, %v501
  %v503 = vpop.f32.mrf.mxu0
  %v504 = vadd.f32 %v85, %v503
  %v505 = vpop.f32.mrf.mxu0
  %v506 = vadd.f32 %v89, %v505
  %507 = vmatprep.mubr.bf16.mxu0 0
  %508 = vmatmul.mubr.bf16.gmra.mxu0 %v132
  %v509 = vpop.f32.mrf.mxu0
  %v510 = vadd.f32 %v85, %v509
  %v511 = vpop.f32.mrf.mxu0
  %v512 = vadd.f32 %v89, %v511
  %v513 = vpop.f32.mrf.mxu0
  %v514 = vadd.f32 %v85, %v513
  %v515 = vpop.f32.mrf.mxu0
  %v516 = vadd.f32 %v89, %v515
  %517 = vmatprep.mubr.bf16.mxu0 0
  %518 = vmatmul.mubr.bf16.gmra.mxu0 %v133
  %v519 = vpop.f32.mrf.mxu0
  %v520 = vadd.f32 %v85, %v519
  %v521 = vpop.f32.mrf.mxu0
  %v522 = vadd.f32 %v89, %v521
  %v523 = vpop.f32.mrf.mxu0
  %v524 = vadd.f32 %v85, %v523
  %v525 = vpop.f32.mrf.mxu0
  %v526 = vadd.f32 %v89, %v525
  %527 = vdwg.mxu0
  %528 = vst [vmem:[#allocation4] sm:$0xff] %v337
  %529 = vst [vmem:[#allocation4 + $0x8] sm:$0xff] %v339
  %530 = vst [vmem:[#allocation4 + $0x10] sm:$0xff] %v450
  %531 = vst [vmem:[#allocation4 + $0x18] sm:$0xff] %v452
  %532 = vst [vmem:[#allocation4 + $0x20] sm:$0xff] %v341
  %533 = vst [vmem:[#allocation4 + $0x28] sm:$0xff] %v343
  %534 = vst [vmem:[#allocation4 + $0x30] sm:$0xff] %v454
  %535 = vst [vmem:[#allocation4 + $0x38] sm:$0xff] %v456
  %536 = vst [vmem:[#allocation4 + $0x40] sm:$0xff] %v347
  %537 = vst [vmem:[#allocation4 + $0x48] sm:$0xff] %v349
  %538 = vst [vmem:[#allocation4 + $0x50] sm:$0xff] %v460
  %539 = vst [vmem:[#allocation4 + $0x58] sm:$0xff] %v462
  %540 = vst [vmem:[#allocation4 + $0x60] sm:$0xff] %v351
  %541 = vst [vmem:[#allocation4 + $0x68] sm:$0xff] %v353
  %542 = vst [vmem:[#allocation4 + $0x70] sm:$0xff] %v464
  %543 = vst [vmem:[#allocation4 + $0x78] sm:$0xff] %v466
  %544 = vst [vmem:[#allocation4 + $0x80] sm:$0xff] %v357
  %545 = vst [vmem:[#allocation4 + $0x88] sm:$0xff] %v359
  %546 = vst [vmem:[#allocation4 + $0x90] sm:$0xff] %v470
  %547 = vst [vmem:[#allocation4 + $0x98] sm:$0xff] %v472
  %548 = vst [vmem:[#allocation4 + $0xa0] sm:$0xff] %v361
  %549 = vst [vmem:[#allocation4 + $0xa8] sm:$0xff] %v363
  %550 = vst [vmem:[#allocation4 + $0xb0] sm:$0xff] %v474
  %551 = vst [vmem:[#allocation4 + $0xb8] sm:$0xff] %v476
  %552 = vst [vmem:[#allocation4 + $0xc0] sm:$0xff] %v367
  %553 = vst [vmem:[#allocation4 + $0xc8] sm:$0xff] %v369
  %554 = vst [vmem:[#allocation4 + $0xd0] sm:$0xff] %v480
  %555 = vst [vmem:[#allocation4 + $0xd8] sm:$0xff] %v482
  %556 = vst [vmem:[#allocation4 + $0xe0] sm:$0xff] %v371
  %557 = vst [vmem:[#allocation4 + $0xe8] sm:$0xff] %v373
  %558 = vst [vmem:[#allocation4 + $0xf0] sm:$0xff] %v484
  %559 = vst [vmem:[#allocation4 + $0xf8] sm:$0xff] %v486
  %560 = vst [vmem:[#allocation4 + $0x100] sm:$0xff] %v377
  %561 = vst [vmem:[#allocation4 + $0x108] sm:$0xff] %v379
  %562 = vst [vmem:[#allocation4 + $0x110] sm:$0xff] %v490
  %563 = vst [vmem:[#allocation4 + $0x118] sm:$0xff] %v492
  %564 = vst [vmem:[#allocation4 + $0x120] sm:$0xff] %v381
  %565 = vst [vmem:[#allocation4 + $0x128] sm:$0xff] %v383
  %566 = vst [vmem:[#allocation4 + $0x130] sm:$0xff] %v494
  %567 = vst [vmem:[#allocation4 + $0x138] sm:$0xff] %v496
  %568 = vst [vmem:[#allocation4 + $0x140] sm:$0xff] %v387
  %569 = vst [vmem:[#allocation4 + $0x148] sm:$0xff] %v389
  %570 = vst [vmem:[#allocation4 + $0x150] sm:$0xff] %v500
  %571 = vst [vmem:[#allocation4 + $0x158] sm:$0xff] %v502
  %572 = vst [vmem:[#allocation4 + $0x160] sm:$0xff] %v391
  %573 = vst [vmem:[#allocation4 + $0x168] sm:$0xff] %v393
  %574 = vst [vmem:[#allocation4 + $0x170] sm:$0xff] %v504
  %575 = vst [vmem:[#allocation4 + $0x178] sm:$0xff] %v506
  %576 = vst [vmem:[#allocation4 + $0x180] sm:$0xff] %v397
  %577 = vst [vmem:[#allocation4 + $0x188] sm:$0xff] %v399
  %578 = vst [vmem:[#allocation4 + $0x190] sm:$0xff] %v510
  %579 = vst [vmem:[#allocation4 + $0x198] sm:$0xff] %v512
  %580 = vst [vmem:[#allocation4 + $0x1a0] sm:$0xff] %v401
  %581 = vst [vmem:[#allocation4 + $0x1a8] sm:$0xff] %v403
  %582 = vst [vmem:[#allocation4 + $0x1b0] sm:$0xff] %v514
  %583 = vst [vmem:[#allocation4 + $0x1b8] sm:$0xff] %v516
  %584 = vst [vmem:[#allocation4 + $0x1c0] sm:$0xff] %v407
  %585 = vst [vmem:[#allocation4 + $0x1c8] sm:$0xff] %v409
  %586 = vst [vmem:[#allocation4 + $0x1d0] sm:$0xff] %v520
  %587 = vst [vmem:[#allocation4 + $0x1d8] sm:$0xff] %v522
  %588 = vst [vmem:[#allocation4 + $0x1e0] sm:$0xff] %v411
  %589 = vst [vmem:[#allocation4 + $0x1e8] sm:$0xff] %v413
  %590 = vst [vmem:[#allocation4 + $0x1f0] sm:$0xff] %v524
  %591 = vst [vmem:[#allocation4 + $0x1f8] sm:$0xff] %v526
  %v592 = vld [vmem:[%s2] sm:$0xff]
  %v593 = vld [vmem:[%s2 + $0x8] sm:$0xff]
  %v594 = vld [vmem:[%s2 + $0x10] sm:$0xff]
  %v595 = vld [vmem:[%s2 + $0x18] sm:$0xff]
  %v596 = vld [vmem:[%s2 + $0x20] sm:$0xff]
  %v597 = vld [vmem:[%s2 + $0x28] sm:$0xff]
  %v598 = vld [vmem:[%s2 + $0x30] sm:$0xff]
  %v599 = vld [vmem:[%s2 + $0x38] sm:$0xff]
  %v600 = vld [vmem:[%s2 + $0x40] sm:$0xff]
  %v601 = vld [vmem:[%s2 + $0x48] sm:$0xff]
  %v602 = vld [vmem:[%s2 + $0x50] sm:$0xff]
  %v603 = vld [vmem:[%s2 + $0x58] sm:$0xff]
  %v604 = vld [vmem:[%s2 + $0x60] sm:$0xff]
  %v605 = vld [vmem:[%s2 + $0x68] sm:$0xff]
  %v606 = vld [vmem:[%s2 + $0x70] sm:$0xff]
  %v607 = vld [vmem:[%s2 + $0x78] sm:$0xff]
  %v608 = vld [vmem:[%s2 + $0x80] sm:$0xff]
  %v609 = vld [vmem:[%s2 + $0x88] sm:$0xff]
  %v610 = vld [vmem:[%s2 + $0x90] sm:$0xff]
  %v611 = vld [vmem:[%s2 + $0x98] sm:$0xff]
  %v612 = vld [vmem:[%s2 + $0xa0] sm:$0xff]
  %v613 = vld [vmem:[%s2 + $0xa8] sm:$0xff]
  %v614 = vld [vmem:[%s2 + $0xb0] sm:$0xff]
  %v615 = vld [vmem:[%s2 + $0xb8] sm:$0xff]
  %v616 = vld [vmem:[%s2 + $0xc0] sm:$0xff]
  %v617 = vld [vmem:[%s2 + $0xc8] sm:$0xff]
  %v618 = vld [vmem:[%s2 + $0xd0] sm:$0xff]
  %v619 = vld [vmem:[%s2 + $0xd8] sm:$0xff]
  %v620 = vld [vmem:[%s2 + $0xe0] sm:$0xff]
  %v621 = vld [vmem:[%s2 + $0xe8] sm:$0xff]
  %v622 = vld [vmem:[%s2 + $0xf0] sm:$0xff]
  %v623 = vld [vmem:[%s2 + $0xf8] sm:$0xff]
  %v624 = vld [vmem:[#allocation2] sm:$0xff]
  %v625 = vld [vmem:[#allocation3] sm:$0xff]
  %s626 = smul.u32 0, 4
  %s627 = smul.addr %s626, 8
  %s628 = scalar_lea.vmem [#allocation4], %s627
  %v629 = vld [vmem:[%s628] sm:$0xff]
  %v630 = vld [vmem:[%s628 + $0x8] sm:$0xff]
  %v631 = vld [vmem:[%s628 + $0x10] sm:$0xff]
  %v632 = vld [vmem:[%s628 + $0x18] sm:$0xff]
  %v633 = vpack.c.bf16 %v624, %v624
  %v666 = vunpack.c.l.b16 %v592
  %v667 = vunpack.c.h.b16 %v592
  %v668 = vunpack.c.l.b16 %v593
  %v669 = vunpack.c.h.b16 %v593
  %v670 = vunpack.c.l.b16 %v594
  %v671 = vunpack.c.h.b16 %v594
  %v672 = vunpack.c.l.b16 %v595
  %v673 = vunpack.c.h.b16 %v595
  %v674 = vunpack.c.l.b16 %v596
  %v675 = vunpack.c.h.b16 %v596
  %v676 = vunpack.c.l.b16 %v597
  %v677 = vunpack.c.h.b16 %v597
  %v678 = vunpack.c.l.b16 %v598
  %v679 = vunpack.c.h.b16 %v598
  %v680 = vunpack.c.l.b16 %v599
  %v681 = vunpack.c.h.b16 %v599
  %v682 = vunpack.c.l.b16 %v600
  %v683 = vunpack.c.h.b16 %v600
  %v684 = vunpack.c.l.b16 %v601
  %v685 = vunpack.c.h.b16 %v601
  %v686 = vunpack.c.l.b16 %v602
  %v687 = vunpack.c.h.b16 %v602
  %v688 = vunpack.c.l.b16 %v603
  %v689 = vunpack.c.h.b16 %v603
  %v690 = vunpack.c.l.b16 %v604
  %v691 = vunpack.c.h.b16 %v604
  %v692 = vunpack.c.l.b16 %v605
  %v693 = vunpack.c.h.b16 %v605
  %v694 = vunpack.c.l.b16 %v606
  %v695 = vunpack.c.h.b16 %v606
  %v696 = vunpack.c.l.b16 %v607
  %v697 = vunpack.c.h.b16 %v607
  %v698 = vunpack.c.l.b16 %v608
  %v699 = vunpack.c.h.b16 %v608
  %v700 = vunpack.c.l.b16 %v609
  %v701 = vunpack.c.h.b16 %v609
  %v702 = vunpack.c.l.b16 %v610
  %v703 = vunpack.c.h.b16 %v610
  %v704 = vunpack.c.l.b16 %v611
  %v705 = vunpack.c.h.b16 %v611
  %v706 = vunpack.c.l.b16 %v612
  %v707 = vunpack.c.h.b16 %v612
  %v708 = vunpack.c.l.b16 %v613
  %v709 = vunpack.c.h.b16 %v613
  %v710 = vunpack.c.l.b16 %v614
  %v711 = vunpack.c.h.b16 %v614
  %v712 = vunpack.c.l.b16 %v615
  %v713 = vunpack.c.h.b16 %v615
  %v714 = vunpack.c.l.b16 %v616
  %v715 = vunpack.c.h.b16 %v616
  %v716 = vunpack.c.l.b16 %v617
  %v717 = vunpack.c.h.b16 %v617
  %v718 = vunpack.c.l.b16 %v618
  %v719 = vunpack.c.h.b16 %v618
  %v720 = vunpack.c.l.b16 %v619
  %v721 = vunpack.c.h.b16 %v619
  %v722 = vunpack.c.l.b16 %v620
  %v723 = vunpack.c.h.b16 %v620
  %v724 = vunpack.c.l.b16 %v621
  %v725 = vunpack.c.h.b16 %v621
  %v726 = vunpack.c.l.b16 %v622
  %v727 = vunpack.c.h.b16 %v622
  %v728 = vunpack.c.l.b16 %v623
  %v729 = vunpack.c.h.b16 %v623
  %v730 = vpack.c.b16 %v670, %v666
  %v731 = vpack.c.b16 %v671, %v667
  %v732 = vpack.c.b16 %v672, %v668
  %v733 = vpack.c.b16 %v673, %v669
  %v734 = vpack.c.b16 %v678, %v674
  %v735 = vpack.c.b16 %v679, %v675
  %v736 = vpack.c.b16 %v680, %v676
  %v737 = vpack.c.b16 %v681, %v677
  %v738 = vpack.c.b16 %v686, %v682
  %v739 = vpack.c.b16 %v687, %v683
  %v740 = vpack.c.b16 %v688, %v684
  %v741 = vpack.c.b16 %v689, %v685
  %v742 = vpack.c.b16 %v694, %v690
  %v743 = vpack.c.b16 %v695, %v691
  %v744 = vpack.c.b16 %v696, %v692
  %v745 = vpack.c.b16 %v697, %v693
  %v746 = vpack.c.b16 %v702, %v698
  %v747 = vpack.c.b16 %v703, %v699
  %v748 = vpack.c.b16 %v704, %v700
  %v749 = vpack.c.b16 %v705, %v701
  %v750 = vpack.c.b16 %v710, %v706
  %v751 = vpack.c.b16 %v711, %v707
  %v752 = vpack.c.b16 %v712, %v708
  %v753 = vpack.c.b16 %v713, %v709
  %v754 = vpack.c.b16 %v718, %v714
  %v755 = vpack.c.b16 %v719, %v715
  %v756 = vpack.c.b16 %v720, %v716
  %v757 = vpack.c.b16 %v721, %v717
  %v758 = vpack.c.b16 %v726, %v722
  %v759 = vpack.c.b16 %v727, %v723
  %v760 = vpack.c.b16 %v728, %v724
  %v761 = vpack.c.b16 %v729, %v725
  %794 = vmatprep.subr.bf16.mxu0 %v759
  %795 = vmatpush1.bf16.msra.mxu0 %v758
  %796 = vmatprep.subr.bf16.mxu0 %v755
  %797 = vmatpush1.bf16.msra.mxu0 %v754
  %798 = vmatprep.subr.bf16.mxu0 %v751
  %799 = vmatpush1.bf16.msra.mxu0 %v750
  %800 = vmatprep.subr.bf16.mxu0 %v747
  %801 = vmatpush1.bf16.msra.mxu0 %v746
  %802 = vmatprep.subr.bf16.mxu0 %v743
  %803 = vmatpush1.bf16.msra.mxu0 %v742
  %804 = vmatprep.subr.bf16.mxu0 %v739
  %805 = vmatpush1.bf16.msra.mxu0 %v738
  %806 = vmatprep.subr.bf16.mxu0 %v735
  %807 = vmatpush1.bf16.msra.mxu0 %v734
  %808 = vmatprep.subr.bf16.mxu0 %v731
  %809 = vmatpush1.bf16.msra.mxu0 %v730
  %810 = vmatprep.subr.bf16.mxu0 0
  %811 = vmatpush2.bf16.msra.mxu0 0
  %812 = vmatprep.subr.bf16.mxu0 0
  %813 = vmatpush2.bf16.msra.mxu0 0
  %814 = vmatprep.subr.bf16.mxu0 0
  %815 = vmatpush2.bf16.msra.mxu0 0
  %816 = vmatprep.subr.bf16.mxu0 0
  %817 = vmatpush2.bf16.msra.mxu0 0
  %818 = vmatprep.subr.bf16.mxu0 0
  %819 = vmatpush2.bf16.msra.mxu0 0
  %820 = vmatprep.subr.bf16.mxu0 0
  %821 = vmatpush2.bf16.msra.mxu0 0
  %822 = vmatprep.subr.bf16.mxu0 0
  %823 = vmatpush2.bf16.msra.mxu0 0
  %824 = vmatprep.subr.bf16.mxu0 0
  %825 = vmatpush2.bf16.msra.mxu0 0
  %826 = vmatprep.mubr.bf16.mxu0 0
  %827 = vmatmul.mubr.bf16.gmra.mxu0 %v633
  %v828 = vpop.f32.mrf.mxu0
  %v829 = vadd.f32 0.0, %v828
  %v830 = vpop.f32.mrf.mxu0
  %v831 = vadd.f32 0.0, %v830
  %v832 = vpop.f32.mrf.mxu0
  %v833 = vpop.f32.mrf.mxu0
  %834 = vdwg.mxu0
  %835 = vmatprep.subr.bf16.mxu0 %v761
  %836 = vmatpush1.bf16.msra.mxu0 %v760
  %837 = vmatprep.subr.bf16.mxu0 %v757
  %838 = vmatpush1.bf16.msra.mxu0 %v756
  %839 = vmatprep.subr.bf16.mxu0 %v753
  %840 = vmatpush1.bf16.msra.mxu0 %v752
  %841 = vmatprep.subr.bf16.mxu0 %v749
  %842 = vmatpush1.bf16.msra.mxu0 %v748
  %843 = vmatprep.subr.bf16.mxu0 %v745
  %844 = vmatpush1.bf16.msra.mxu0 %v744
  %845 = vmatprep.subr.bf16.mxu0 %v741
  %846 = vmatpush1.bf16.msra.mxu0 %v740
  %847 = vmatprep.subr.bf16.mxu0 %v737
  %848 = vmatpush1.bf16.msra.mxu0 %v736
  %849 = vmatprep.subr.bf16.mxu0 %v733
  %850 = vmatpush1.bf16.msra.mxu0 %v732
  %851 = vmatprep.subr.bf16.mxu0 0
  %852 = vmatpush2.bf16.msra.mxu0 0
  %853 = vmatprep.subr.bf16.mxu0 0
  %854 = vmatpush2.bf16.msra.mxu0 0
  %855 = vmatprep.subr.bf16.mxu0 0
  %856 = vmatpush2.bf16.msra.mxu0 0
  %857 = vmatprep.subr.bf16.mxu0 0
  %858 = vmatpush2.bf16.msra.mxu0 0
  %859 = vmatprep.subr.bf16.mxu0 0
  %860 = vmatpush2.bf16.msra.mxu0 0
  %861 = vmatprep.subr.bf16.mxu0 0
  %862 = vmatpush2.bf16.msra.mxu0 0
  %863 = vmatprep.subr.bf16.mxu0 0
  %864 = vmatpush2.bf16.msra.mxu0 0
  %865 = vmatprep.subr.bf16.mxu0 0
  %866 = vmatpush2.bf16.msra.mxu0 0
  %867 = vmatprep.mubr.bf16.mxu0 0
  %868 = vmatmul.mubr.bf16.gmra.mxu0 %v633
  %v869 = vpop.f32.mrf.mxu0
  %v870 = vadd.f32 0.0, %v869
  %v871 = vpop.f32.mrf.mxu0
  %v872 = vadd.f32 0.0, %v871
  %v873 = vpop.f32.mrf.mxu0
  %v874 = vpop.f32.mrf.mxu0
  %875 = vdwg.mxu0
  %v876 = vadd.f32 %v629, %v829
  %v877 = vadd.f32 %v630, %v831
  %v878 = vadd.f32 %v631, %v870
  %v879 = vadd.f32 %v632, %v872
  %v880 = vxor.u32 %v876, 2147483648
  %v881 = vmul.f32 %v880, 1.442695
  %v882 = vpow.pop %v881
  %v883 = vadd.f32 %v882, 1.0
  %v884 = vrcp.pop %v883
  %v885 = vmul.f32 1.0, %v884
  %v886 = vxor.u32 %v877, 2147483648
  %v887 = vmul.f32 %v886, 1.442695
  %v888 = vpow.pop %v887
  %v889 = vadd.f32 %v888, 1.0
  %v890 = vrcp.pop %v889
  %v891 = vmul.f32 1.0, %v890
  %v892 = vtanh.pop %v878
  %v893 = vxor.u32 %v879, 2147483648
  %v894 = vmul.f32 %v893, 1.442695
  %v895 = vpow.pop %v894
  %v896 = vadd.f32 %v895, 1.0
  %v897 = vrcp.pop %v896
  %v898 = vmul.f32 1.0, %v897
  %v899 = vmul.f32 %v891, %v625
  %v900 = vmul.f32 %v885, %v892
  %v901 = vadd.f32 %v899, %v900
  %v902 = vtanh.pop %v901
  %v903 = vmul.f32 %v898, %v902
  %904 = vst [vmem:[#allocation2] sm:$0xff] %v903
  %905 = vst [vmem:[#allocation3] sm:$0xff] %v901
  %v906 = vpack.c.bf16 %v903, %v903
  %907 = vst [vmem:[%s4] sm:$0xf] %v906
  %v908 = vld [vmem:[#allocation2] sm:$0xff]
  %v909 = vld [vmem:[#allocation3] sm:$0xff]
  %s910 = smul.u32 1, 4
  %s911 = smul.addr %s910, 8
  %s912 = scalar_lea.vmem [#allocation4], %s911
  %v913 = vld [vmem:[%s912] sm:$0xff]
  %v914 = vld [vmem:[%s912 + $0x8] sm:$0xff]
  %v915 = vld [vmem:[%s912 + $0x10] sm:$0xff]
  %v916 = vld [vmem:[%s912 + $0x18] sm:$0xff]
  %v917 = vpack.c.bf16 %v908, %v908
  %918 = vmatprep.subr.bf16.mxu0 %v759
  %919 = vmatpush1.bf16.msra.mxu0 %v758
  %920 = vmatprep.subr.bf16.mxu0 %v755
  %921 = vmatpush1.bf16.msra.mxu0 %v754
  %922 = vmatprep.subr.bf16.mxu0 %v751
  %923 = vmatpush1.bf16.msra.mxu0 %v750
  %924 = vmatprep.subr.bf16.mxu0 %v747
  %925 = vmatpush1.bf16.msra.mxu0 %v746
  %926 = vmatprep.subr.bf16.mxu0 %v743
  %927 = vmatpush1.bf16.msra.mxu0 %v742
  %928 = vmatprep.subr.bf16.mxu0 %v739
  %929 = vmatpush1.bf16.msra.mxu0 %v738
  %930 = vmatprep.subr.bf16.mxu0 %v735
  %931 = vmatpush1.bf16.msra.mxu0 %v734
  %932 = vmatprep.subr.bf16.mxu0 %v731
  %933 = vmatpush1.bf16.msra.mxu0 %v730
  %934 = vmatprep.subr.bf16.mxu0 0
  %935 = vmatpush2.bf16.msra.mxu0 0
  %936 = vmatprep.subr.bf16.mxu0 0
  %937 = vmatpush2.bf16.msra.mxu0 0
  %938 = vmatprep.subr.bf16.mxu0 0
  %939 = vmatpush2.bf16.msra.mxu0 0
  %940 = vmatprep.subr.bf16.mxu0 0
  %941 = vmatpush2.bf16.msra.mxu0 0
  %942 = vmatprep.subr.bf16.mxu0 0
  %943 = vmatpush2.bf16.msra.mxu0 0
  %944 = vmatprep.subr.bf16.mxu0 0
  %945 = vmatpush2.bf16.msra.mxu0 0
  %946 = vmatprep.subr.bf16.mxu0 0
  %947 = vmatpush2.bf16.msra.mxu0 0
  %948 = vmatprep.subr.bf16.mxu0 0
  %949 = vmatpush2.bf16.msra.mxu0 0
  %950 = vmatprep.mubr.bf16.mxu0 0
  %951 = vmatmul.mubr.bf16.gmra.mxu0 %v917
  %v952 = vpop.f32.mrf.mxu0
  %v953 = vadd.f32 0.0, %v952
  %v954 = vpop.f32.mrf.mxu0
  %v955 = vadd.f32 0.0, %v954
  %v956 = vpop.f32.mrf.mxu0
  %v957 = vpop.f32.mrf.mxu0
  %958 = vdwg.mxu0
  %959 = vmatprep.subr.bf16.mxu0 %v761
  %960 = vmatpush1.bf16.msra.mxu0 %v760
  %961 = vmatprep.subr.bf16.mxu0 %v757
  %962 = vmatpush1.bf16.msra.mxu0 %v756
  %963 = vmatprep.subr.bf16.mxu0 %v753
  %964 = vmatpush1.bf16.msra.mxu0 %v752
  %965 = vmatprep.subr.bf16.mxu0 %v749
  %966 = vmatpush1.bf16.msra.mxu0 %v748
  %967 = vmatprep.subr.bf16.mxu0 %v745
  %968 = vmatpush1.bf16.msra.mxu0 %v744
  %969 = vmatprep.subr.bf16.mxu0 %v741
  %970 = vmatpush1.bf16.msra.mxu0 %v740
  %971 = vmatprep.subr.bf16.mxu0 %v737
  %972 = vmatpush1.bf16.msra.mxu0 %v736
  %973 = vmatprep.subr.bf16.mxu0 %v733
  %974 = vmatpush1.bf16.msra.mxu0 %v732
  %975 = vmatprep.subr.bf16.mxu0 0
  %976 = vmatpush2.bf16.msra.mxu0 0
  %977 = vmatprep.subr.bf16.mxu0 0
  %978 = vmatpush2.bf16.msra.mxu0 0
  %979 = vmatprep.subr.bf16.mxu0 0
  %980 = vmatpush2.bf16.msra.mxu0 0
  %981 = vmatprep.subr.bf16.mxu0 0
  %982 = vmatpush2.bf16.msra.mxu0 0
  %983 = vmatprep.subr.bf16.mxu0 0
  %984 = vmatpush2.bf16.msra.mxu0 0
  %985 = vmatprep.subr.bf16.mxu0 0
  %986 = vmatpush2.bf16.msra.mxu0 0
  %987 = vmatprep.subr.bf16.mxu0 0
  %988 = vmatpush2.bf16.msra.mxu0 0
  %989 = vmatprep.subr.bf16.mxu0 0
  %990 = vmatpush2.bf16.msra.mxu0 0
  %991 = vmatprep.mubr.bf16.mxu0 0
  %992 = vmatmul.mubr.bf16.gmra.mxu0 %v917
  %v993 = vpop.f32.mrf.mxu0
  %v994 = vadd.f32 0.0, %v993
  %v995 = vpop.f32.mrf.mxu0
  %v996 = vadd.f32 0.0, %v995
  %v997 = vpop.f32.mrf.mxu0
  %v998 = vpop.f32.mrf.mxu0
  %999 = vdwg.mxu0
  %v1000 = vadd.f32 %v913, %v953
  %v1001 = vadd.f32 %v914, %v955
  %v1002 = vadd.f32 %v915, %v994
  %v1003 = vadd.f32 %v916, %v996
  %v1004 = vxor.u32 %v1000, 2147483648
  %v1005 = vmul.f32 %v1004, 1.442695
  %v1006 = vpow.pop %v1005
  %v1007 = vadd.f32 %v1006, 1.0
  %v1008 = vrcp.pop %v1007
  %v1009 = vmul.f32 1.0, %v1008
  %v1010 = vxor.u32 %v1001, 2147483648
  %v1011 = vmul.f32 %v1010, 1.442695
  %v1012 = vpow.pop %v1011
  %v1013 = vadd.f32 %v1012, 1.0
  %v1014 = vrcp.pop %v1013
  %v1015 = vmul.f32 1.0, %v1014
  %v1016 = vtanh.pop %v1002
  %v1017 = vxor.u32 %v1003, 2147483648
  %v1018 = vmul.f32 %v1017, 1.442695
  %v1019 = vpow.pop %v1018
  %v1020 = vadd.f32 %v1019, 1.0
  %v1021 = vrcp.pop %v1020
  %v1022 = vmul.f32 1.0, %v1021
  %v1023 = vmul.f32 %v1015, %v909
  %v1024 = vmul.f32 %v1009, %v1016
  %v1025 = vadd.f32 %v1023, %v1024
  %v1026 = vtanh.pop %v1025
  %v1027 = vmul.f32 %v1022, %v1026
  %1028 = vst [vmem:[#allocation2] sm:$0xff] %v1027
  %1029 = vst [vmem:[#allocation3] sm:$0xff] %v1025
  %v1030 = vpack.c.bf16 %v1027, %v1027
  %s1031 = scalar_lea.vmem %s4, 4
  %1032 = vst [vmem:[%s1031] sm:$0xf] %v1030
  %v1033 = vld [vmem:[#allocation2] sm:$0xff]
  %v1034 = vld [vmem:[#allocation3] sm:$0xff]
  %s1035 = smul.u32 2, 4
  %s1036 = smul.addr %s1035, 8
  %s1037 = scalar_lea.vmem [#allocation4], %s1036
  %v1038 = vld [vmem:[%s1037] sm:$0xff]
  %v1039 = vld [vmem:[%s1037 + $0x8] sm:$0xff]
  %v1040 = vld [vmem:[%s1037 + $0x10] sm:$0xff]
  %v1041 = vld [vmem:[%s1037 + $0x18] sm:$0xff]
  %v1042 = vpack.c.bf16 %v1033, %v1033
  %1043 = vmatprep.subr.bf16.mxu0 %v759
  %1044 = vmatpush1.bf16.msra.mxu0 %v758
  %1045 = vmatprep.subr.bf16.mxu0 %v755
  %1046 = vmatpush1.bf16.msra.mxu0 %v754
  %1047 = vmatprep.subr.bf16.mxu0 %v751
  %1048 = vmatpush1.bf16.msra.mxu0 %v750
  %1049 = vmatprep.subr.bf16.mxu0 %v747
  %1050 = vmatpush1.bf16.msra.mxu0 %v746
  %1051 = vmatprep.subr.bf16.mxu0 %v743
  %1052 = vmatpush1.bf16.msra.mxu0 %v742
  %1053 = vmatprep.subr.bf16.mxu0 %v739
  %1054 = vmatpush1.bf16.msra.mxu0 %v738
  %1055 = vmatprep.subr.bf16.mxu0 %v735
  %1056 = vmatpush1.bf16.msra.mxu0 %v734
  %1057 = vmatprep.subr.bf16.mxu0 %v731
  %1058 = vmatpush1.bf16.msra.mxu0 %v730
  %1059 = vmatprep.subr.bf16.mxu0 0
  %1060 = vmatpush2.bf16.msra.mxu0 0
  %1061 = vmatprep.subr.bf16.mxu0 0
  %1062 = vmatpush2.bf16.msra.mxu0 0
  %1063 = vmatprep.subr.bf16.mxu0 0
  %1064 = vmatpush2.bf16.msra.mxu0 0
  %1065 = vmatprep.subr.bf16.mxu0 0
  %1066 = vmatpush2.bf16.msra.mxu0 0
  %1067 = vmatprep.subr.bf16.mxu0 0
  %1068 = vmatpush2.bf16.msra.mxu0 0
  %1069 = vmatprep.subr.bf16.mxu0 0
  %1070 = vmatpush2.bf16.msra.mxu0 0
  %1071 = vmatprep.subr.bf16.mxu0 0
  %1072 = vmatpush2.bf16.msra.mxu0 0
  %1073 = vmatprep.subr.bf16.mxu0 0
  %1074 = vmatpush2.bf16.msra.mxu0 0
  %1075 = vmatprep.mubr.bf16.mxu0 0
  %1076 = vmatmul.mubr.bf16.gmra.mxu0 %v1042
  %v1077 = vpop.f32.mrf.mxu0
  %v1078 = vadd.f32 0.0, %v1077
  %v1079 = vpop.f32.mrf.mxu0
  %v1080 = vadd.f32 0.0, %v1079
  %v1081 = vpop.f32.mrf.mxu0
  %v1082 = vpop.f32.mrf.mxu0
  %1083 = vdwg.mxu0
  %1084 = vmatprep.subr.bf16.mxu0 %v761
  %1085 = vmatpush1.bf16.msra.mxu0 %v760
  %1086 = vmatprep.subr.bf16.mxu0 %v757
  %1087 = vmatpush1.bf16.msra.mxu0 %v756
  %1088 = vmatprep.subr.bf16.mxu0 %v753
  %1089 = vmatpush1.bf16.msra.mxu0 %v752
  %1090 = vmatprep.subr.bf16.mxu0 %v749
  %1091 = vmatpush1.bf16.msra.mxu0 %v748
  %1092 = vmatprep.subr.bf16.mxu0 %v745
  %1093 = vmatpush1.bf16.msra.mxu0 %v744
  %1094 = vmatprep.subr.bf16.mxu0 %v741
  %1095 = vmatpush1.bf16.msra.mxu0 %v740
  %1096 = vmatprep.subr.bf16.mxu0 %v737
  %1097 = vmatpush1.bf16.msra.mxu0 %v736
  %1098 = vmatprep.subr.bf16.mxu0 %v733
  %1099 = vmatpush1.bf16.msra.mxu0 %v732
  %1100 = vmatprep.subr.bf16.mxu0 0
  %1101 = vmatpush2.bf16.msra.mxu0 0
  %1102 = vmatprep.subr.bf16.mxu0 0
  %1103 = vmatpush2.bf16.msra.mxu0 0
  %1104 = vmatprep.subr.bf16.mxu0 0
  %1105 = vmatpush2.bf16.msra.mxu0 0
  %1106 = vmatprep.subr.bf16.mxu0 0
  %1107 = vmatpush2.bf16.msra.mxu0 0
  %1108 = vmatprep.subr.bf16.mxu0 0
  %1109 = vmatpush2.bf16.msra.mxu0 0
  %1110 = vmatprep.subr.bf16.mxu0 0
  %1111 = vmatpush2.bf16.msra.mxu0 0
  %1112 = vmatprep.subr.bf16.mxu0 0
  %1113 = vmatpush2.bf16.msra.mxu0 0
  %1114 = vmatprep.subr.bf16.mxu0 0
  %1115 = vmatpush2.bf16.msra.mxu0 0
  %1116 = vmatprep.mubr.bf16.mxu0 0
  %1117 = vmatmul.mubr.bf16.gmra.mxu0 %v1042
  %v1118 = vpop.f32.mrf.mxu0
  %v1119 = vadd.f32 0.0, %v1118
  %v1120 = vpop.f32.mrf.mxu0
  %v1121 = vadd.f32 0.0, %v1120
  %v1122 = vpop.f32.mrf.mxu0
  %v1123 = vpop.f32.mrf.mxu0
  %1124 = vdwg.mxu0
  %v1125 = vadd.f32 %v1038, %v1078
  %v1126 = vadd.f32 %v1039, %v1080
  %v1127 = vadd.f32 %v1040, %v1119
  %v1128 = vadd.f32 %v1041, %v1121
  %v1129 = vxor.u32 %v1125, 2147483648
  %v1130 = vmul.f32 %v1129, 1.442695
  %v1131 = vpow.pop %v1130
  %v1132 = vadd.f32 %v1131, 1.0
  %v1133 = vrcp.pop %v1132
  %v1134 = vmul.f32 1.0, %v1133
  %v1135 = vxor.u32 %v1126, 2147483648
  %v1136 = vmul.f32 %v1135, 1.442695
  %v1137 = vpow.pop %v1136
  %v1138 = vadd.f32 %v1137, 1.0
  %v1139 = vrcp.pop %v1138
  %v1140 = vmul.f32 1.0, %v1139
  %v1141 = vtanh.pop %v1127
  %v1142 = vxor.u32 %v1128, 2147483648
  %v1143 = vmul.f32 %v1142, 1.442695
  %v1144 = vpow.pop %v1143
  %v1145 = vadd.f32 %v1144, 1.0
  %v1146 = vrcp.pop %v1145
  %v1147 = vmul.f32 1.0, %v1146
  %v1148 = vmul.f32 %v1140, %v1034
  %v1149 = vmul.f32 %v1134, %v1141
  %v1150 = vadd.f32 %v1148, %v1149
  %v1151 = vtanh.pop %v1150
  %v1152 = vmul.f32 %v1147, %v1151
  %1153 = vst [vmem:[#allocation2] sm:$0xff] %v1152
  %1154 = vst [vmem:[#allocation3] sm:$0xff] %v1150
  %v1155 = vpack.c.bf16 %v1152, %v1152
  %s1156 = scalar_lea.vmem %s4, 8
  %1157 = vst [vmem:[%s1156] sm:$0xf] %v1155
  %v1158 = vld [vmem:[#allocation2] sm:$0xff]
  %v1159 = vld [vmem:[#allocation3] sm:$0xff]
  %s1160 = smul.u32 3, 4
  %s1161 = smul.addr %s1160, 8
  %s1162 = scalar_lea.vmem [#allocation4], %s1161
  %v1163 = vld [vmem:[%s1162] sm:$0xff]
  %v1164 = vld [vmem:[%s1162 + $0x8] sm:$0xff]
  %v1165 = vld [vmem:[%s1162 + $0x10] sm:$0xff]
  %v1166 = vld [vmem:[%s1162 + $0x18] sm:$0xff]
  %v1167 = vpack.c.bf16 %v1158, %v1158
  %1168 = vmatprep.subr.bf16.mxu0 %v759
  %1169 = vmatpush1.bf16.msra.mxu0 %v758
  %1170 = vmatprep.subr.bf16.mxu0 %v755
  %1171 = vmatpush1.bf16.msra.mxu0 %v754
  %1172 = vmatprep.subr.bf16.mxu0 %v751
  %1173 = vmatpush1.bf16.msra.mxu0 %v750
  %1174 = vmatprep.subr.bf16.mxu0 %v747
  %1175 = vmatpush1.bf16.msra.mxu0 %v746
  %1176 = vmatprep.subr.bf16.mxu0 %v743
  %1177 = vmatpush1.bf16.msra.mxu0 %v742
  %1178 = vmatprep.subr.bf16.mxu0 %v739
  %1179 = vmatpush1.bf16.msra.mxu0 %v738
  %1180 = vmatprep.subr.bf16.mxu0 %v735
  %1181 = vmatpush1.bf16.msra.mxu0 %v734
  %1182 = vmatprep.subr.bf16.mxu0 %v731
  %1183 = vmatpush1.bf16.msra.mxu0 %v730
  %1184 = vmatprep.subr.bf16.mxu0 0
  %1185 = vmatpush2.bf16.msra.mxu0 0
  %1186 = vmatprep.subr.bf16.mxu0 0
  %1187 = vmatpush2.bf16.msra.mxu0 0
  %1188 = vmatprep.subr.bf16.mxu0 0
  %1189 = vmatpush2.bf16.msra.mxu0 0
  %1190 = vmatprep.subr.bf16.mxu0 0
  %1191 = vmatpush2.bf16.msra.mxu0 0
  %1192 = vmatprep.subr.bf16.mxu0 0
  %1193 = vmatpush2.bf16.msra.mxu0 0
  %1194 = vmatprep.subr.bf16.mxu0 0
  %1195 = vmatpush2.bf16.msra.mxu0 0
  %1196 = vmatprep.subr.bf16.mxu0 0
  %1197 = vmatpush2.bf16.msra.mxu0 0
  %1198 = vmatprep.subr.bf16.mxu0 0
  %1199 = vmatpush2.bf16.msra.mxu0 0
  %1200 = vmatprep.mubr.bf16.mxu0 0
  %1201 = vmatmul.mubr.bf16.gmra.mxu0 %v1167
  %v1202 = vpop.f32.mrf.mxu0
  %v1203 = vadd.f32 0.0, %v1202
  %v1204 = vpop.f32.mrf.mxu0
  %v1205 = vadd.f32 0.0, %v1204
  %v1206 = vpop.f32.mrf.mxu0
  %v1207 = vpop.f32.mrf.mxu0
  %1208 = vdwg.mxu0
  %1209 = vmatprep.subr.bf16.mxu0 %v761
  %1210 = vmatpush1.bf16.msra.mxu0 %v760
  %1211 = vmatprep.subr.bf16.mxu0 %v757
  %1212 = vmatpush1.bf16.msra.mxu0 %v756
  %1213 = vmatprep.subr.bf16.mxu0 %v753
  %1214 = vmatpush1.bf16.msra.mxu0 %v752
  %1215 = vmatprep.subr.bf16.mxu0 %v749
  %1216 = vmatpush1.bf16.msra.mxu0 %v748
  %1217 = vmatprep.subr.bf16.mxu0 %v745
  %1218 = vmatpush1.bf16.msra.mxu0 %v744
  %1219 = vmatprep.subr.bf16.mxu0 %v741
  %1220 = vmatpush1.bf16.msra.mxu0 %v740
  %1221 = vmatprep.subr.bf16.mxu0 %v737
  %1222 = vmatpush1.bf16.msra.mxu0 %v736
  %1223 = vmatprep.subr.bf16.mxu0 %v733
  %1224 = vmatpush1.bf16.msra.mxu0 %v732
  %1225 = vmatprep.subr.bf16.mxu0 0
  %1226 = vmatpush2.bf16.msra.mxu0 0
  %1227 = vmatprep.subr.bf16.mxu0 0
  %1228 = vmatpush2.bf16.msra.mxu0 0
  %1229 = vmatprep.subr.bf16.mxu0 0
  %1230 = vmatpush2.bf16.msra.mxu0 0
  %1231 = vmatprep.subr.bf16.mxu0 0
  %1232 = vmatpush2.bf16.msra.mxu0 0
  %1233 = vmatprep.subr.bf16.mxu0 0
  %1234 = vmatpush2.bf16.msra.mxu0 0
  %1235 = vmatprep.subr.bf16.mxu0 0
  %1236 = vmatpush2.bf16.msra.mxu0 0
  %1237 = vmatprep.subr.bf16.mxu0 0
  %1238 = vmatpush2.bf16.msra.mxu0 0
  %1239 = vmatprep.subr.bf16.mxu0 0
  %1240 = vmatpush2.bf16.msra.mxu0 0
  %1241 = vmatprep.mubr.bf16.mxu0 0
  %1242 = vmatmul.mubr.bf16.gmra.mxu0 %v1167
  %v1243 = vpop.f32.mrf.mxu0
  %v1244 = vadd.f32 0.0, %v1243
  %v1245 = vpop.f32.mrf.mxu0
  %v1246 = vadd.f32 0.0, %v1245
  %v1247 = vpop.f32.mrf.mxu0
  %v1248 = vpop.f32.mrf.mxu0
  %1249 = vdwg.mxu0
  %v1250 = vadd.f32 %v1163, %v1203
  %v1251 = vadd.f32 %v1164, %v1205
  %v1252 = vadd.f32 %v1165, %v1244
  %v1253 = vadd.f32 %v1166, %v1246
  %v1254 = vxor.u32 %v1250, 2147483648
  %v1255 = vmul.f32 %v1254, 1.442695
  %v1256 = vpow.pop %v1255
  %v1257 = vadd.f32 %v1256, 1.0
  %v1258 = vrcp.pop %v1257
  %v1259 = vmul.f32 1.0, %v1258
  %v1260 = vxor.u32 %v1251, 2147483648
  %v1261 = vmul.f32 %v1260, 1.442695
  %v1262 = vpow.pop %v1261
  %v1263 = vadd.f32 %v1262, 1.0
  %v1264 = vrcp.pop %v1263
  %v1265 = vmul.f32 1.0, %v1264
  %v1266 = vtanh.pop %v1252
  %v1267 = vxor.u32 %v1253, 2147483648
  %v1268 = vmul.f32 %v1267, 1.442695
  %v1269 = vpow.pop %v1268
  %v1270 = vadd.f32 %v1269, 1.0
  %v1271 = vrcp.pop %v1270
  %v1272 = vmul.f32 1.0, %v1271
  %v1273 = vmul.f32 %v1265, %v1159
  %v1274 = vmul.f32 %v1259, %v1266
  %v1275 = vadd.f32 %v1273, %v1274
  %v1276 = vtanh.pop %v1275
  %v1277 = vmul.f32 %v1272, %v1276
  %1278 = vst [vmem:[#allocation2] sm:$0xff] %v1277
  %1279 = vst [vmem:[#allocation3] sm:$0xff] %v1275
  %v1280 = vpack.c.bf16 %v1277, %v1277
  %s1281 = scalar_lea.vmem %s4, 12
  %1282 = vst [vmem:[%s1281] sm:$0xf] %v1280
  %v1283 = vld [vmem:[#allocation2] sm:$0xff]
  %v1284 = vld [vmem:[#allocation3] sm:$0xff]
  %s1285 = smul.u32 4, 4
  %s1286 = smul.addr %s1285, 8
  %s1287 = scalar_lea.vmem [#allocation4], %s1286
  %v1288 = vld [vmem:[%s1287] sm:$0xff]
  %v1289 = vld [vmem:[%s1287 + $0x8] sm:$0xff]
  %v1290 = vld [vmem:[%s1287 + $0x10] sm:$0xff]
  %v1291 = vld [vmem:[%s1287 + $0x18] sm:$0xff]
  %v1292 = vpack.c.bf16 %v1283, %v1283
  %1293 = vmatprep.subr.bf16.mxu0 %v759
  %1294 = vmatpush1.bf16.msra.mxu0 %v758
  %1295 = vmatprep.subr.bf16.mxu0 %v755
  %1296 = vmatpush1.bf16.msra.mxu0 %v754
  %1297 = vmatprep.subr.bf16.mxu0 %v751
  %1298 = vmatpush1.bf16.msra.mxu0 %v750
  %1299 = vmatprep.subr.bf16.mxu0 %v747
  %1300 = vmatpush1.bf16.msra.mxu0 %v746
  %1301 = vmatprep.subr.bf16.mxu0 %v743
  %1302 = vmatpush1.bf16.msra.mxu0 %v742
  %1303 = vmatprep.subr.bf16.mxu0 %v739
  %1304 = vmatpush1.bf16.msra.mxu0 %v738
  %1305 = vmatprep.subr.bf16.mxu0 %v735
  %1306 = vmatpush1.bf16.msra.mxu0 %v734
  %1307 = vmatprep.subr.bf16.mxu0 %v731
  %1308 = vmatpush1.bf16.msra.mxu0 %v730
  %1309 = vmatprep.subr.bf16.mxu0 0
  %1310 = vmatpush2.bf16.msra.mxu0 0
  %1311 = vmatprep.subr.bf16.mxu0 0
  %1312 = vmatpush2.bf16.msra.mxu0 0
  %1313 = vmatprep.subr.bf16.mxu0 0
  %1314 = vmatpush2.bf16.msra.mxu0 0
  %1315 = vmatprep.subr.bf16.mxu0 0
  %1316 = vmatpush2.bf16.msra.mxu0 0
  %1317 = vmatprep.subr.bf16.mxu0 0
  %1318 = vmatpush2.bf16.msra.mxu0 0
  %1319 = vmatprep.subr.bf16.mxu0 0
  %1320 = vmatpush2.bf16.msra.mxu0 0
  %1321 = vmatprep.subr.bf16.mxu0 0
  %1322 = vmatpush2.bf16.msra.mxu0 0
  %1323 = vmatprep.subr.bf16.mxu0 0
  %1324 = vmatpush2.bf16.msra.mxu0 0
  %1325 = vmatprep.mubr.bf16.mxu0 0
  %1326 = vmatmul.mubr.bf16.gmra.mxu0 %v1292
  %v1327 = vpop.f32.mrf.mxu0
  %v1328 = vadd.f32 0.0, %v1327
  %v1329 = vpop.f32.mrf.mxu0
  %v1330 = vadd.f32 0.0, %v1329
  %v1331 = vpop.f32.mrf.mxu0
  %v1332 = vpop.f32.mrf.mxu0
  %1333 = vdwg.mxu0
  %1334 = vmatprep.subr.bf16.mxu0 %v761
  %1335 = vmatpush1.bf16.msra.mxu0 %v760
  %1336 = vmatprep.subr.bf16.mxu0 %v757
  %1337 = vmatpush1.bf16.msra.mxu0 %v756
  %1338 = vmatprep.subr.bf16.mxu0 %v753
  %1339 = vmatpush1.bf16.msra.mxu0 %v752
  %1340 = vmatprep.subr.bf16.mxu0 %v749
  %1341 = vmatpush1.bf16.msra.mxu0 %v748
  %1342 = vmatprep.subr.bf16.mxu0 %v745
  %1343 = vmatpush1.bf16.msra.mxu0 %v744
  %1344 = vmatprep.subr.bf16.mxu0 %v741
  %1345 = vmatpush1.bf16.msra.mxu0 %v740
  %1346 = vmatprep.subr.bf16.mxu0 %v737
  %1347 = vmatpush1.bf16.msra.mxu0 %v736
  %1348 = vmatprep.subr.bf16.mxu0 %v733
  %1349 = vmatpush1.bf16.msra.mxu0 %v732
  %1350 = vmatprep.subr.bf16.mxu0 0
  %1351 = vmatpush2.bf16.msra.mxu0 0
  %1352 = vmatprep.subr.bf16.mxu0 0
  %1353 = vmatpush2.bf16.msra.mxu0 0
  %1354 = vmatprep.subr.bf16.mxu0 0
  %1355 = vmatpush2.bf16.msra.mxu0 0
  %1356 = vmatprep.subr.bf16.mxu0 0
  %1357 = vmatpush2.bf16.msra.mxu0 0
  %1358 = vmatprep.subr.bf16.mxu0 0
  %1359 = vmatpush2.bf16.msra.mxu0 0
  %1360 = vmatprep.subr.bf16.mxu0 0
  %1361 = vmatpush2.bf16.msra.mxu0 0
  %1362 = vmatprep.subr.bf16.mxu0 0
  %1363 = vmatpush2.bf16.msra.mxu0 0
  %1364 = vmatprep.subr.bf16.mxu0 0
  %1365 = vmatpush2.bf16.msra.mxu0 0
  %1366 = vmatprep.mubr.bf16.mxu0 0
  %1367 = vmatmul.mubr.bf16.gmra.mxu0 %v1292
  %v1368 = vpop.f32.mrf.mxu0
  %v1369 = vadd.f32 0.0, %v1368
  %v1370 = vpop.f32.mrf.mxu0
  %v1371 = vadd.f32 0.0, %v1370
  %v1372 = vpop.f32.mrf.mxu0
  %v1373 = vpop.f32.mrf.mxu0
  %1374 = vdwg.mxu0
  %v1375 = vadd.f32 %v1288, %v1328
  %v1376 = vadd.f32 %v1289, %v1330
  %v1377 = vadd.f32 %v1290, %v1369
  %v1378 = vadd.f32 %v1291, %v1371
  %v1379 = vxor.u32 %v1375, 2147483648
  %v1380 = vmul.f32 %v1379, 1.442695
  %v1381 = vpow.pop %v1380
  %v1382 = vadd.f32 %v1381, 1.0
  %v1383 = vrcp.pop %v1382
  %v1384 = vmul.f32 1.0, %v1383
  %v1385 = vxor.u32 %v1376, 2147483648
  %v1386 = vmul.f32 %v1385, 1.442695
  %v1387 = vpow.pop %v1386
  %v1388 = vadd.f32 %v1387, 1.0
  %v1389 = vrcp.pop %v1388
  %v1390 = vmul.f32 1.0, %v1389
  %v1391 = vtanh.pop %v1377
  %v1392 = vxor.u32 %v1378, 2147483648
  %v1393 = vmul.f32 %v1392, 1.442695
  %v1394 = vpow.pop %v1393
  %v1395 = vadd.f32 %v1394, 1.0
  %v1396 = vrcp.pop %v1395
  %v1397 = vmul.f32 1.0, %v1396
  %v1398 = vmul.f32 %v1390, %v1284
  %v1399 = vmul.f32 %v1384, %v1391
  %v1400 = vadd.f32 %v1398, %v1399
  %v1401 = vtanh.pop %v1400
  %v1402 = vmul.f32 %v1397, %v1401
  %1403 = vst [vmem:[#allocation2] sm:$0xff] %v1402
  %1404 = vst [vmem:[#allocation3] sm:$0xff] %v1400
  %v1405 = vpack.c.bf16 %v1402, %v1402
  %s1406 = scalar_lea.vmem %s4, 16
  %1407 = vst [vmem:[%s1406] sm:$0xf] %v1405
  %v1408 = vld [vmem:[#allocation2] sm:$0xff]
  %v1409 = vld [vmem:[#allocation3] sm:$0xff]
  %s1410 = smul.u32 5, 4
  %s1411 = smul.addr %s1410, 8
  %s1412 = scalar_lea.vmem [#allocation4], %s1411
  %v1413 = vld [vmem:[%s1412] sm:$0xff]
  %v1414 = vld [vmem:[%s1412 + $0x8] sm:$0xff]
  %v1415 = vld [vmem:[%s1412 + $0x10] sm:$0xff]
  %v1416 = vld [vmem:[%s1412 + $0x18] sm:$0xff]
  %v1417 = vpack.c.bf16 %v1408, %v1408
  %1418 = vmatprep.subr.bf16.mxu0 %v759
  %1419 = vmatpush1.bf16.msra.mxu0 %v758
  %1420 = vmatprep.subr.bf16.mxu0 %v755
  %1421 = vmatpush1.bf16.msra.mxu0 %v754
  %1422 = vmatprep.subr.bf16.mxu0 %v751
  %1423 = vmatpush1.bf16.msra.mxu0 %v750
  %1424 = vmatprep.subr.bf16.mxu0 %v747
  %1425 = vmatpush1.bf16.msra.mxu0 %v746
  %1426 = vmatprep.subr.bf16.mxu0 %v743
  %1427 = vmatpush1.bf16.msra.mxu0 %v742
  %1428 = vmatprep.subr.bf16.mxu0 %v739
  %1429 = vmatpush1.bf16.msra.mxu0 %v738
  %1430 = vmatprep.subr.bf16.mxu0 %v735
  %1431 = vmatpush1.bf16.msra.mxu0 %v734
  %1432 = vmatprep.subr.bf16.mxu0 %v731
  %1433 = vmatpush1.bf16.msra.mxu0 %v730
  %1434 = vmatprep.subr.bf16.mxu0 0
  %1435 = vmatpush2.bf16.msra.mxu0 0
  %1436 = vmatprep.subr.bf16.mxu0 0
  %1437 = vmatpush2.bf16.msra.mxu0 0
  %1438 = vmatprep.subr.bf16.mxu0 0
  %1439 = vmatpush2.bf16.msra.mxu0 0
  %1440 = vmatprep.subr.bf16.mxu0 0
  %1441 = vmatpush2.bf16.msra.mxu0 0
  %1442 = vmatprep.subr.bf16.mxu0 0
  %1443 = vmatpush2.bf16.msra.mxu0 0
  %1444 = vmatprep.subr.bf16.mxu0 0
  %1445 = vmatpush2.bf16.msra.mxu0 0
  %1446 = vmatprep.subr.bf16.mxu0 0
  %1447 = vmatpush2.bf16.msra.mxu0 0
  %1448 = vmatprep.subr.bf16.mxu0 0
  %1449 = vmatpush2.bf16.msra.mxu0 0
  %1450 = vmatprep.mubr.bf16.mxu0 0
  %1451 = vmatmul.mubr.bf16.gmra.mxu0 %v1417
  %v1452 = vpop.f32.mrf.mxu0
  %v1453 = vadd.f32 0.0, %v1452
  %v1454 = vpop.f32.mrf.mxu0
  %v1455 = vadd.f32 0.0, %v1454
  %v1456 = vpop.f32.mrf.mxu0
  %v1457 = vpop.f32.mrf.mxu0
  %1458 = vdwg.mxu0
  %1459 = vmatprep.subr.bf16.mxu0 %v761
  %1460 = vmatpush1.bf16.msra.mxu0 %v760
  %1461 = vmatprep.subr.bf16.mxu0 %v757
  %1462 = vmatpush1.bf16.msra.mxu0 %v756
  %1463 = vmatprep.subr.bf16.mxu0 %v753
  %1464 = vmatpush1.bf16.msra.mxu0 %v752
  %1465 = vmatprep.subr.bf16.mxu0 %v749
  %1466 = vmatpush1.bf16.msra.mxu0 %v748
  %1467 = vmatprep.subr.bf16.mxu0 %v745
  %1468 = vmatpush1.bf16.msra.mxu0 %v744
  %1469 = vmatprep.subr.bf16.mxu0 %v741
  %1470 = vmatpush1.bf16.msra.mxu0 %v740
  %1471 = vmatprep.subr.bf16.mxu0 %v737
  %1472 = vmatpush1.bf16.msra.mxu0 %v736
  %1473 = vmatprep.subr.bf16.mxu0 %v733
  %1474 = vmatpush1.bf16.msra.mxu0 %v732
  %1475 = vmatprep.subr.bf16.mxu0 0
  %1476 = vmatpush2.bf16.msra.mxu0 0
  %1477 = vmatprep.subr.bf16.mxu0 0
  %1478 = vmatpush2.bf16.msra.mxu0 0
  %1479 = vmatprep.subr.bf16.mxu0 0
  %1480 = vmatpush2.bf16.msra.mxu0 0
  %1481 = vmatprep.subr.bf16.mxu0 0
  %1482 = vmatpush2.bf16.msra.mxu0 0
  %1483 = vmatprep.subr.bf16.mxu0 0
  %1484 = vmatpush2.bf16.msra.mxu0 0
  %1485 = vmatprep.subr.bf16.mxu0 0
  %1486 = vmatpush2.bf16.msra.mxu0 0
  %1487 = vmatprep.subr.bf16.mxu0 0
  %1488 = vmatpush2.bf16.msra.mxu0 0
  %1489 = vmatprep.subr.bf16.mxu0 0
  %1490 = vmatpush2.bf16.msra.mxu0 0
  %1491 = vmatprep.mubr.bf16.mxu0 0
  %1492 = vmatmul.mubr.bf16.gmra.mxu0 %v1417
  %v1493 = vpop.f32.mrf.mxu0
  %v1494 = vadd.f32 0.0, %v1493
  %v1495 = vpop.f32.mrf.mxu0
  %v1496 = vadd.f32 0.0, %v1495
  %v1497 = vpop.f32.mrf.mxu0
  %v1498 = vpop.f32.mrf.mxu0
  %1499 = vdwg.mxu0
  %v1500 = vadd.f32 %v1413, %v1453
  %v1501 = vadd.f32 %v1414, %v1455
  %v1502 = vadd.f32 %v1415, %v1494
  %v1503 = vadd.f32 %v1416, %v1496
  %v1504 = vxor.u32 %v1500, 2147483648
  %v1505 = vmul.f32 %v1504, 1.442695
  %v1506 = vpow.pop %v1505
  %v1507 = vadd.f32 %v1506, 1.0
  %v1508 = vrcp.pop %v1507
  %v1509 = vmul.f32 1.0, %v1508
  %v1510 = vxor.u32 %v1501, 2147483648
  %v1511 = vmul.f32 %v1510, 1.442695
  %v1512 = vpow.pop %v1511
  %v1513 = vadd.f32 %v1512, 1.0
  %v1514 = vrcp.pop %v1513
  %v1515 = vmul.f32 1.0, %v1514
  %v1516 = vtanh.pop %v1502
  %v1517 = vxor.u32 %v1503, 2147483648
  %v1518 = vmul.f32 %v1517, 1.442695
  %v1519 = vpow.pop %v1518
  %v1520 = vadd.f32 %v1519, 1.0
  %v1521 = vrcp.pop %v1520
  %v1522 = vmul.f32 1.0, %v1521
  %v1523 = vmul.f32 %v1515, %v1409
  %v1524 = vmul.f32 %v1509, %v1516
  %v1525 = vadd.f32 %v1523, %v1524
  %v1526 = vtanh.pop %v1525
  %v1527 = vmul.f32 %v1522, %v1526
  %1528 = vst [vmem:[#allocation2] sm:$0xff] %v1527
  %1529 = vst [vmem:[#allocation3] sm:$0xff] %v1525
  %v1530 = vpack.c.bf16 %v1527, %v1527
  %s1531 = scalar_lea.vmem %s4, 20
  %1532 = vst [vmem:[%s1531] sm:$0xf] %v1530
  %v1533 = vld [vmem:[#allocation2] sm:$0xff]
  %v1534 = vld [vmem:[#allocation3] sm:$0xff]
  %s1535 = smul.u32 6, 4
  %s1536 = smul.addr %s1535, 8
  %s1537 = scalar_lea.vmem [#allocation4], %s1536
  %v1538 = vld [vmem:[%s1537] sm:$0xff]
  %v1539 = vld [vmem:[%s1537 + $0x8] sm:$0xff]
  %v1540 = vld [vmem:[%s1537 + $0x10] sm:$0xff]
  %v1541 = vld [vmem:[%s1537 + $0x18] sm:$0xff]
  %v1542 = vpack.c.bf16 %v1533, %v1533
  %1543 = vmatprep.subr.bf16.mxu0 %v759
  %1544 = vmatpush1.bf16.msra.mxu0 %v758
  %1545 = vmatprep.subr.bf16.mxu0 %v755
  %1546 = vmatpush1.bf16.msra.mxu0 %v754
  %1547 = vmatprep.subr.bf16.mxu0 %v751
  %1548 = vmatpush1.bf16.msra.mxu0 %v750
  %1549 = vmatprep.subr.bf16.mxu0 %v747
  %1550 = vmatpush1.bf16.msra.mxu0 %v746
  %1551 = vmatprep.subr.bf16.mxu0 %v743
  %1552 = vmatpush1.bf16.msra.mxu0 %v742
  %1553 = vmatprep.subr.bf16.mxu0 %v739
  %1554 = vmatpush1.bf16.msra.mxu0 %v738
  %1555 = vmatprep.subr.bf16.mxu0 %v735
  %1556 = vmatpush1.bf16.msra.mxu0 %v734
  %1557 = vmatprep.subr.bf16.mxu0 %v731
  %1558 = vmatpush1.bf16.msra.mxu0 %v730
  %1559 = vmatprep.subr.bf16.mxu0 0
  %1560 = vmatpush2.bf16.msra.mxu0 0
  %1561 = vmatprep.subr.bf16.mxu0 0
  %1562 = vmatpush2.bf16.msra.mxu0 0
  %1563 = vmatprep.subr.bf16.mxu0 0
  %1564 = vmatpush2.bf16.msra.mxu0 0
  %1565 = vmatprep.subr.bf16.mxu0 0
  %1566 = vmatpush2.bf16.msra.mxu0 0
  %1567 = vmatprep.subr.bf16.mxu0 0
  %1568 = vmatpush2.bf16.msra.mxu0 0
  %1569 = vmatprep.subr.bf16.mxu0 0
  %1570 = vmatpush2.bf16.msra.mxu0 0
  %1571 = vmatprep.subr.bf16.mxu0 0
  %1572 = vmatpush2.bf16.msra.mxu0 0
  %1573 = vmatprep.subr.bf16.mxu0 0
  %1574 = vmatpush2.bf16.msra.mxu0 0
  %1575 = vmatprep.mubr.bf16.mxu0 0
  %1576 = vmatmul.mubr.bf16.gmra.mxu0 %v1542
  %v1577 = vpop.f32.mrf.mxu0
  %v1578 = vadd.f32 0.0, %v1577
  %v1579 = vpop.f32.mrf.mxu0
  %v1580 = vadd.f32 0.0, %v1579
  %v1581 = vpop.f32.mrf.mxu0
  %v1582 = vpop.f32.mrf.mxu0
  %1583 = vdwg.mxu0
  %1584 = vmatprep.subr.bf16.mxu0 %v761
  %1585 = vmatpush1.bf16.msra.mxu0 %v760
  %1586 = vmatprep.subr.bf16.mxu0 %v757
  %1587 = vmatpush1.bf16.msra.mxu0 %v756
  %1588 = vmatprep.subr.bf16.mxu0 %v753
  %1589 = vmatpush1.bf16.msra.mxu0 %v752
  %1590 = vmatprep.subr.bf16.mxu0 %v749
  %1591 = vmatpush1.bf16.msra.mxu0 %v748
  %1592 = vmatprep.subr.bf16.mxu0 %v745
  %1593 = vmatpush1.bf16.msra.mxu0 %v744
  %1594 = vmatprep.subr.bf16.mxu0 %v741
  %1595 = vmatpush1.bf16.msra.mxu0 %v740
  %1596 = vmatprep.subr.bf16.mxu0 %v737
  %1597 = vmatpush1.bf16.msra.mxu0 %v736
  %1598 = vmatprep.subr.bf16.mxu0 %v733
  %1599 = vmatpush1.bf16.msra.mxu0 %v732
  %1600 = vmatprep.subr.bf16.mxu0 0
  %1601 = vmatpush2.bf16.msra.mxu0 0
  %1602 = vmatprep.subr.bf16.mxu0 0
  %1603 = vmatpush2.bf16.msra.mxu0 0
  %1604 = vmatprep.subr.bf16.mxu0 0
  %1605 = vmatpush2.bf16.msra.mxu0 0
  %1606 = vmatprep.subr.bf16.mxu0 0
  %1607 = vmatpush2.bf16.msra.mxu0 0
  %1608 = vmatprep.subr.bf16.mxu0 0
  %1609 = vmatpush2.bf16.msra.mxu0 0
  %1610 = vmatprep.subr.bf16.mxu0 0
  %1611 = vmatpush2.bf16.msra.mxu0 0
  %1612 = vmatprep.subr.bf16.mxu0 0
  %1613 = vmatpush2.bf16.msra.mxu0 0
  %1614 = vmatprep.subr.bf16.mxu0 0
  %1615 = vmatpush2.bf16.msra.mxu0 0
  %1616 = vmatprep.mubr.bf16.mxu0 0
  %1617 = vmatmul.mubr.bf16.gmra.mxu0 %v1542
  %v1618 = vpop.f32.mrf.mxu0
  %v1619 = vadd.f32 0.0, %v1618
  %v1620 = vpop.f32.mrf.mxu0
  %v1621 = vadd.f32 0.0, %v1620
  %v1622 = vpop.f32.mrf.mxu0
  %v1623 = vpop.f32.mrf.mxu0
  %1624 = vdwg.mxu0
  %v1625 = vadd.f32 %v1538, %v1578
  %v1626 = vadd.f32 %v1539, %v1580
  %v1627 = vadd.f32 %v1540, %v1619
  %v1628 = vadd.f32 %v1541, %v1621
  %v1629 = vxor.u32 %v1625, 2147483648
  %v1630 = vmul.f32 %v1629, 1.442695
  %v1631 = vpow.pop %v1630
  %v1632 = vadd.f32 %v1631, 1.0
  %v1633 = vrcp.pop %v1632
  %v1634 = vmul.f32 1.0, %v1633
  %v1635 = vxor.u32 %v1626, 2147483648
  %v1636 = vmul.f32 %v1635, 1.442695
  %v1637 = vpow.pop %v1636
  %v1638 = vadd.f32 %v1637, 1.0
  %v1639 = vrcp.pop %v1638
  %v1640 = vmul.f32 1.0, %v1639
  %v1641 = vtanh.pop %v1627
  %v1642 = vxor.u32 %v1628, 2147483648
  %v1643 = vmul.f32 %v1642, 1.442695
  %v1644 = vpow.pop %v1643
  %v1645 = vadd.f32 %v1644, 1.0
  %v1646 = vrcp.pop %v1645
  %v1647 = vmul.f32 1.0, %v1646
  %v1648 = vmul.f32 %v1640, %v1534
  %v1649 = vmul.f32 %v1634, %v1641
  %v1650 = vadd.f32 %v1648, %v1649
  %v1651 = vtanh.pop %v1650
  %v1652 = vmul.f32 %v1647, %v1651
  %1653 = vst [vmem:[#allocation2] sm:$0xff] %v1652
  %1654 = vst [vmem:[#allocation3] sm:$0xff] %v1650
  %v1655 = vpack.c.bf16 %v1652, %v1652
  %s1656 = scalar_lea.vmem %s4, 24
  %1657 = vst [vmem:[%s1656] sm:$0xf] %v1655
  %v1658 = vld [vmem:[#allocation2] sm:$0xff]
  %v1659 = vld [vmem:[#allocation3] sm:$0xff]
  %s1660 = smul.u32 7, 4
  %s1661 = smul.addr %s1660, 8
  %s1662 = scalar_lea.vmem [#allocation4], %s1661
  %v1663 = vld [vmem:[%s1662] sm:$0xff]
  %v1664 = vld [vmem:[%s1662 + $0x8] sm:$0xff]
  %v1665 = vld [vmem:[%s1662 + $0x10] sm:$0xff]
  %v1666 = vld [vmem:[%s1662 + $0x18] sm:$0xff]
  %v1667 = vpack.c.bf16 %v1658, %v1658
  %1668 = vmatprep.subr.bf16.mxu0 %v759
  %1669 = vmatpush1.bf16.msra.mxu0 %v758
  %1670 = vmatprep.subr.bf16.mxu0 %v755
  %1671 = vmatpush1.bf16.msra.mxu0 %v754
  %1672 = vmatprep.subr.bf16.mxu0 %v751
  %1673 = vmatpush1.bf16.msra.mxu0 %v750
  %1674 = vmatprep.subr.bf16.mxu0 %v747
  %1675 = vmatpush1.bf16.msra.mxu0 %v746
  %1676 = vmatprep.subr.bf16.mxu0 %v743
  %1677 = vmatpush1.bf16.msra.mxu0 %v742
  %1678 = vmatprep.subr.bf16.mxu0 %v739
  %1679 = vmatpush1.bf16.msra.mxu0 %v738
  %1680 = vmatprep.subr.bf16.mxu0 %v735
  %1681 = vmatpush1.bf16.msra.mxu0 %v734
  %1682 = vmatprep.subr.bf16.mxu0 %v731
  %1683 = vmatpush1.bf16.msra.mxu0 %v730
  %1684 = vmatprep.subr.bf16.mxu0 0
  %1685 = vmatpush2.bf16.msra.mxu0 0
  %1686 = vmatprep.subr.bf16.mxu0 0
  %1687 = vmatpush2.bf16.msra.mxu0 0
  %1688 = vmatprep.subr.bf16.mxu0 0
  %1689 = vmatpush2.bf16.msra.mxu0 0
  %1690 = vmatprep.subr.bf16.mxu0 0
  %1691 = vmatpush2.bf16.msra.mxu0 0
  %1692 = vmatprep.subr.bf16.mxu0 0
  %1693 = vmatpush2.bf16.msra.mxu0 0
  %1694 = vmatprep.subr.bf16.mxu0 0
  %1695 = vmatpush2.bf16.msra.mxu0 0
  %1696 = vmatprep.subr.bf16.mxu0 0
  %1697 = vmatpush2.bf16.msra.mxu0 0
  %1698 = vmatprep.subr.bf16.mxu0 0
  %1699 = vmatpush2.bf16.msra.mxu0 0
  %1700 = vmatprep.mubr.bf16.mxu0 0
  %1701 = vmatmul.mubr.bf16.gmra.mxu0 %v1667
  %v1702 = vpop.f32.mrf.mxu0
  %v1703 = vadd.f32 0.0, %v1702
  %v1704 = vpop.f32.mrf.mxu0
  %v1705 = vadd.f32 0.0, %v1704
  %v1706 = vpop.f32.mrf.mxu0
  %v1707 = vpop.f32.mrf.mxu0
  %1708 = vdwg.mxu0
  %1709 = vmatprep.subr.bf16.mxu0 %v761
  %1710 = vmatpush1.bf16.msra.mxu0 %v760
  %1711 = vmatprep.subr.bf16.mxu0 %v757
  %1712 = vmatpush1.bf16.msra.mxu0 %v756
  %1713 = vmatprep.subr.bf16.mxu0 %v753
  %1714 = vmatpush1.bf16.msra.mxu0 %v752
  %1715 = vmatprep.subr.bf16.mxu0 %v749
  %1716 = vmatpush1.bf16.msra.mxu0 %v748
  %1717 = vmatprep.subr.bf16.mxu0 %v745
  %1718 = vmatpush1.bf16.msra.mxu0 %v744
  %1719 = vmatprep.subr.bf16.mxu0 %v741
  %1720 = vmatpush1.bf16.msra.mxu0 %v740
  %1721 = vmatprep.subr.bf16.mxu0 %v737
  %1722 = vmatpush1.bf16.msra.mxu0 %v736
  %1723 = vmatprep.subr.bf16.mxu0 %v733
  %1724 = vmatpush1.bf16.msra.mxu0 %v732
  %1725 = vmatprep.subr.bf16.mxu0 0
  %1726 = vmatpush2.bf16.msra.mxu0 0
  %1727 = vmatprep.subr.bf16.mxu0 0
  %1728 = vmatpush2.bf16.msra.mxu0 0
  %1729 = vmatprep.subr.bf16.mxu0 0
  %1730 = vmatpush2.bf16.msra.mxu0 0
  %1731 = vmatprep.subr.bf16.mxu0 0
  %1732 = vmatpush2.bf16.msra.mxu0 0
  %1733 = vmatprep.subr.bf16.mxu0 0
  %1734 = vmatpush2.bf16.msra.mxu0 0
  %1735 = vmatprep.subr.bf16.mxu0 0
  %1736 = vmatpush2.bf16.msra.mxu0 0
  %1737 = vmatprep.subr.bf16.mxu0 0
  %1738 = vmatpush2.bf16.msra.mxu0 0
  %1739 = vmatprep.subr.bf16.mxu0 0
  %1740 = vmatpush2.bf16.msra.mxu0 0
  %1741 = vmatprep.mubr.bf16.mxu0 0
  %1742 = vmatmul.mubr.bf16.gmra.mxu0 %v1667
  %v1743 = vpop.f32.mrf.mxu0
  %v1744 = vadd.f32 0.0, %v1743
  %v1745 = vpop.f32.mrf.mxu0
  %v1746 = vadd.f32 0.0, %v1745
  %v1747 = vpop.f32.mrf.mxu0
  %v1748 = vpop.f32.mrf.mxu0
  %1749 = vdwg.mxu0
  %v1750 = vadd.f32 %v1663, %v1703
  %v1751 = vadd.f32 %v1664, %v1705
  %v1752 = vadd.f32 %v1665, %v1744
  %v1753 = vadd.f32 %v1666, %v1746
  %v1754 = vxor.u32 %v1750, 2147483648
  %v1755 = vmul.f32 %v1754, 1.442695
  %v1756 = vpow.pop %v1755
  %v1757 = vadd.f32 %v1756, 1.0
  %v1758 = vrcp.pop %v1757
  %v1759 = vmul.f32 1.0, %v1758
  %v1760 = vxor.u32 %v1751, 2147483648
  %v1761 = vmul.f32 %v1760, 1.442695
  %v1762 = vpow.pop %v1761
  %v1763 = vadd.f32 %v1762, 1.0
  %v1764 = vrcp.pop %v1763
  %v1765 = vmul.f32 1.0, %v1764
  %v1766 = vtanh.pop %v1752
  %v1767 = vxor.u32 %v1753, 2147483648
  %v1768 = vmul.f32 %v1767, 1.442695
  %v1769 = vpow.pop %v1768
  %v1770 = vadd.f32 %v1769, 1.0
  %v1771 = vrcp.pop %v1770
  %v1772 = vmul.f32 1.0, %v1771
  %v1773 = vmul.f32 %v1765, %v1659
  %v1774 = vmul.f32 %v1759, %v1766
  %v1775 = vadd.f32 %v1773, %v1774
  %v1776 = vtanh.pop %v1775
  %v1777 = vmul.f32 %v1772, %v1776
  %1778 = vst [vmem:[#allocation2] sm:$0xff] %v1777
  %1779 = vst [vmem:[#allocation3] sm:$0xff] %v1775
  %v1780 = vpack.c.bf16 %v1777, %v1777
  %s1781 = scalar_lea.vmem %s4, 28
  %1782 = vst [vmem:[%s1781] sm:$0xf] %v1780
  %v1783 = vld [vmem:[#allocation2] sm:$0xff]
  %v1784 = vld [vmem:[#allocation3] sm:$0xff]
  %s1785 = smul.u32 8, 4
  %s1786 = smul.addr %s1785, 8
  %s1787 = scalar_lea.vmem [#allocation4], %s1786
  %v1788 = vld [vmem:[%s1787] sm:$0xff]
  %v1789 = vld [vmem:[%s1787 + $0x8] sm:$0xff]
  %v1790 = vld [vmem:[%s1787 + $0x10] sm:$0xff]
  %v1791 = vld [vmem:[%s1787 + $0x18] sm:$0xff]
  %v1792 = vpack.c.bf16 %v1783, %v1783
  %1793 = vmatprep.subr.bf16.mxu0 %v759
  %1794 = vmatpush1.bf16.msra.mxu0 %v758
  %1795 = vmatprep.subr.bf16.mxu0 %v755
  %1796 = vmatpush1.bf16.msra.mxu0 %v754
  %1797 = vmatprep.subr.bf16.mxu0 %v751
  %1798 = vmatpush1.bf16.msra.mxu0 %v750
  %1799 = vmatprep.subr.bf16.mxu0 %v747
  %1800 = vmatpush1.bf16.msra.mxu0 %v746
  %1801 = vmatprep.subr.bf16.mxu0 %v743
  %1802 = vmatpush1.bf16.msra.mxu0 %v742
  %1803 = vmatprep.subr.bf16.mxu0 %v739
  %1804 = vmatpush1.bf16.msra.mxu0 %v738
  %1805 = vmatprep.subr.bf16.mxu0 %v735
  %1806 = vmatpush1.bf16.msra.mxu0 %v734
  %1807 = vmatprep.subr.bf16.mxu0 %v731
  %1808 = vmatpush1.bf16.msra.mxu0 %v730
  %1809 = vmatprep.subr.bf16.mxu0 0
  %1810 = vmatpush2.bf16.msra.mxu0 0
  %1811 = vmatprep.subr.bf16.mxu0 0
  %1812 = vmatpush2.bf16.msra.mxu0 0
  %1813 = vmatprep.subr.bf16.mxu0 0
  %1814 = vmatpush2.bf16.msra.mxu0 0
  %1815 = vmatprep.subr.bf16.mxu0 0
  %1816 = vmatpush2.bf16.msra.mxu0 0
  %1817 = vmatprep.subr.bf16.mxu0 0
  %1818 = vmatpush2.bf16.msra.mxu0 0
  %1819 = vmatprep.subr.bf16.mxu0 0
  %1820 = vmatpush2.bf16.msra.mxu0 0
  %1821 = vmatprep.subr.bf16.mxu0 0
  %1822 = vmatpush2.bf16.msra.mxu0 0
  %1823 = vmatprep.subr.bf16.mxu0 0
  %1824 = vmatpush2.bf16.msra.mxu0 0
  %1825 = vmatprep.mubr.bf16.mxu0 0
  %1826 = vmatmul.mubr.bf16.gmra.mxu0 %v1792
  %v1827 = vpop.f32.mrf.mxu0
  %v1828 = vadd.f32 0.0, %v1827
  %v1829 = vpop.f32.mrf.mxu0
  %v1830 = vadd.f32 0.0, %v1829
  %v1831 = vpop.f32.mrf.mxu0
  %v1832 = vpop.f32.mrf.mxu0
  %1833 = vdwg.mxu0
  %1834 = vmatprep.subr.bf16.mxu0 %v761
  %1835 = vmatpush1.bf16.msra.mxu0 %v760
  %1836 = vmatprep.subr.bf16.mxu0 %v757
  %1837 = vmatpush1.bf16.msra.mxu0 %v756
  %1838 = vmatprep.subr.bf16.mxu0 %v753
  %1839 = vmatpush1.bf16.msra.mxu0 %v752
  %1840 = vmatprep.subr.bf16.mxu0 %v749
  %1841 = vmatpush1.bf16.msra.mxu0 %v748
  %1842 = vmatprep.subr.bf16.mxu0 %v745
  %1843 = vmatpush1.bf16.msra.mxu0 %v744
  %1844 = vmatprep.subr.bf16.mxu0 %v741
  %1845 = vmatpush1.bf16.msra.mxu0 %v740
  %1846 = vmatprep.subr.bf16.mxu0 %v737
  %1847 = vmatpush1.bf16.msra.mxu0 %v736
  %1848 = vmatprep.subr.bf16.mxu0 %v733
  %1849 = vmatpush1.bf16.msra.mxu0 %v732
  %1850 = vmatprep.subr.bf16.mxu0 0
  %1851 = vmatpush2.bf16.msra.mxu0 0
  %1852 = vmatprep.subr.bf16.mxu0 0
  %1853 = vmatpush2.bf16.msra.mxu0 0
  %1854 = vmatprep.subr.bf16.mxu0 0
  %1855 = vmatpush2.bf16.msra.mxu0 0
  %1856 = vmatprep.subr.bf16.mxu0 0
  %1857 = vmatpush2.bf16.msra.mxu0 0
  %1858 = vmatprep.subr.bf16.mxu0 0
  %1859 = vmatpush2.bf16.msra.mxu0 0
  %1860 = vmatprep.subr.bf16.mxu0 0
  %1861 = vmatpush2.bf16.msra.mxu0 0
  %1862 = vmatprep.subr.bf16.mxu0 0
  %1863 = vmatpush2.bf16.msra.mxu0 0
  %1864 = vmatprep.subr.bf16.mxu0 0
  %1865 = vmatpush2.bf16.msra.mxu0 0
  %1866 = vmatprep.mubr.bf16.mxu0 0
  %1867 = vmatmul.mubr.bf16.gmra.mxu0 %v1792
  %v1868 = vpop.f32.mrf.mxu0
  %v1869 = vadd.f32 0.0, %v1868
  %v1870 = vpop.f32.mrf.mxu0
  %v1871 = vadd.f32 0.0, %v1870
  %v1872 = vpop.f32.mrf.mxu0
  %v1873 = vpop.f32.mrf.mxu0
  %1874 = vdwg.mxu0
  %v1875 = vadd.f32 %v1788, %v1828
  %v1876 = vadd.f32 %v1789, %v1830
  %v1877 = vadd.f32 %v1790, %v1869
  %v1878 = vadd.f32 %v1791, %v1871
  %v1879 = vxor.u32 %v1875, 2147483648
  %v1880 = vmul.f32 %v1879, 1.442695
  %v1881 = vpow.pop %v1880
  %v1882 = vadd.f32 %v1881, 1.0
  %v1883 = vrcp.pop %v1882
  %v1884 = vmul.f32 1.0, %v1883
  %v1885 = vxor.u32 %v1876, 2147483648
  %v1886 = vmul.f32 %v1885, 1.442695
  %v1887 = vpow.pop %v1886
  %v1888 = vadd.f32 %v1887, 1.0
  %v1889 = vrcp.pop %v1888
  %v1890 = vmul.f32 1.0, %v1889
  %v1891 = vtanh.pop %v1877
  %v1892 = vxor.u32 %v1878, 2147483648
  %v1893 = vmul.f32 %v1892, 1.442695
  %v1894 = vpow.pop %v1893
  %v1895 = vadd.f32 %v1894, 1.0
  %v1896 = vrcp.pop %v1895
  %v1897 = vmul.f32 1.0, %v1896
  %v1898 = vmul.f32 %v1890, %v1784
  %v1899 = vmul.f32 %v1884, %v1891
  %v1900 = vadd.f32 %v1898, %v1899
  %v1901 = vtanh.pop %v1900
  %v1902 = vmul.f32 %v1897, %v1901
  %1903 = vst [vmem:[#allocation2] sm:$0xff] %v1902
  %1904 = vst [vmem:[#allocation3] sm:$0xff] %v1900
  %v1905 = vpack.c.bf16 %v1902, %v1902
  %s1906 = scalar_lea.vmem %s4, 32
  %1907 = vst [vmem:[%s1906] sm:$0xf] %v1905
  %v1908 = vld [vmem:[#allocation2] sm:$0xff]
  %v1909 = vld [vmem:[#allocation3] sm:$0xff]
  %s1910 = smul.u32 9, 4
  %s1911 = smul.addr %s1910, 8
  %s1912 = scalar_lea.vmem [#allocation4], %s1911
  %v1913 = vld [vmem:[%s1912] sm:$0xff]
  %v1914 = vld [vmem:[%s1912 + $0x8] sm:$0xff]
  %v1915 = vld [vmem:[%s1912 + $0x10] sm:$0xff]
  %v1916 = vld [vmem:[%s1912 + $0x18] sm:$0xff]
  %v1917 = vpack.c.bf16 %v1908, %v1908
  %1918 = vmatprep.subr.bf16.mxu0 %v759
  %1919 = vmatpush1.bf16.msra.mxu0 %v758
  %1920 = vmatprep.subr.bf16.mxu0 %v755
  %1921 = vmatpush1.bf16.msra.mxu0 %v754
  %1922 = vmatprep.subr.bf16.mxu0 %v751
  %1923 = vmatpush1.bf16.msra.mxu0 %v750
  %1924 = vmatprep.subr.bf16.mxu0 %v747
  %1925 = vmatpush1.bf16.msra.mxu0 %v746
  %1926 = vmatprep.subr.bf16.mxu0 %v743
  %1927 = vmatpush1.bf16.msra.mxu0 %v742
  %1928 = vmatprep.subr.bf16.mxu0 %v739
  %1929 = vmatpush1.bf16.msra.mxu0 %v738
  %1930 = vmatprep.subr.bf16.mxu0 %v735
  %1931 = vmatpush1.bf16.msra.mxu0 %v734
  %1932 = vmatprep.subr.bf16.mxu0 %v731
  %1933 = vmatpush1.bf16.msra.mxu0 %v730
  %1934 = vmatprep.subr.bf16.mxu0 0
  %1935 = vmatpush2.bf16.msra.mxu0 0
  %1936 = vmatprep.subr.bf16.mxu0 0
  %1937 = vmatpush2.bf16.msra.mxu0 0
  %1938 = vmatprep.subr.bf16.mxu0 0
  %1939 = vmatpush2.bf16.msra.mxu0 0
  %1940 = vmatprep.subr.bf16.mxu0 0
  %1941 = vmatpush2.bf16.msra.mxu0 0
  %1942 = vmatprep.subr.bf16.mxu0 0
  %1943 = vmatpush2.bf16.msra.mxu0 0
  %1944 = vmatprep.subr.bf16.mxu0 0
  %1945 = vmatpush2.bf16.msra.mxu0 0
  %1946 = vmatprep.subr.bf16.mxu0 0
  %1947 = vmatpush2.bf16.msra.mxu0 0
  %1948 = vmatprep.subr.bf16.mxu0 0
  %1949 = vmatpush2.bf16.msra.mxu0 0
  %1950 = vmatprep.mubr.bf16.mxu0 0
  %1951 = vmatmul.mubr.bf16.gmra.mxu0 %v1917
  %v1952 = vpop.f32.mrf.mxu0
  %v1953 = vadd.f32 0.0, %v1952
  %v1954 = vpop.f32.mrf.mxu0
  %v1955 = vadd.f32 0.0, %v1954
  %v1956 = vpop.f32.mrf.mxu0
  %v1957 = vpop.f32.mrf.mxu0
  %1958 = vdwg.mxu0
  %1959 = vmatprep.subr.bf16.mxu0 %v761
  %1960 = vmatpush1.bf16.msra.mxu0 %v760
  %1961 = vmatprep.subr.bf16.mxu0 %v757
  %1962 = vmatpush1.bf16.msra.mxu0 %v756
  %1963 = vmatprep.subr.bf16.mxu0 %v753
  %1964 = vmatpush1.bf16.msra.mxu0 %v752
  %1965 = vmatprep.subr.bf16.mxu0 %v749
  %1966 = vmatpush1.bf16.msra.mxu0 %v748
  %1967 = vmatprep.subr.bf16.mxu0 %v745
  %1968 = vmatpush1.bf16.msra.mxu0 %v744
  %1969 = vmatprep.subr.bf16.mxu0 %v741
  %1970 = vmatpush1.bf16.msra.mxu0 %v740
  %1971 = vmatprep.subr.bf16.mxu0 %v737
  %1972 = vmatpush1.bf16.msra.mxu0 %v736
  %1973 = vmatprep.subr.bf16.mxu0 %v733
  %1974 = vmatpush1.bf16.msra.mxu0 %v732
  %1975 = vmatprep.subr.bf16.mxu0 0
  %1976 = vmatpush2.bf16.msra.mxu0 0
  %1977 = vmatprep.subr.bf16.mxu0 0
  %1978 = vmatpush2.bf16.msra.mxu0 0
  %1979 = vmatprep.subr.bf16.mxu0 0
  %1980 = vmatpush2.bf16.msra.mxu0 0
  %1981 = vmatprep.subr.bf16.mxu0 0
  %1982 = vmatpush2.bf16.msra.mxu0 0
  %1983 = vmatprep.subr.bf16.mxu0 0
  %1984 = vmatpush2.bf16.msra.mxu0 0
  %1985 = vmatprep.subr.bf16.mxu0 0
  %1986 = vmatpush2.bf16.msra.mxu0 0
  %1987 = vmatprep.subr.bf16.mxu0 0
  %1988 = vmatpush2.bf16.msra.mxu0 0
  %1989 = vmatprep.subr.bf16.mxu0 0
  %1990 = vmatpush2.bf16.msra.mxu0 0
  %1991 = vmatprep.mubr.bf16.mxu0 0
  %1992 = vmatmul.mubr.bf16.gmra.mxu0 %v1917
  %v1993 = vpop.f32.mrf.mxu0
  %v1994 = vadd.f32 0.0, %v1993
  %v1995 = vpop.f32.mrf.mxu0
  %v1996 = vadd.f32 0.0, %v1995
  %v1997 = vpop.f32.mrf.mxu0
  %v1998 = vpop.f32.mrf.mxu0
  %1999 = vdwg.mxu0
  %v2000 = vadd.f32 %v1913, %v1953
  %v2001 = vadd.f32 %v1914, %v1955
  %v2002 = vadd.f32 %v1915, %v1994
  %v2003 = vadd.f32 %v1916, %v1996
  %v2004 = vxor.u32 %v2000, 2147483648
  %v2005 = vmul.f32 %v2004, 1.442695
  %v2006 = vpow.pop %v2005
  %v2007 = vadd.f32 %v2006, 1.0
  %v2008 = vrcp.pop %v2007
  %v2009 = vmul.f32 1.0, %v2008
  %v2010 = vxor.u32 %v2001, 2147483648
  %v2011 = vmul.f32 %v2010, 1.442695
  %v2012 = vpow.pop %v2011
  %v2013 = vadd.f32 %v2012, 1.0
  %v2014 = vrcp.pop %v2013
  %v2015 = vmul.f32 1.0, %v2014
  %v2016 = vtanh.pop %v2002
  %v2017 = vxor.u32 %v2003, 2147483648
  %v2018 = vmul.f32 %v2017, 1.442695
  %v2019 = vpow.pop %v2018
  %v2020 = vadd.f32 %v2019, 1.0
  %v2021 = vrcp.pop %v2020
  %v2022 = vmul.f32 1.0, %v2021
  %v2023 = vmul.f32 %v2015, %v1909
  %v2024 = vmul.f32 %v2009, %v2016
  %v2025 = vadd.f32 %v2023, %v2024
  %v2026 = vtanh.pop %v2025
  %v2027 = vmul.f32 %v2022, %v2026
  %2028 = vst [vmem:[#allocation2] sm:$0xff] %v2027
  %2029 = vst [vmem:[#allocation3] sm:$0xff] %v2025
  %v2030 = vpack.c.bf16 %v2027, %v2027
  %s2031 = scalar_lea.vmem %s4, 36
  %2032 = vst [vmem:[%s2031] sm:$0xf] %v2030
  %v2033 = vld [vmem:[#allocation2] sm:$0xff]
  %v2034 = vld [vmem:[#allocation3] sm:$0xff]
  %s2035 = smul.u32 10, 4
  %s2036 = smul.addr %s2035, 8
  %s2037 = scalar_lea.vmem [#allocation4], %s2036
  %v2038 = vld [vmem:[%s2037] sm:$0xff]
  %v2039 = vld [vmem:[%s2037 + $0x8] sm:$0xff]
  %v2040 = vld [vmem:[%s2037 + $0x10] sm:$0xff]
  %v2041 = vld [vmem:[%s2037 + $0x18] sm:$0xff]
  %v2042 = vpack.c.bf16 %v2033, %v2033
  %2043 = vmatprep.subr.bf16.mxu0 %v759
  %2044 = vmatpush1.bf16.msra.mxu0 %v758
  %2045 = vmatprep.subr.bf16.mxu0 %v755
  %2046 = vmatpush1.bf16.msra.mxu0 %v754
  %2047 = vmatprep.subr.bf16.mxu0 %v751
  %2048 = vmatpush1.bf16.msra.mxu0 %v750
  %2049 = vmatprep.subr.bf16.mxu0 %v747
  %2050 = vmatpush1.bf16.msra.mxu0 %v746
  %2051 = vmatprep.subr.bf16.mxu0 %v743
  %2052 = vmatpush1.bf16.msra.mxu0 %v742
  %2053 = vmatprep.subr.bf16.mxu0 %v739
  %2054 = vmatpush1.bf16.msra.mxu0 %v738
  %2055 = vmatprep.subr.bf16.mxu0 %v735
  %2056 = vmatpush1.bf16.msra.mxu0 %v734
  %2057 = vmatprep.subr.bf16.mxu0 %v731
  %2058 = vmatpush1.bf16.msra.mxu0 %v730
  %2059 = vmatprep.subr.bf16.mxu0 0
  %2060 = vmatpush2.bf16.msra.mxu0 0
  %2061 = vmatprep.subr.bf16.mxu0 0
  %2062 = vmatpush2.bf16.msra.mxu0 0
  %2063 = vmatprep.subr.bf16.mxu0 0
  %2064 = vmatpush2.bf16.msra.mxu0 0
  %2065 = vmatprep.subr.bf16.mxu0 0
  %2066 = vmatpush2.bf16.msra.mxu0 0
  %2067 = vmatprep.subr.bf16.mxu0 0
  %2068 = vmatpush2.bf16.msra.mxu0 0
  %2069 = vmatprep.subr.bf16.mxu0 0
  %2070 = vmatpush2.bf16.msra.mxu0 0
  %2071 = vmatprep.subr.bf16.mxu0 0
  %2072 = vmatpush2.bf16.msra.mxu0 0
  %2073 = vmatprep.subr.bf16.mxu0 0
  %2074 = vmatpush2.bf16.msra.mxu0 0
  %2075 = vmatprep.mubr.bf16.mxu0 0
  %2076 = vmatmul.mubr.bf16.gmra.mxu0 %v2042
  %v2077 = vpop.f32.mrf.mxu0
  %v2078 = vadd.f32 0.0, %v2077
  %v2079 = vpop.f32.mrf.mxu0
  %v2080 = vadd.f32 0.0, %v2079
  %v2081 = vpop.f32.mrf.mxu0
  %v2082 = vpop.f32.mrf.mxu0
  %2083 = vdwg.mxu0
  %2084 = vmatprep.subr.bf16.mxu0 %v761
  %2085 = vmatpush1.bf16.msra.mxu0 %v760
  %2086 = vmatprep.subr.bf16.mxu0 %v757
  %2087 = vmatpush1.bf16.msra.mxu0 %v756
  %2088 = vmatprep.subr.bf16.mxu0 %v753
  %2089 = vmatpush1.bf16.msra.mxu0 %v752
  %2090 = vmatprep.subr.bf16.mxu0 %v749
  %2091 = vmatpush1.bf16.msra.mxu0 %v748
  %2092 = vmatprep.subr.bf16.mxu0 %v745
  %2093 = vmatpush1.bf16.msra.mxu0 %v744
  %2094 = vmatprep.subr.bf16.mxu0 %v741
  %2095 = vmatpush1.bf16.msra.mxu0 %v740
  %2096 = vmatprep.subr.bf16.mxu0 %v737
  %2097 = vmatpush1.bf16.msra.mxu0 %v736
  %2098 = vmatprep.subr.bf16.mxu0 %v733
  %2099 = vmatpush1.bf16.msra.mxu0 %v732
  %2100 = vmatprep.subr.bf16.mxu0 0
  %2101 = vmatpush2.bf16.msra.mxu0 0
  %2102 = vmatprep.subr.bf16.mxu0 0
  %2103 = vmatpush2.bf16.msra.mxu0 0
  %2104 = vmatprep.subr.bf16.mxu0 0
  %2105 = vmatpush2.bf16.msra.mxu0 0
  %2106 = vmatprep.subr.bf16.mxu0 0
  %2107 = vmatpush2.bf16.msra.mxu0 0
  %2108 = vmatprep.subr.bf16.mxu0 0
  %2109 = vmatpush2.bf16.msra.mxu0 0
  %2110 = vmatprep.subr.bf16.mxu0 0
  %2111 = vmatpush2.bf16.msra.mxu0 0
  %2112 = vmatprep.subr.bf16.mxu0 0
  %2113 = vmatpush2.bf16.msra.mxu0 0
  %2114 = vmatprep.subr.bf16.mxu0 0
  %2115 = vmatpush2.bf16.msra.mxu0 0
  %2116 = vmatprep.mubr.bf16.mxu0 0
  %2117 = vmatmul.mubr.bf16.gmra.mxu0 %v2042
  %v2118 = vpop.f32.mrf.mxu0
  %v2119 = vadd.f32 0.0, %v2118
  %v2120 = vpop.f32.mrf.mxu0
  %v2121 = vadd.f32 0.0, %v2120
  %v2122 = vpop.f32.mrf.mxu0
  %v2123 = vpop.f32.mrf.mxu0
  %2124 = vdwg.mxu0
  %v2125 = vadd.f32 %v2038, %v2078
  %v2126 = vadd.f32 %v2039, %v2080
  %v2127 = vadd.f32 %v2040, %v2119
  %v2128 = vadd.f32 %v2041, %v2121
  %v2129 = vxor.u32 %v2125, 2147483648
  %v2130 = vmul.f32 %v2129, 1.442695
  %v2131 = vpow.pop %v2130
  %v2132 = vadd.f32 %v2131, 1.0
  %v2133 = vrcp.pop %v2132
  %v2134 = vmul.f32 1.0, %v2133
  %v2135 = vxor.u32 %v2126, 2147483648
  %v2136 = vmul.f32 %v2135, 1.442695
  %v2137 = vpow.pop %v2136
  %v2138 = vadd.f32 %v2137, 1.0
  %v2139 = vrcp.pop %v2138
  %v2140 = vmul.f32 1.0, %v2139
  %v2141 = vtanh.pop %v2127
  %v2142 = vxor.u32 %v2128, 2147483648
  %v2143 = vmul.f32 %v2142, 1.442695
  %v2144 = vpow.pop %v2143
  %v2145 = vadd.f32 %v2144, 1.0
  %v2146 = vrcp.pop %v2145
  %v2147 = vmul.f32 1.0, %v2146
  %v2148 = vmul.f32 %v2140, %v2034
  %v2149 = vmul.f32 %v2134, %v2141
  %v2150 = vadd.f32 %v2148, %v2149
  %v2151 = vtanh.pop %v2150
  %v2152 = vmul.f32 %v2147, %v2151
  %2153 = vst [vmem:[#allocation2] sm:$0xff] %v2152
  %2154 = vst [vmem:[#allocation3] sm:$0xff] %v2150
  %v2155 = vpack.c.bf16 %v2152, %v2152
  %s2156 = scalar_lea.vmem %s4, 40
  %2157 = vst [vmem:[%s2156] sm:$0xf] %v2155
  %v2158 = vld [vmem:[#allocation2] sm:$0xff]
  %v2159 = vld [vmem:[#allocation3] sm:$0xff]
  %s2160 = smul.u32 11, 4
  %s2161 = smul.addr %s2160, 8
  %s2162 = scalar_lea.vmem [#allocation4], %s2161
  %v2163 = vld [vmem:[%s2162] sm:$0xff]
  %v2164 = vld [vmem:[%s2162 + $0x8] sm:$0xff]
  %v2165 = vld [vmem:[%s2162 + $0x10] sm:$0xff]
  %v2166 = vld [vmem:[%s2162 + $0x18] sm:$0xff]
  %v2167 = vpack.c.bf16 %v2158, %v2158
  %2168 = vmatprep.subr.bf16.mxu0 %v759
  %2169 = vmatpush1.bf16.msra.mxu0 %v758
  %2170 = vmatprep.subr.bf16.mxu0 %v755
  %2171 = vmatpush1.bf16.msra.mxu0 %v754
  %2172 = vmatprep.subr.bf16.mxu0 %v751
  %2173 = vmatpush1.bf16.msra.mxu0 %v750
  %2174 = vmatprep.subr.bf16.mxu0 %v747
  %2175 = vmatpush1.bf16.msra.mxu0 %v746
  %2176 = vmatprep.subr.bf16.mxu0 %v743
  %2177 = vmatpush1.bf16.msra.mxu0 %v742
  %2178 = vmatprep.subr.bf16.mxu0 %v739
  %2179 = vmatpush1.bf16.msra.mxu0 %v738
  %2180 = vmatprep.subr.bf16.mxu0 %v735
  %2181 = vmatpush1.bf16.msra.mxu0 %v734
  %2182 = vmatprep.subr.bf16.mxu0 %v731
  %2183 = vmatpush1.bf16.msra.mxu0 %v730
  %2184 = vmatprep.subr.bf16.mxu0 0
  %2185 = vmatpush2.bf16.msra.mxu0 0
  %2186 = vmatprep.subr.bf16.mxu0 0
  %2187 = vmatpush2.bf16.msra.mxu0 0
  %2188 = vmatprep.subr.bf16.mxu0 0
  %2189 = vmatpush2.bf16.msra.mxu0 0
  %2190 = vmatprep.subr.bf16.mxu0 0
  %2191 = vmatpush2.bf16.msra.mxu0 0
  %2192 = vmatprep.subr.bf16.mxu0 0
  %2193 = vmatpush2.bf16.msra.mxu0 0
  %2194 = vmatprep.subr.bf16.mxu0 0
  %2195 = vmatpush2.bf16.msra.mxu0 0
  %2196 = vmatprep.subr.bf16.mxu0 0
  %2197 = vmatpush2.bf16.msra.mxu0 0
  %2198 = vmatprep.subr.bf16.mxu0 0
  %2199 = vmatpush2.bf16.msra.mxu0 0
  %2200 = vmatprep.mubr.bf16.mxu0 0
  %2201 = vmatmul.mubr.bf16.gmra.mxu0 %v2167
  %v2202 = vpop.f32.mrf.mxu0
  %v2203 = vadd.f32 0.0, %v2202
  %v2204 = vpop.f32.mrf.mxu0
  %v2205 = vadd.f32 0.0, %v2204
  %v2206 = vpop.f32.mrf.mxu0
  %v2207 = vpop.f32.mrf.mxu0
  %2208 = vdwg.mxu0
  %2209 = vmatprep.subr.bf16.mxu0 %v761
  %2210 = vmatpush1.bf16.msra.mxu0 %v760
  %2211 = vmatprep.subr.bf16.mxu0 %v757
  %2212 = vmatpush1.bf16.msra.mxu0 %v756
  %2213 = vmatprep.subr.bf16.mxu0 %v753
  %2214 = vmatpush1.bf16.msra.mxu0 %v752
  %2215 = vmatprep.subr.bf16.mxu0 %v749
  %2216 = vmatpush1.bf16.msra.mxu0 %v748
  %2217 = vmatprep.subr.bf16.mxu0 %v745
  %2218 = vmatpush1.bf16.msra.mxu0 %v744
  %2219 = vmatprep.subr.bf16.mxu0 %v741
  %2220 = vmatpush1.bf16.msra.mxu0 %v740
  %2221 = vmatprep.subr.bf16.mxu0 %v737
  %2222 = vmatpush1.bf16.msra.mxu0 %v736
  %2223 = vmatprep.subr.bf16.mxu0 %v733
  %2224 = vmatpush1.bf16.msra.mxu0 %v732
  %2225 = vmatprep.subr.bf16.mxu0 0
  %2226 = vmatpush2.bf16.msra.mxu0 0
  %2227 = vmatprep.subr.bf16.mxu0 0
  %2228 = vmatpush2.bf16.msra.mxu0 0
  %2229 = vmatprep.subr.bf16.mxu0 0
  %2230 = vmatpush2.bf16.msra.mxu0 0
  %2231 = vmatprep.subr.bf16.mxu0 0
  %2232 = vmatpush2.bf16.msra.mxu0 0
  %2233 = vmatprep.subr.bf16.mxu0 0
  %2234 = vmatpush2.bf16.msra.mxu0 0
  %2235 = vmatprep.subr.bf16.mxu0 0
  %2236 = vmatpush2.bf16.msra.mxu0 0
  %2237 = vmatprep.subr.bf16.mxu0 0
  %2238 = vmatpush2.bf16.msra.mxu0 0
  %2239 = vmatprep.subr.bf16.mxu0 0
  %2240 = vmatpush2.bf16.msra.mxu0 0
  %2241 = vmatprep.mubr.bf16.mxu0 0
  %2242 = vmatmul.mubr.bf16.gmra.mxu0 %v2167
  %v2243 = vpop.f32.mrf.mxu0
  %v2244 = vadd.f32 0.0, %v2243
  %v2245 = vpop.f32.mrf.mxu0
  %v2246 = vadd.f32 0.0, %v2245
  %v2247 = vpop.f32.mrf.mxu0
  %v2248 = vpop.f32.mrf.mxu0
  %2249 = vdwg.mxu0
  %v2250 = vadd.f32 %v2163, %v2203
  %v2251 = vadd.f32 %v2164, %v2205
  %v2252 = vadd.f32 %v2165, %v2244
  %v2253 = vadd.f32 %v2166, %v2246
  %v2254 = vxor.u32 %v2250, 2147483648
  %v2255 = vmul.f32 %v2254, 1.442695
  %v2256 = vpow.pop %v2255
  %v2257 = vadd.f32 %v2256, 1.0
  %v2258 = vrcp.pop %v2257
  %v2259 = vmul.f32 1.0, %v2258
  %v2260 = vxor.u32 %v2251, 2147483648
  %v2261 = vmul.f32 %v2260, 1.442695
  %v2262 = vpow.pop %v2261
  %v2263 = vadd.f32 %v2262, 1.0
  %v2264 = vrcp.pop %v2263
  %v2265 = vmul.f32 1.0, %v2264
  %v2266 = vtanh.pop %v2252
  %v2267 = vxor.u32 %v2253, 2147483648
  %v2268 = vmul.f32 %v2267, 1.442695
  %v2269 = vpow.pop %v2268
  %v2270 = vadd.f32 %v2269, 1.0
  %v2271 = vrcp.pop %v2270
  %v2272 = vmul.f32 1.0, %v2271
  %v2273 = vmul.f32 %v2265, %v2159
  %v2274 = vmul.f32 %v2259, %v2266
  %v2275 = vadd.f32 %v2273, %v2274
  %v2276 = vtanh.pop %v2275
  %v2277 = vmul.f32 %v2272, %v2276
  %2278 = vst [vmem:[#allocation2] sm:$0xff] %v2277
  %2279 = vst [vmem:[#allocation3] sm:$0xff] %v2275
  %v2280 = vpack.c.bf16 %v2277, %v2277
  %s2281 = scalar_lea.vmem %s4, 44
  %2282 = vst [vmem:[%s2281] sm:$0xf] %v2280
  %v2283 = vld [vmem:[#allocation2] sm:$0xff]
  %v2284 = vld [vmem:[#allocation3] sm:$0xff]
  %s2285 = smul.u32 12, 4
  %s2286 = smul.addr %s2285, 8
  %s2287 = scalar_lea.vmem [#allocation4], %s2286
  %v2288 = vld [vmem:[%s2287] sm:$0xff]
  %v2289 = vld [vmem:[%s2287 + $0x8] sm:$0xff]
  %v2290 = vld [vmem:[%s2287 + $0x10] sm:$0xff]
  %v2291 = vld [vmem:[%s2287 + $0x18] sm:$0xff]
  %v2292 = vpack.c.bf16 %v2283, %v2283
  %2293 = vmatprep.subr.bf16.mxu0 %v759
  %2294 = vmatpush1.bf16.msra.mxu0 %v758
  %2295 = vmatprep.subr.bf16.mxu0 %v755
  %2296 = vmatpush1.bf16.msra.mxu0 %v754
  %2297 = vmatprep.subr.bf16.mxu0 %v751
  %2298 = vmatpush1.bf16.msra.mxu0 %v750
  %2299 = vmatprep.subr.bf16.mxu0 %v747
  %2300 = vmatpush1.bf16.msra.mxu0 %v746
  %2301 = vmatprep.subr.bf16.mxu0 %v743
  %2302 = vmatpush1.bf16.msra.mxu0 %v742
  %2303 = vmatprep.subr.bf16.mxu0 %v739
  %2304 = vmatpush1.bf16.msra.mxu0 %v738
  %2305 = vmatprep.subr.bf16.mxu0 %v735
  %2306 = vmatpush1.bf16.msra.mxu0 %v734
  %2307 = vmatprep.subr.bf16.mxu0 %v731
  %2308 = vmatpush1.bf16.msra.mxu0 %v730
  %2309 = vmatprep.subr.bf16.mxu0 0
  %2310 = vmatpush2.bf16.msra.mxu0 0
  %2311 = vmatprep.subr.bf16.mxu0 0
  %2312 = vmatpush2.bf16.msra.mxu0 0
  %2313 = vmatprep.subr.bf16.mxu0 0
  %2314 = vmatpush2.bf16.msra.mxu0 0
  %2315 = vmatprep.subr.bf16.mxu0 0
  %2316 = vmatpush2.bf16.msra.mxu0 0
  %2317 = vmatprep.subr.bf16.mxu0 0
  %2318 = vmatpush2.bf16.msra.mxu0 0
  %2319 = vmatprep.subr.bf16.mxu0 0
  %2320 = vmatpush2.bf16.msra.mxu0 0
  %2321 = vmatprep.subr.bf16.mxu0 0
  %2322 = vmatpush2.bf16.msra.mxu0 0
  %2323 = vmatprep.subr.bf16.mxu0 0
  %2324 = vmatpush2.bf16.msra.mxu0 0
  %2325 = vmatprep.mubr.bf16.mxu0 0
  %2326 = vmatmul.mubr.bf16.gmra.mxu0 %v2292
  %v2327 = vpop.f32.mrf.mxu0
  %v2328 = vadd.f32 0.0, %v2327
  %v2329 = vpop.f32.mrf.mxu0
  %v2330 = vadd.f32 0.0, %v2329
  %v2331 = vpop.f32.mrf.mxu0
  %v2332 = vpop.f32.mrf.mxu0
  %2333 = vdwg.mxu0
  %2334 = vmatprep.subr.bf16.mxu0 %v761
  %2335 = vmatpush1.bf16.msra.mxu0 %v760
  %2336 = vmatprep.subr.bf16.mxu0 %v757
  %2337 = vmatpush1.bf16.msra.mxu0 %v756
  %2338 = vmatprep.subr.bf16.mxu0 %v753
  %2339 = vmatpush1.bf16.msra.mxu0 %v752
  %2340 = vmatprep.subr.bf16.mxu0 %v749
  %2341 = vmatpush1.bf16.msra.mxu0 %v748
  %2342 = vmatprep.subr.bf16.mxu0 %v745
  %2343 = vmatpush1.bf16.msra.mxu0 %v744
  %2344 = vmatprep.subr.bf16.mxu0 %v741
  %2345 = vmatpush1.bf16.msra.mxu0 %v740
  %2346 = vmatprep.subr.bf16.mxu0 %v737
  %2347 = vmatpush1.bf16.msra.mxu0 %v736
  %2348 = vmatprep.subr.bf16.mxu0 %v733
  %2349 = vmatpush1.bf16.msra.mxu0 %v732
  %2350 = vmatprep.subr.bf16.mxu0 0
  %2351 = vmatpush2.bf16.msra.mxu0 0
  %2352 = vmatprep.subr.bf16.mxu0 0
  %2353 = vmatpush2.bf16.msra.mxu0 0
  %2354 = vmatprep.subr.bf16.mxu0 0
  %2355 = vmatpush2.bf16.msra.mxu0 0
  %2356 = vmatprep.subr.bf16.mxu0 0
  %2357 = vmatpush2.bf16.msra.mxu0 0
  %2358 = vmatprep.subr.bf16.mxu0 0
  %2359 = vmatpush2.bf16.msra.mxu0 0
  %2360 = vmatprep.subr.bf16.mxu0 0
  %2361 = vmatpush2.bf16.msra.mxu0 0
  %2362 = vmatprep.subr.bf16.mxu0 0
  %2363 = vmatpush2.bf16.msra.mxu0 0
  %2364 = vmatprep.subr.bf16.mxu0 0
  %2365 = vmatpush2.bf16.msra.mxu0 0
  %2366 = vmatprep.mubr.bf16.mxu0 0
  %2367 = vmatmul.mubr.bf16.gmra.mxu0 %v2292
  %v2368 = vpop.f32.mrf.mxu0
  %v2369 = vadd.f32 0.0, %v2368
  %v2370 = vpop.f32.mrf.mxu0
  %v2371 = vadd.f32 0.0, %v2370
  %v2372 = vpop.f32.mrf.mxu0
  %v2373 = vpop.f32.mrf.mxu0
  %2374 = vdwg.mxu0
  %v2375 = vadd.f32 %v2288, %v2328
  %v2376 = vadd.f32 %v2289, %v2330
  %v2377 = vadd.f32 %v2290, %v2369
  %v2378 = vadd.f32 %v2291, %v2371
  %v2379 = vxor.u32 %v2375, 2147483648
  %v2380 = vmul.f32 %v2379, 1.442695
  %v2381 = vpow.pop %v2380
  %v2382 = vadd.f32 %v2381, 1.0
  %v2383 = vrcp.pop %v2382
  %v2384 = vmul.f32 1.0, %v2383
  %v2385 = vxor.u32 %v2376, 2147483648
  %v2386 = vmul.f32 %v2385, 1.442695
  %v2387 = vpow.pop %v2386
  %v2388 = vadd.f32 %v2387, 1.0
  %v2389 = vrcp.pop %v2388
  %v2390 = vmul.f32 1.0, %v2389
  %v2391 = vtanh.pop %v2377
  %v2392 = vxor.u32 %v2378, 2147483648
  %v2393 = vmul.f32 %v2392, 1.442695
  %v2394 = vpow.pop %v2393
  %v2395 = vadd.f32 %v2394, 1.0
  %v2396 = vrcp.pop %v2395
  %v2397 = vmul.f32 1.0, %v2396
  %v2398 = vmul.f32 %v2390, %v2284
  %v2399 = vmul.f32 %v2384, %v2391
  %v2400 = vadd.f32 %v2398, %v2399
  %v2401 = vtanh.pop %v2400
  %v2402 = vmul.f32 %v2397, %v2401
  %2403 = vst [vmem:[#allocation2] sm:$0xff] %v2402
  %2404 = vst [vmem:[#allocation3] sm:$0xff] %v2400
  %v2405 = vpack.c.bf16 %v2402, %v2402
  %s2406 = scalar_lea.vmem %s4, 48
  %2407 = vst [vmem:[%s2406] sm:$0xf] %v2405
  %v2408 = vld [vmem:[#allocation2] sm:$0xff]
  %v2409 = vld [vmem:[#allocation3] sm:$0xff]
  %s2410 = smul.u32 13, 4
  %s2411 = smul.addr %s2410, 8
  %s2412 = scalar_lea.vmem [#allocation4], %s2411
  %v2413 = vld [vmem:[%s2412] sm:$0xff]
  %v2414 = vld [vmem:[%s2412 + $0x8] sm:$0xff]
  %v2415 = vld [vmem:[%s2412 + $0x10] sm:$0xff]
  %v2416 = vld [vmem:[%s2412 + $0x18] sm:$0xff]
  %v2417 = vpack.c.bf16 %v2408, %v2408
  %2418 = vmatprep.subr.bf16.mxu0 %v759
  %2419 = vmatpush1.bf16.msra.mxu0 %v758
  %2420 = vmatprep.subr.bf16.mxu0 %v755
  %2421 = vmatpush1.bf16.msra.mxu0 %v754
  %2422 = vmatprep.subr.bf16.mxu0 %v751
  %2423 = vmatpush1.bf16.msra.mxu0 %v750
  %2424 = vmatprep.subr.bf16.mxu0 %v747
  %2425 = vmatpush1.bf16.msra.mxu0 %v746
  %2426 = vmatprep.subr.bf16.mxu0 %v743
  %2427 = vmatpush1.bf16.msra.mxu0 %v742
  %2428 = vmatprep.subr.bf16.mxu0 %v739
  %2429 = vmatpush1.bf16.msra.mxu0 %v738
  %2430 = vmatprep.subr.bf16.mxu0 %v735
  %2431 = vmatpush1.bf16.msra.mxu0 %v734
  %2432 = vmatprep.subr.bf16.mxu0 %v731
  %2433 = vmatpush1.bf16.msra.mxu0 %v730
  %2434 = vmatprep.subr.bf16.mxu0 0
  %2435 = vmatpush2.bf16.msra.mxu0 0
  %2436 = vmatprep.subr.bf16.mxu0 0
  %2437 = vmatpush2.bf16.msra.mxu0 0
  %2438 = vmatprep.subr.bf16.mxu0 0
  %2439 = vmatpush2.bf16.msra.mxu0 0
  %2440 = vmatprep.subr.bf16.mxu0 0
  %2441 = vmatpush2.bf16.msra.mxu0 0
  %2442 = vmatprep.subr.bf16.mxu0 0
  %2443 = vmatpush2.bf16.msra.mxu0 0
  %2444 = vmatprep.subr.bf16.mxu0 0
  %2445 = vmatpush2.bf16.msra.mxu0 0
  %2446 = vmatprep.subr.bf16.mxu0 0
  %2447 = vmatpush2.bf16.msra.mxu0 0
  %2448 = vmatprep.subr.bf16.mxu0 0
  %2449 = vmatpush2.bf16.msra.mxu0 0
  %2450 = vmatprep.mubr.bf16.mxu0 0
  %2451 = vmatmul.mubr.bf16.gmra.mxu0 %v2417
  %v2452 = vpop.f32.mrf.mxu0
  %v2453 = vadd.f32 0.0, %v2452
  %v2454 = vpop.f32.mrf.mxu0
  %v2455 = vadd.f32 0.0, %v2454
  %v2456 = vpop.f32.mrf.mxu0
  %v2457 = vpop.f32.mrf.mxu0
  %2458 = vdwg.mxu0
  %2459 = vmatprep.subr.bf16.mxu0 %v761
  %2460 = vmatpush1.bf16.msra.mxu0 %v760
  %2461 = vmatprep.subr.bf16.mxu0 %v757
  %2462 = vmatpush1.bf16.msra.mxu0 %v756
  %2463 = vmatprep.subr.bf16.mxu0 %v753
  %2464 = vmatpush1.bf16.msra.mxu0 %v752
  %2465 = vmatprep.subr.bf16.mxu0 %v749
  %2466 = vmatpush1.bf16.msra.mxu0 %v748
  %2467 = vmatprep.subr.bf16.mxu0 %v745
  %2468 = vmatpush1.bf16.msra.mxu0 %v744
  %2469 = vmatprep.subr.bf16.mxu0 %v741
  %2470 = vmatpush1.bf16.msra.mxu0 %v740
  %2471 = vmatprep.subr.bf16.mxu0 %v737
  %2472 = vmatpush1.bf16.msra.mxu0 %v736
  %2473 = vmatprep.subr.bf16.mxu0 %v733
  %2474 = vmatpush1.bf16.msra.mxu0 %v732
  %2475 = vmatprep.subr.bf16.mxu0 0
  %2476 = vmatpush2.bf16.msra.mxu0 0
  %2477 = vmatprep.subr.bf16.mxu0 0
  %2478 = vmatpush2.bf16.msra.mxu0 0
  %2479 = vmatprep.subr.bf16.mxu0 0
  %2480 = vmatpush2.bf16.msra.mxu0 0
  %2481 = vmatprep.subr.bf16.mxu0 0
  %2482 = vmatpush2.bf16.msra.mxu0 0
  %2483 = vmatprep.subr.bf16.mxu0 0
  %2484 = vmatpush2.bf16.msra.mxu0 0
  %2485 = vmatprep.subr.bf16.mxu0 0
  %2486 = vmatpush2.bf16.msra.mxu0 0
  %2487 = vmatprep.subr.bf16.mxu0 0
  %2488 = vmatpush2.bf16.msra.mxu0 0
  %2489 = vmatprep.subr.bf16.mxu0 0
  %2490 = vmatpush2.bf16.msra.mxu0 0
  %2491 = vmatprep.mubr.bf16.mxu0 0
  %2492 = vmatmul.mubr.bf16.gmra.mxu0 %v2417
  %v2493 = vpop.f32.mrf.mxu0
  %v2494 = vadd.f32 0.0, %v2493
  %v2495 = vpop.f32.mrf.mxu0
  %v2496 = vadd.f32 0.0, %v2495
  %v2497 = vpop.f32.mrf.mxu0
  %v2498 = vpop.f32.mrf.mxu0
  %2499 = vdwg.mxu0
  %v2500 = vadd.f32 %v2413, %v2453
  %v2501 = vadd.f32 %v2414, %v2455
  %v2502 = vadd.f32 %v2415, %v2494
  %v2503 = vadd.f32 %v2416, %v2496
  %v2504 = vxor.u32 %v2500, 2147483648
  %v2505 = vmul.f32 %v2504, 1.442695
  %v2506 = vpow.pop %v2505
  %v2507 = vadd.f32 %v2506, 1.0
  %v2508 = vrcp.pop %v2507
  %v2509 = vmul.f32 1.0, %v2508
  %v2510 = vxor.u32 %v2501, 2147483648
  %v2511 = vmul.f32 %v2510, 1.442695
  %v2512 = vpow.pop %v2511
  %v2513 = vadd.f32 %v2512, 1.0
  %v2514 = vrcp.pop %v2513
  %v2515 = vmul.f32 1.0, %v2514
  %v2516 = vtanh.pop %v2502
  %v2517 = vxor.u32 %v2503, 2147483648
  %v2518 = vmul.f32 %v2517, 1.442695
  %v2519 = vpow.pop %v2518
  %v2520 = vadd.f32 %v2519, 1.0
  %v2521 = vrcp.pop %v2520
  %v2522 = vmul.f32 1.0, %v2521
  %v2523 = vmul.f32 %v2515, %v2409
  %v2524 = vmul.f32 %v2509, %v2516
  %v2525 = vadd.f32 %v2523, %v2524
  %v2526 = vtanh.pop %v2525
  %v2527 = vmul.f32 %v2522, %v2526
  %2528 = vst [vmem:[#allocation2] sm:$0xff] %v2527
  %2529 = vst [vmem:[#allocation3] sm:$0xff] %v2525
  %v2530 = vpack.c.bf16 %v2527, %v2527
  %s2531 = scalar_lea.vmem %s4, 52
  %2532 = vst [vmem:[%s2531] sm:$0xf] %v2530
  %v2533 = vld [vmem:[#allocation2] sm:$0xff]
  %v2534 = vld [vmem:[#allocation3] sm:$0xff]
  %s2535 = smul.u32 14, 4
  %s2536 = smul.addr %s2535, 8
  %s2537 = scalar_lea.vmem [#allocation4], %s2536
  %v2538 = vld [vmem:[%s2537] sm:$0xff]
  %v2539 = vld [vmem:[%s2537 + $0x8] sm:$0xff]
  %v2540 = vld [vmem:[%s2537 + $0x10] sm:$0xff]
  %v2541 = vld [vmem:[%s2537 + $0x18] sm:$0xff]
  %v2542 = vpack.c.bf16 %v2533, %v2533
  %2543 = vmatprep.subr.bf16.mxu0 %v759
  %2544 = vmatpush1.bf16.msra.mxu0 %v758
  %2545 = vmatprep.subr.bf16.mxu0 %v755
  %2546 = vmatpush1.bf16.msra.mxu0 %v754
  %2547 = vmatprep.subr.bf16.mxu0 %v751
  %2548 = vmatpush1.bf16.msra.mxu0 %v750
  %2549 = vmatprep.subr.bf16.mxu0 %v747
  %2550 = vmatpush1.bf16.msra.mxu0 %v746
  %2551 = vmatprep.subr.bf16.mxu0 %v743
  %2552 = vmatpush1.bf16.msra.mxu0 %v742
  %2553 = vmatprep.subr.bf16.mxu0 %v739
  %2554 = vmatpush1.bf16.msra.mxu0 %v738
  %2555 = vmatprep.subr.bf16.mxu0 %v735
  %2556 = vmatpush1.bf16.msra.mxu0 %v734
  %2557 = vmatprep.subr.bf16.mxu0 %v731
  %2558 = vmatpush1.bf16.msra.mxu0 %v730
  %2559 = vmatprep.subr.bf16.mxu0 0
  %2560 = vmatpush2.bf16.msra.mxu0 0
  %2561 = vmatprep.subr.bf16.mxu0 0
  %2562 = vmatpush2.bf16.msra.mxu0 0
  %2563 = vmatprep.subr.bf16.mxu0 0
  %2564 = vmatpush2.bf16.msra.mxu0 0
  %2565 = vmatprep.subr.bf16.mxu0 0
  %2566 = vmatpush2.bf16.msra.mxu0 0
  %2567 = vmatprep.subr.bf16.mxu0 0
  %2568 = vmatpush2.bf16.msra.mxu0 0
  %2569 = vmatprep.subr.bf16.mxu0 0
  %2570 = vmatpush2.bf16.msra.mxu0 0
  %2571 = vmatprep.subr.bf16.mxu0 0
  %2572 = vmatpush2.bf16.msra.mxu0 0
  %2573 = vmatprep.subr.bf16.mxu0 0
  %2574 = vmatpush2.bf16.msra.mxu0 0
  %2575 = vmatprep.mubr.bf16.mxu0 0
  %2576 = vmatmul.mubr.bf16.gmra.mxu0 %v2542
  %v2577 = vpop.f32.mrf.mxu0
  %v2578 = vadd.f32 0.0, %v2577
  %v2579 = vpop.f32.mrf.mxu0
  %v2580 = vadd.f32 0.0, %v2579
  %v2581 = vpop.f32.mrf.mxu0
  %v2582 = vpop.f32.mrf.mxu0
  %2583 = vdwg.mxu0
  %2584 = vmatprep.subr.bf16.mxu0 %v761
  %2585 = vmatpush1.bf16.msra.mxu0 %v760
  %2586 = vmatprep.subr.bf16.mxu0 %v757
  %2587 = vmatpush1.bf16.msra.mxu0 %v756
  %2588 = vmatprep.subr.bf16.mxu0 %v753
  %2589 = vmatpush1.bf16.msra.mxu0 %v752
  %2590 = vmatprep.subr.bf16.mxu0 %v749
  %2591 = vmatpush1.bf16.msra.mxu0 %v748
  %2592 = vmatprep.subr.bf16.mxu0 %v745
  %2593 = vmatpush1.bf16.msra.mxu0 %v744
  %2594 = vmatprep.subr.bf16.mxu0 %v741
  %2595 = vmatpush1.bf16.msra.mxu0 %v740
  %2596 = vmatprep.subr.bf16.mxu0 %v737
  %2597 = vmatpush1.bf16.msra.mxu0 %v736
  %2598 = vmatprep.subr.bf16.mxu0 %v733
  %2599 = vmatpush1.bf16.msra.mxu0 %v732
  %2600 = vmatprep.subr.bf16.mxu0 0
  %2601 = vmatpush2.bf16.msra.mxu0 0
  %2602 = vmatprep.subr.bf16.mxu0 0
  %2603 = vmatpush2.bf16.msra.mxu0 0
  %2604 = vmatprep.subr.bf16.mxu0 0
  %2605 = vmatpush2.bf16.msra.mxu0 0
  %2606 = vmatprep.subr.bf16.mxu0 0
  %2607 = vmatpush2.bf16.msra.mxu0 0
  %2608 = vmatprep.subr.bf16.mxu0 0
  %2609 = vmatpush2.bf16.msra.mxu0 0
  %2610 = vmatprep.subr.bf16.mxu0 0
  %2611 = vmatpush2.bf16.msra.mxu0 0
  %2612 = vmatprep.subr.bf16.mxu0 0
  %2613 = vmatpush2.bf16.msra.mxu0 0
  %2614 = vmatprep.subr.bf16.mxu0 0
  %2615 = vmatpush2.bf16.msra.mxu0 0
  %2616 = vmatprep.mubr.bf16.mxu0 0
  %2617 = vmatmul.mubr.bf16.gmra.mxu0 %v2542
  %v2618 = vpop.f32.mrf.mxu0
  %v2619 = vadd.f32 0.0, %v2618
  %v2620 = vpop.f32.mrf.mxu0
  %v2621 = vadd.f32 0.0, %v2620
  %v2622 = vpop.f32.mrf.mxu0
  %v2623 = vpop.f32.mrf.mxu0
  %2624 = vdwg.mxu0
  %v2625 = vadd.f32 %v2538, %v2578
  %v2626 = vadd.f32 %v2539, %v2580
  %v2627 = vadd.f32 %v2540, %v2619
  %v2628 = vadd.f32 %v2541, %v2621
  %v2629 = vxor.u32 %v2625, 2147483648
  %v2630 = vmul.f32 %v2629, 1.442695
  %v2631 = vpow.pop %v2630
  %v2632 = vadd.f32 %v2631, 1.0
  %v2633 = vrcp.pop %v2632
  %v2634 = vmul.f32 1.0, %v2633
  %v2635 = vxor.u32 %v2626, 2147483648
  %v2636 = vmul.f32 %v2635, 1.442695
  %v2637 = vpow.pop %v2636
  %v2638 = vadd.f32 %v2637, 1.0
  %v2639 = vrcp.pop %v2638
  %v2640 = vmul.f32 1.0, %v2639
  %v2641 = vtanh.pop %v2627
  %v2642 = vxor.u32 %v2628, 2147483648
  %v2643 = vmul.f32 %v2642, 1.442695
  %v2644 = vpow.pop %v2643
  %v2645 = vadd.f32 %v2644, 1.0
  %v2646 = vrcp.pop %v2645
  %v2647 = vmul.f32 1.0, %v2646
  %v2648 = vmul.f32 %v2640, %v2534
  %v2649 = vmul.f32 %v2634, %v2641
  %v2650 = vadd.f32 %v2648, %v2649
  %v2651 = vtanh.pop %v2650
  %v2652 = vmul.f32 %v2647, %v2651
  %2653 = vst [vmem:[#allocation2] sm:$0xff] %v2652
  %2654 = vst [vmem:[#allocation3] sm:$0xff] %v2650
  %v2655 = vpack.c.bf16 %v2652, %v2652
  %s2656 = scalar_lea.vmem %s4, 56
  %2657 = vst [vmem:[%s2656] sm:$0xf] %v2655
  %v2658 = vld [vmem:[#allocation2] sm:$0xff]
  %v2659 = vld [vmem:[#allocation3] sm:$0xff]
  %s2660 = smul.u32 15, 4
  %s2661 = smul.addr %s2660, 8
  %s2662 = scalar_lea.vmem [#allocation4], %s2661
  %v2663 = vld [vmem:[%s2662] sm:$0xff]
  %v2664 = vld [vmem:[%s2662 + $0x8] sm:$0xff]
  %v2665 = vld [vmem:[%s2662 + $0x10] sm:$0xff]
  %v2666 = vld [vmem:[%s2662 + $0x18] sm:$0xff]
  %v2667 = vpack.c.bf16 %v2658, %v2658
  %2668 = vmatprep.subr.bf16.mxu0 %v759
  %2669 = vmatpush1.bf16.msra.mxu0 %v758
  %2670 = vmatprep.subr.bf16.mxu0 %v755
  %2671 = vmatpush1.bf16.msra.mxu0 %v754
  %2672 = vmatprep.subr.bf16.mxu0 %v751
  %2673 = vmatpush1.bf16.msra.mxu0 %v750
  %2674 = vmatprep.subr.bf16.mxu0 %v747
  %2675 = vmatpush1.bf16.msra.mxu0 %v746
  %2676 = vmatprep.subr.bf16.mxu0 %v743
  %2677 = vmatpush1.bf16.msra.mxu0 %v742
  %2678 = vmatprep.subr.bf16.mxu0 %v739
  %2679 = vmatpush1.bf16.msra.mxu0 %v738
  %2680 = vmatprep.subr.bf16.mxu0 %v735
  %2681 = vmatpush1.bf16.msra.mxu0 %v734
  %2682 = vmatprep.subr.bf16.mxu0 %v731
  %2683 = vmatpush1.bf16.msra.mxu0 %v730
  %2684 = vmatprep.subr.bf16.mxu0 0
  %2685 = vmatpush2.bf16.msra.mxu0 0
  %2686 = vmatprep.subr.bf16.mxu0 0
  %2687 = vmatpush2.bf16.msra.mxu0 0
  %2688 = vmatprep.subr.bf16.mxu0 0
  %2689 = vmatpush2.bf16.msra.mxu0 0
  %2690 = vmatprep.subr.bf16.mxu0 0
  %2691 = vmatpush2.bf16.msra.mxu0 0
  %2692 = vmatprep.subr.bf16.mxu0 0
  %2693 = vmatpush2.bf16.msra.mxu0 0
  %2694 = vmatprep.subr.bf16.mxu0 0
  %2695 = vmatpush2.bf16.msra.mxu0 0
  %2696 = vmatprep.subr.bf16.mxu0 0
  %2697 = vmatpush2.bf16.msra.mxu0 0
  %2698 = vmatprep.subr.bf16.mxu0 0
  %2699 = vmatpush2.bf16.msra.mxu0 0
  %2700 = vmatprep.mubr.bf16.mxu0 0
  %2701 = vmatmul.mubr.bf16.gmra.mxu0 %v2667
  %v2702 = vpop.f32.mrf.mxu0
  %v2703 = vadd.f32 0.0, %v2702
  %v2704 = vpop.f32.mrf.mxu0
  %v2705 = vadd.f32 0.0, %v2704
  %v2706 = vpop.f32.mrf.mxu0
  %v2707 = vpop.f32.mrf.mxu0
  %2708 = vdwg.mxu0
  %2709 = vmatprep.subr.bf16.mxu0 %v761
  %2710 = vmatpush1.bf16.msra.mxu0 %v760
  %2711 = vmatprep.subr.bf16.mxu0 %v757
  %2712 = vmatpush1.bf16.msra.mxu0 %v756
  %2713 = vmatprep.subr.bf16.mxu0 %v753
  %2714 = vmatpush1.bf16.msra.mxu0 %v752
  %2715 = vmatprep.subr.bf16.mxu0 %v749
  %2716 = vmatpush1.bf16.msra.mxu0 %v748
  %2717 = vmatprep.subr.bf16.mxu0 %v745
  %2718 = vmatpush1.bf16.msra.mxu0 %v744
  %2719 = vmatprep.subr.bf16.mxu0 %v741
  %2720 = vmatpush1.bf16.msra.mxu0 %v740
  %2721 = vmatprep.subr.bf16.mxu0 %v737
  %2722 = vmatpush1.bf16.msra.mxu0 %v736
  %2723 = vmatprep.subr.bf16.mxu0 %v733
  %2724 = vmatpush1.bf16.msra.mxu0 %v732
  %2725 = vmatprep.subr.bf16.mxu0 0
  %2726 = vmatpush2.bf16.msra.mxu0 0
  %2727 = vmatprep.subr.bf16.mxu0 0
  %2728 = vmatpush2.bf16.msra.mxu0 0
  %2729 = vmatprep.subr.bf16.mxu0 0
  %2730 = vmatpush2.bf16.msra.mxu0 0
  %2731 = vmatprep.subr.bf16.mxu0 0
  %2732 = vmatpush2.bf16.msra.mxu0 0
  %2733 = vmatprep.subr.bf16.mxu0 0
  %2734 = vmatpush2.bf16.msra.mxu0 0
  %2735 = vmatprep.subr.bf16.mxu0 0
  %2736 = vmatpush2.bf16.msra.mxu0 0
  %2737 = vmatprep.subr.bf16.mxu0 0
  %2738 = vmatpush2.bf16.msra.mxu0 0
  %2739 = vmatprep.subr.bf16.mxu0 0
  %2740 = vmatpush2.bf16.msra.mxu0 0
  %2741 = vmatprep.mubr.bf16.mxu0 0
  %2742 = vmatmul.mubr.bf16.gmra.mxu0 %v2667
  %v2743 = vpop.f32.mrf.mxu0
  %v2744 = vadd.f32 0.0, %v2743
  %v2745 = vpop.f32.mrf.mxu0
  %v2746 = vadd.f32 0.0, %v2745
  %v2747 = vpop.f32.mrf.mxu0
  %v2748 = vpop.f32.mrf.mxu0
  %2749 = vdwg.mxu0
  %v2750 = vadd.f32 %v2663, %v2703
  %v2751 = vadd.f32 %v2664, %v2705
  %v2752 = vadd.f32 %v2665, %v2744
  %v2753 = vadd.f32 %v2666, %v2746
  %v2754 = vxor.u32 %v2750, 2147483648
  %v2755 = vmul.f32 %v2754, 1.442695
  %v2756 = vpow.pop %v2755
  %v2757 = vadd.f32 %v2756, 1.0
  %v2758 = vrcp.pop %v2757
  %v2759 = vmul.f32 1.0, %v2758
  %v2760 = vxor.u32 %v2751, 2147483648
  %v2761 = vmul.f32 %v2760, 1.442695
  %v2762 = vpow.pop %v2761
  %v2763 = vadd.f32 %v2762, 1.0
  %v2764 = vrcp.pop %v2763
  %v2765 = vmul.f32 1.0, %v2764
  %v2766 = vtanh.pop %v2752
  %v2767 = vxor.u32 %v2753, 2147483648
  %v2768 = vmul.f32 %v2767, 1.442695
  %v2769 = vpow.pop %v2768
  %v2770 = vadd.f32 %v2769, 1.0
  %v2771 = vrcp.pop %v2770
  %v2772 = vmul.f32 1.0, %v2771
  %v2773 = vmul.f32 %v2765, %v2659
  %v2774 = vmul.f32 %v2759, %v2766
  %v2775 = vadd.f32 %v2773, %v2774
  %v2776 = vtanh.pop %v2775
  %v2777 = vmul.f32 %v2772, %v2776
  %2778 = vst [vmem:[#allocation2] sm:$0xff] %v2777
  %2779 = vst [vmem:[#allocation3] sm:$0xff] %v2775
  %v2780 = vpack.c.bf16 %v2777, %v2777
  %s2781 = scalar_lea.vmem %s4, 60
  %2782 = vst [vmem:[%s2781] sm:$0xf] %v2780
  // Predicated region
  $region22: #{lm_lstm_drop_forward.2} parent=0 // pred_check
    _
  $region23: #{lm_lstm_drop_forward.2} parent=0 // pred_check_branch
    %2784 = sbr.rel (0) target = $region25
  $region24: #{lm_lstm_drop_forward.2} parent=0 // pred_region
    _
  $region25: #{lm_lstm_drop_forward.2} parent=0 // pred_fallthru
    _
  // Predicated region
  $region26: #{lm_lstm_drop_forward.2} parent=0 // pred_check
    _
  $region27: #{lm_lstm_drop_forward.2} parent=0 // pred_check_branch
    %2786 = sbr.rel (0) target = $region29
  $region28: #{lm_lstm_drop_forward.2} parent=0 // pred_region
    _
  $region29: #{lm_lstm_drop_forward.2} parent=0 // pred_fallthru
    _

</llo_original>
